<compile_context>
chip_gen: v7x
topology: tpu7x:2x2x1
jax: 0.10.0
libtpu: 0.0.40
codegen_flags: <defaults>
</compile_context>

<pallas_src>
import functools
import math

import jax
import jax.numpy as jnp
from jax.experimental import pallas as pl
from jax.experimental.pallas import tpu as pltpu

# Set to jnp.bfloat16 on v6e/v7x for ~2x MXU throughput / halved weight DMA
# (accumulation stays f32 via preferred_element_type). Kept f32 here so the
# numerics match the f32 PyTorch reference.
MATMUL_DTYPE = jnp.float32


# ----------------------------- fused kernels --------------------------------

def _layernorm(x, g, b, eps):
    mu = jnp.mean(x, axis=-1, keepdims=True)
    var = jnp.mean(jnp.square(x - mu), axis=-1, keepdims=True)
    return (x - mu) * jax.lax.rsqrt(var + eps) * g + b


def _attention_core(x, kv_in, g, b, wqkv, bqkv, wo, bo, *,
                    num_heads, causal, self_kv, eps):
    """x: [Sq, D] residual stream; kv_in: [Skv, D]; returns x + MHA(LN(x))."""
    D = x.shape[-1]
    dh = D // num_heads
    scale = 1.0 / math.sqrt(dh)

    n = _layernorm(x, g, b, eps)

    if self_kv:
        # single fused [D, 3D] projection for Q, K, V
        qkv = jnp.dot(n.astype(MATMUL_DTYPE), wqkv.astype(MATMUL_DTYPE),
                      preferred_element_type=jnp.float32) + bqkv
        q, k, v = qkv[:, :D], qkv[:, D:2 * D], qkv[:, 2 * D:]
    else:
        # query from LN(x); keys/values from the (un-normalized) encoder output
        q = jnp.dot(n.astype(MATMUL_DTYPE), wqkv[:, :D].astype(MATMUL_DTYPE),
                    preferred_element_type=jnp.float32) + bqkv[:, :D]
        kvp = jnp.dot(kv_in.astype(MATMUL_DTYPE), wqkv[:, D:].astype(MATMUL_DTYPE),
                      preferred_element_type=jnp.float32) + bqkv[:, D:]
        k, v = kvp[:, :D], kvp[:, D:]

    sq, sk = q.shape[0], k.shape[0]
    if causal:
        row = jax.lax.broadcasted_iota(jnp.int32, (sq, sk), 0)
        col = jax.lax.broadcasted_iota(jnp.int32, (sq, sk), 1)
        bias = jnp.where(col > row, jnp.float32(-1e9), jnp.float32(0.0))

    # TODO(synk): for production Sq/Sk, tile over Sk with an online-softmax
    # (flash-style) accumulator instead of a full [Sq, Sk] score tile.
    acc = jnp.zeros((sq, D), jnp.float32)
    for h in range(num_heads):                      # static unroll; heads sliced
        lo, hi = h * dh, (h + 1) * dh               # on the D (lane) axis
        s = jax.lax.dot_general(q[:, lo:hi], k[:, lo:hi],
                                (((1,), (1,)), ((), ())),
                                preferred_element_type=jnp.float32) * scale
        if causal:
            s = s + bias
        s = s - jnp.max(s, axis=-1, keepdims=True)
        p = jnp.exp(s)
        p = p * pl.reciprocal(jnp.sum(p, axis=-1, keepdims=True), approx=True)
        ctx = jnp.dot(p, v[:, lo:hi], preferred_element_type=jnp.float32)
        # fold the output projection in per-head: ctx @ Wo = sum_h ctx_h @ Wo[h]
        acc = acc + jnp.dot(ctx.astype(MATMUL_DTYPE),
                            wo[lo:hi, :].astype(MATMUL_DTYPE),
                            preferred_element_type=jnp.float32)

    return x + acc + bo


def _self_attn_kernel(x_ref, g_ref, b_ref, wqkv_ref, bqkv_ref, wo_ref, bo_ref,
                      o_ref, *, num_heads, causal, eps):
    x = x_ref[0]
    o_ref[0] = _attention_core(x, x, g_ref[...], b_ref[...], wqkv_ref[...],
                               bqkv_ref[...], wo_ref[...], bo_ref[...],
                               num_heads=num_heads, causal=causal,
                               self_kv=True, eps=eps)


def _cross_attn_kernel(x_ref, kv_ref, g_ref, b_ref, wqkv_ref, bqkv_ref, wo_ref,
                       bo_ref, o_ref, *, num_heads, causal, eps):
    o_ref[0] = _attention_core(x_ref[0], kv_ref[0], g_ref[...], b_ref[...],
                               wqkv_ref[...], bqkv_ref[...], wo_ref[...],
                               bo_ref[...], num_heads=num_heads, causal=causal,
                               self_kv=False, eps=eps)


def _ffn_block_kernel(x_ref, g_ref, b_ref, w1_ref, b1_ref, w2_ref, b2_ref,
                      o_ref, *, eps):
    x = x_ref[...]
    n = _layernorm(x, g_ref[...], b_ref[...], eps)
    h = jnp.dot(n.astype(MATMUL_DTYPE), w1_ref[...].astype(MATMUL_DTYPE),
                preferred_element_type=jnp.float32) + b1_ref[...]
    h = jnp.maximum(h, 0.0)
    y = jnp.dot(h.astype(MATMUL_DTYPE), w2_ref[...].astype(MATMUL_DTYPE),
                preferred_element_type=jnp.float32) + b2_ref[...]
    o_ref[...] = x + y


def _final_kernel(x_ref, g_ref, b_ref, w_ref, bo_ref, o_ref, *, eps):
    n = _layernorm(x_ref[...], g_ref[...], b_ref[...], eps)
    o_ref[...] = jnp.dot(n.astype(MATMUL_DTYPE), w_ref[...].astype(MATMUL_DTYPE),
                         preferred_element_type=jnp.float32) + bo_ref[...]


# ----------------------------- pallas wrappers -------------------------------

def _pick_row_tile(m, cap=512):
    """Largest row-tile <= cap that divides m (whole array at toy sizes)."""
    if m <= cap:
        return m
    for t in (512, 256, 128, 64, 32, 16, 8):
        if m % t == 0:
            return t
    return m


def attn_block(x, kv, g, b, wqkv, bqkv, wo, bo, *, num_heads, causal, self_kv,
               eps=1e-5):
    """Fused pre-norm attention block: x + MHA(LN(x), kv).  x: [B, Sq, D]."""
    B, Sq, D = x.shape
    w_specs = [
        pl.BlockSpec((1, D), lambda i: (0, 0)),          # gamma
        pl.BlockSpec((1, D), lambda i: (0, 0)),          # beta
        pl.BlockSpec((D, 3 * D), lambda i: (0, 0)),      # wqkv
        pl.BlockSpec((1, 3 * D), lambda i: (0, 0)),      # bqkv
        pl.BlockSpec((D, D), lambda i: (0, 0)),          # wo
        pl.BlockSpec((1, D), lambda i: (0, 0)),          # bo
    ]
    if self_kv:
        kern = functools.partial(_self_attn_kernel, num_heads=num_heads,
                                 causal=causal, eps=eps)
        in_specs = [pl.BlockSpec((1, Sq, D), lambda i: (i, 0, 0))] + w_specs
        args = (x, g, b, wqkv, bqkv, wo, bo)
    else:
        Skv = kv.shape[1]
        kern = functools.partial(_cross_attn_kernel, num_heads=num_heads,
                                 causal=causal, eps=eps)
        in_specs = [pl.BlockSpec((1, Sq, D), lambda i: (i, 0, 0)),
                    pl.BlockSpec((1, Skv, D), lambda i: (i, 0, 0))] + w_specs
        args = (x, kv, g, b, wqkv, bqkv, wo, bo)

    return pl.pallas_call(
        kern,
        out_shape=jax.ShapeDtypeStruct((B, Sq, D), jnp.float32),
        grid=(B,),
        in_specs=in_specs,
        out_specs=pl.BlockSpec((1, Sq, D), lambda i: (i, 0, 0)),
        compiler_params=pltpu.CompilerParams(dimension_semantics=("parallel",)),
    )(*args)


def ffn_block(x2d, g, b, w1, b1, w2, b2, *, eps=1e-5):
    """Fused pre-norm FF block: x + FF2(ReLU(FF1(LN(x)))).  x2d: [M, D]."""
    M, D = x2d.shape
    F = w1.shape[1]
    tm = _pick_row_tile(M)
    kern = functools.partial(_ffn_block_kernel, eps=eps)
    return pl.pallas_call(
        kern,
        out_shape=jax.ShapeDtypeStruct((M, D), jnp.float32),
        grid=(M // tm,),
        in_specs=[
            pl.BlockSpec((tm, D), lambda i: (i, 0)),
            pl.BlockSpec((1, D), lambda i: (0, 0)),
            pl.BlockSpec((1, D), lambda i: (0, 0)),
            pl.BlockSpec((D, F), lambda i: (0, 0)),
            pl.BlockSpec((1, F), lambda i: (0, 0)),
            pl.BlockSpec((F, D), lambda i: (0, 0)),
            pl.BlockSpec((1, D), lambda i: (0, 0)),
        ],
        out_specs=pl.BlockSpec((tm, D), lambda i: (i, 0)),
        compiler_params=pltpu.CompilerParams(dimension_semantics=("parallel",)),
    )(x2d, g, b, w1, b1, w2, b2)


def final_norm_project(x2d, g, b, w, bias, *, eps=1e-5):
    """Fused final LayerNorm + vocab projection. Vocab padded to 128 lanes."""
    M, D = x2d.shape
    V = w.shape[1]
    Np = max(128, ((V + 127) // 128) * 128)
    if Np != V:
        w = jnp.pad(w, ((0, 0), (0, Np - V)))
        bias = jnp.pad(bias, ((0, 0), (0, Np - V)))
    tm = _pick_row_tile(M)
    kern = functools.partial(_final_kernel, eps=eps)
    out = pl.pallas_call(
        kern,
        out_shape=jax.ShapeDtypeStruct((M, Np), jnp.float32),
        grid=(M // tm,),
        in_specs=[
            pl.BlockSpec((tm, D), lambda i: (i, 0)),
            pl.BlockSpec((1, D), lambda i: (0, 0)),
            pl.BlockSpec((1, D), lambda i: (0, 0)),
            pl.BlockSpec((D, Np), lambda i: (0, 0)),
            pl.BlockSpec((1, Np), lambda i: (0, 0)),
        ],
        out_specs=pl.BlockSpec((tm, Np), lambda i: (i, 0)),
        compiler_params=pltpu.CompilerParams(dimension_semantics=("parallel",)),
    )(x2d, g, b, w, bias)
    return out[:, :V]


# ----------------------------- model pieces ----------------------------------

def make_sinusoidal_pe(max_seq_len, embed_dim):
    pos = jnp.arange(max_seq_len, dtype=jnp.float32)[:, None]
    div = jnp.exp(jnp.arange(0, embed_dim, 2, dtype=jnp.float32)
                  * (-math.log(10000.0) / embed_dim))
    pe = jnp.zeros((max_seq_len, embed_dim), jnp.float32)
    pe = pe.at[:, 0::2].set(jnp.sin(pos * div))
    pe = pe.at[:, 1::2].set(jnp.cos(pos * div))
    return pe


def init_params(key, vocab_size, embed_dim, num_heads, ff_dim, num_layers):
    def dense(k, fan_in, fan_out):
        kw, kb = jax.random.split(k)
        bound = 1.0 / math.sqrt(fan_in)
        w = jax.random.uniform(kw, (fan_in, fan_out), jnp.float32, -bound, bound)
        b = jax.random.uniform(kb, (1, fan_out), jnp.float32, -bound, bound)
        return w, b

    keys = jax.random.split(key, 2 + num_layers)
    params = {
        "embedding": jax.random.normal(keys[0], (vocab_size, embed_dim),
                                       jnp.float32),
        "final_g": jnp.ones((1, embed_dim), jnp.float32),
        "final_b": jnp.zeros((1, embed_dim), jnp.float32),
    }
    params["out_w"], params["out_b"] = dense(keys[1], embed_dim, vocab_size)

    layers = []
    for li in range(num_layers):
        lk = jax.random.split(keys[2 + li], 6)
        lp = {}
        lp["sa_wqkv"], lp["sa_bqkv"] = dense(lk[0], embed_dim, 3 * embed_dim)
        lp["sa_wo"], lp["sa_bo"] = dense(lk[1], embed_dim, embed_dim)
        lp["ca_wqkv"], lp["ca_bqkv"] = dense(lk[2], embed_dim, 3 * embed_dim)
        lp["ca_wo"], lp["ca_bo"] = dense(lk[3], embed_dim, embed_dim)
        lp["ff_w1"], lp["ff_b1"] = dense(lk[4], embed_dim, ff_dim)
        lp["ff_w2"], lp["ff_b2"] = dense(lk[5], ff_dim, embed_dim)
        for n in ("ln1", "ln2", "ln3"):
            lp[n + "_g"] = jnp.ones((1, embed_dim), jnp.float32)
            lp[n + "_b"] = jnp.zeros((1, embed_dim), jnp.float32)
        layers.append(lp)
    params["layers"] = layers
    return params


def decoder_layer_forward(x, encoder_output, lp, num_heads):
    B, St, D = x.shape
    # pre-norm self-attention (causal mask generated in-kernel) + residual
    x = attn_block(x, x, lp["ln1_g"], lp["ln1_b"], lp["sa_wqkv"], lp["sa_bqkv"],
                   lp["sa_wo"], lp["sa_bo"], num_heads=num_heads,
                   causal=True, self_kv=True)
    # pre-norm cross-attention (src_mask=None) + residual
    x = attn_block(x, encoder_output, lp["ln2_g"], lp["ln2_b"], lp["ca_wqkv"],
                   lp["ca_bqkv"], lp["ca_wo"], lp["ca_bo"], num_heads=num_heads,
                   causal=False, self_kv=False)
    # pre-norm feed-forward + residual (fused in-kernel)
    y = ffn_block(x.reshape(-1, D), lp["ln3_g"], lp["ln3_b"],
                  lp["ff_w1"], lp["ff_b1"], lp["ff_w2"], lp["ff_b2"])
    return y.reshape(B, St, D)


def transformer_decoder_forward(params, target_ids, encoder_output, pe_table,
                                *, num_heads):
    B, St = target_ids.shape
    D = params["embedding"].shape[1]

    # token embedding gather + sinusoidal positional encoding (JAX glue);
    # decoder-level dropout = identity in eval.
    x = params["embedding"][target_ids] + pe_table[:St][None, :, :]

    for lp in params["layers"]:
        x = decoder_layer_forward(x, encoder_output, lp, num_heads)

    # final LayerNorm (pre_norm=True) + output projection, fused
    logits2d = final_norm_project(x.reshape(-1, D), params["final_g"],
                                  params["final_b"], params["out_w"],
                                  params["out_b"])
    return logits2d.reshape(B, St, -1)


# --------------------------------- main ---------------------------------------

if __name__ == "__main__":
    VOCAB = 64
    EMBED = 32
    HEADS = 4
    FF = 64
    LAYERS = 2
    MAX_SEQ = 16
    B, TGT_SEQ, SRC_SEQ = 2, 8, 8

    key = jax.random.PRNGKey(0)
    kp, kt, ke = jax.random.split(key, 3)

    params = init_params(kp, VOCAB, EMBED, HEADS, FF, LAYERS)
    pe_table = make_sinusoidal_pe(MAX_SEQ, EMBED)

    target_ids = jax.random.randint(kt, (B, TGT_SEQ), 0, VOCAB)
    encoder_output = jax.random.normal(ke, (B, SRC_SEQ, EMBED), jnp.float32)

    fwd = jax.jit(functools.partial(transformer_decoder_forward,
                                    num_heads=HEADS))
    logits = jax.block_until_ready(fwd(params, target_ids, encoder_output,
                                       pe_table))
    assert logits.shape == (B, TGT_SEQ, VOCAB)
    assert bool(jnp.all(jnp.isfinite(logits)))
    print("KERNEL_OK")
</pallas_src>

<mosaic_0001>
module attributes {stable_mosaic.version = 11 : i64} {
  func.func @_self_attn_kernel(%arg0: i32, %arg1: memref<1x8x32xf32, #tpu.memory_space<vmem>>, %arg2: memref<1x32xf32, #tpu.memory_space<vmem>>, %arg3: memref<1x32xf32, #tpu.memory_space<vmem>>, %arg4: memref<32x96xf32, #tpu.memory_space<vmem>>, %arg5: memref<1x96xf32, #tpu.memory_space<vmem>>, %arg6: memref<32x32xf32, #tpu.memory_space<vmem>>, %arg7: memref<1x32xf32, #tpu.memory_space<vmem>>, %arg8: memref<1x8x32xf32, #tpu.memory_space<vmem>>) attributes {dimension_semantics = [#tpu.dimension_semantics<parallel>], iteration_bounds = array<i64: 2>, scalar_prefetch = 0 : i64, scratch_operands = 0 : i64, tpu.core_type = #tpu.core_type<tc>, window_params = [{transform_indices = @transform_0, window_bounds = array<i64: 1, 8, 32>}, {pipeline_mode = #tpu.pipeline_mode<synchronous>, transform_indices = @transform_1, window_bounds = array<i64: 1, 32>}, {pipeline_mode = #tpu.pipeline_mode<synchronous>, transform_indices = @transform_2, window_bounds = array<i64: 1, 32>}, {pipeline_mode = #tpu.pipeline_mode<synchronous>, transform_indices = @transform_3, window_bounds = array<i64: 32, 96>}, {pipeline_mode = #tpu.pipeline_mode<synchronous>, transform_indices = @transform_4, window_bounds = array<i64: 1, 96>}, {pipeline_mode = #tpu.pipeline_mode<synchronous>, transform_indices = @transform_5, window_bounds = array<i64: 32, 32>}, {pipeline_mode = #tpu.pipeline_mode<synchronous>, transform_indices = @transform_6, window_bounds = array<i64: 1, 32>}, {transform_indices = @transform_7, window_bounds = array<i64: 1, 8, 32>}]} {
    %c0 = arith.constant 0 : index
    %c0_0 = arith.constant 0 : index
    %c0_1 = arith.constant 0 : index
    %0 = vector.load %arg1[%c0, %c0_0, %c0_1] : memref<1x8x32xf32, #tpu.memory_space<vmem>>, vector<1x8x32xf32>
    %1 = vector.shape_cast %0 : vector<1x8x32xf32> to vector<8x32xf32>
    %c0_2 = arith.constant 0 : index
    %c0_3 = arith.constant 0 : index
    %2 = vector.load %arg2[%c0_2, %c0_3] : memref<1x32xf32, #tpu.memory_space<vmem>>, vector<1x32xf32>
    %c0_4 = arith.constant 0 : index
    %c0_5 = arith.constant 0 : index
    %3 = vector.load %arg3[%c0_4, %c0_5] : memref<1x32xf32, #tpu.memory_space<vmem>>, vector<1x32xf32>
    %c0_6 = arith.constant 0 : index
    %c0_7 = arith.constant 0 : index
    %4 = vector.load %arg4[%c0_6, %c0_7] : memref<32x96xf32, #tpu.memory_space<vmem>>, vector<32x96xf32>
    %c0_8 = arith.constant 0 : index
    %c0_9 = arith.constant 0 : index
    %5 = vector.load %arg5[%c0_8, %c0_9] : memref<1x96xf32, #tpu.memory_space<vmem>>, vector<1x96xf32>
    %c0_10 = arith.constant 0 : index
    %c0_11 = arith.constant 0 : index
    %6 = vector.load %arg6[%c0_10, %c0_11] : memref<32x32xf32, #tpu.memory_space<vmem>>, vector<32x32xf32>
    %c0_12 = arith.constant 0 : index
    %c0_13 = arith.constant 0 : index
    %7 = vector.load %arg7[%c0_12, %c0_13] : memref<1x32xf32, #tpu.memory_space<vmem>>, vector<1x32xf32>
    %cst = arith.constant dense<0.000000e+00> : vector<8xf32>
    %8 = vector.multi_reduction <add>, %1, %cst [1] : vector<8x32xf32> to vector<8xf32>
    %9 = vector.shape_cast %8 : vector<8xf32> to vector<8x1xf32>
    %cst_14 = arith.constant 3.200000e+01 : f32
    %10 = vector.broadcast %cst_14 : f32 to vector<8x1xf32>
    %11 = arith.divf %9, %10 : vector<8x1xf32>
    %12 = vector.broadcast %11 : vector<8x1xf32> to vector<8x32xf32>
    %13 = arith.subf %1, %12 : vector<8x32xf32>
    %14 = arith.mulf %13, %13 : vector<8x32xf32>
    %cst_15 = arith.constant dense<0.000000e+00> : vector<8xf32>
    %15 = vector.multi_reduction <add>, %14, %cst_15 [1] : vector<8x32xf32> to vector<8xf32>
    %16 = vector.shape_cast %15 : vector<8xf32> to vector<8x1xf32>
    %cst_16 = arith.constant 3.200000e+01 : f32
    %17 = vector.broadcast %cst_16 : f32 to vector<8x1xf32>
    %18 = arith.divf %16, %17 : vector<8x1xf32>
    %19 = vector.broadcast %11 : vector<8x1xf32> to vector<8x32xf32>
    %20 = arith.subf %1, %19 : vector<8x32xf32>
    %cst_17 = arith.constant 9.99999974E-6 : f32
    %21 = vector.broadcast %cst_17 : f32 to vector<8x1xf32>
    %22 = arith.addf %18, %21 : vector<8x1xf32>
    %23 = math.rsqrt %22 : vector<8x1xf32>
    %24 = vector.broadcast %23 : vector<8x1xf32> to vector<8x32xf32>
    %25 = arith.mulf %20, %24 : vector<8x32xf32>
    %26 = vector.broadcast %2 : vector<1x32xf32> to vector<8x32xf32>
    %27 = arith.mulf %25, %26 : vector<8x32xf32>
    %28 = vector.broadcast %3 : vector<1x32xf32> to vector<8x32xf32>
    %29 = arith.addf %27, %28 : vector<8x32xf32>
    %cst_18 = arith.constant dense<0.000000e+00> : vector<8x96xf32>
    %30 = tpu.matmul %29, %4, %cst_18 {dimension_numbers = #tpu.dot_dimension_numbers<[1], [0], [0], [1], [0, 0, 1, 1], [], []>} : vector<8x32xf32>, vector<32x96xf32>, vector<8x96xf32> -> vector<8x96xf32>
    %31 = vector.broadcast %5 : vector<1x96xf32> to vector<8x96xf32>
    %32 = arith.addf %30, %31 : vector<8x96xf32>
    %33 = vector.extract_strided_slice %32 {offsets = [0, 0], sizes = [8, 32], strides = [1, 1]} : vector<8x96xf32> to vector<8x32xf32>
    %34 = vector.extract_strided_slice %32 {offsets = [0, 32], sizes = [8, 32], strides = [1, 1]} : vector<8x96xf32> to vector<8x32xf32>
    %35 = vector.extract_strided_slice %32 {offsets = [0, 64], sizes = [8, 32], strides = [1, 1]} : vector<8x96xf32> to vector<8x32xf32>
    %36 = tpu.iota {dimensions = array<i32: 0>} : vector<8x8xi32>
    %37 = tpu.iota {dimensions = array<i32: 1>} : vector<8x8xi32>
    %38 = arith.cmpi sgt, %37, %36 : vector<8x8xi32>
    %cst_19 = arith.constant -1.000000e+09 : f32
    %cst_20 = arith.constant 0.000000e+00 : f32
    %39 = vector.broadcast %cst_19 : f32 to vector<8x8xf32>
    %40 = vector.broadcast %cst_20 : f32 to vector<8x8xf32>
    %41 = arith.select %38, %39, %40 : vector<8x8xi1>, vector<8x8xf32>
    %cst_21 = arith.constant 0.000000e+00 : f32
    %42 = vector.broadcast %cst_21 : f32 to vector<8x32xf32>
    %43 = vector.extract_strided_slice %33 {offsets = [0, 0], sizes = [8, 8], strides = [1, 1]} : vector<8x32xf32> to vector<8x8xf32>
    %44 = vector.extract_strided_slice %34 {offsets = [0, 0], sizes = [8, 8], strides = [1, 1]} : vector<8x32xf32> to vector<8x8xf32>
    %cst_22 = arith.constant dense<0.000000e+00> : vector<8x8xf32>
    %45 = tpu.matmul %43, %44, %cst_22 {dimension_numbers = #tpu.dot_dimension_numbers<[1], [1], [0], [0], [0, 0, 1, 0], [], []>} : vector<8x8xf32>, vector<8x8xf32>, vector<8x8xf32> -> vector<8x8xf32>
    %cst_23 = arith.constant 0.353553385 : f32
    %46 = vector.broadcast %cst_23 : f32 to vector<8x8xf32>
    %47 = arith.mulf %45, %46 : vector<8x8xf32>
    %48 = arith.addf %47, %41 : vector<8x8xf32>
    %cst_24 = arith.constant dense<0xFF800000> : vector<8xf32>
    %49 = vector.multi_reduction <maximumf>, %48, %cst_24 [1] : vector<8x8xf32> to vector<8xf32>
    %50 = vector.shape_cast %49 : vector<8xf32> to vector<8x1xf32>
    %51 = vector.broadcast %50 : vector<8x1xf32> to vector<8x8xf32>
    %52 = arith.subf %48, %51 : vector<8x8xf32>
    %53 = math.exp %52 : vector<8x8xf32>
    %cst_25 = arith.constant dense<0.000000e+00> : vector<8xf32>
    %54 = vector.multi_reduction <add>, %53, %cst_25 [1] : vector<8x8xf32> to vector<8xf32>
    %55 = vector.shape_cast %54 : vector<8xf32> to vector<8x1xf32>
    %56 = tpu.reciprocal %55 {approx = true} : vector<8x1xf32> -> vector<8x1xf32>
    %57 = vector.broadcast %56 : vector<8x1xf32> to vector<8x8xf32>
    %58 = arith.mulf %53, %57 : vector<8x8xf32>
    %59 = vector.extract_strided_slice %35 {offsets = [0, 0], sizes = [8, 8], strides = [1, 1]} : vector<8x32xf32> to vector<8x8xf32>
    %cst_26 = arith.constant dense<0.000000e+00> : vector<8x8xf32>
    %60 = tpu.matmul %58, %59, %cst_26 {dimension_numbers = #tpu.dot_dimension_numbers<[1], [0], [0], [1], [0, 0, 1, 1], [], []>} : vector<8x8xf32>, vector<8x8xf32>, vector<8x8xf32> -> vector<8x8xf32>
    %61 = vector.extract_strided_slice %6 {offsets = [0, 0], sizes = [8, 32], strides = [1, 1]} : vector<32x32xf32> to vector<8x32xf32>
    %cst_27 = arith.constant dense<0.000000e+00> : vector<8x32xf32>
    %62 = tpu.matmul %60, %61, %cst_27 {dimension_numbers = #tpu.dot_dimension_numbers<[1], [0], [0], [1], [0, 0, 1, 1], [], []>} : vector<8x8xf32>, vector<8x32xf32>, vector<8x32xf32> -> vector<8x32xf32>
    %63 = arith.addf %42, %62 : vector<8x32xf32>
    %64 = vector.extract_strided_slice %33 {offsets = [0, 8], sizes = [8, 8], strides = [1, 1]} : vector<8x32xf32> to vector<8x8xf32>
    %65 = vector.extract_strided_slice %34 {offsets = [0, 8], sizes = [8, 8], strides = [1, 1]} : vector<8x32xf32> to vector<8x8xf32>
    %cst_28 = arith.constant dense<0.000000e+00> : vector<8x8xf32>
    %66 = tpu.matmul %64, %65, %cst_28 {dimension_numbers = #tpu.dot_dimension_numbers<[1], [1], [0], [0], [0, 0, 1, 0], [], []>} : vector<8x8xf32>, vector<8x8xf32>, vector<8x8xf32> -> vector<8x8xf32>
    %cst_29 = arith.constant 0.353553385 : f32
    %67 = vector.broadcast %cst_29 : f32 to vector<8x8xf32>
    %68 = arith.mulf %66, %67 : vector<8x8xf32>
    %69 = arith.addf %68, %41 : vector<8x8xf32>
    %cst_30 = arith.constant dense<0xFF800000> : vector<8xf32>
    %70 = vector.multi_reduction <maximumf>, %69, %cst_30 [1] : vector<8x8xf32> to vector<8xf32>
    %71 = vector.shape_cast %70 : vector<8xf32> to vector<8x1xf32>
    %72 = vector.broadcast %71 : vector<8x1xf32> to vector<8x8xf32>
    %73 = arith.subf %69, %72 : vector<8x8xf32>
    %74 = math.exp %73 : vector<8x8xf32>
    %cst_31 = arith.constant dense<0.000000e+00> : vector<8xf32>
    %75 = vector.multi_reduction <add>, %74, %cst_31 [1] : vector<8x8xf32> to vector<8xf32>
    %76 = vector.shape_cast %75 : vector<8xf32> to vector<8x1xf32>
    %77 = tpu.reciprocal %76 {approx = true} : vector<8x1xf32> -> vector<8x1xf32>
    %78 = vector.broadcast %77 : vector<8x1xf32> to vector<8x8xf32>
    %79 = arith.mulf %74, %78 : vector<8x8xf32>
    %80 = vector.extract_strided_slice %35 {offsets = [0, 8], sizes = [8, 8], strides = [1, 1]} : vector<8x32xf32> to vector<8x8xf32>
    %cst_32 = arith.constant dense<0.000000e+00> : vector<8x8xf32>
    %81 = tpu.matmul %79, %80, %cst_32 {dimension_numbers = #tpu.dot_dimension_numbers<[1], [0], [0], [1], [0, 0, 1, 1], [], []>} : vector<8x8xf32>, vector<8x8xf32>, vector<8x8xf32> -> vector<8x8xf32>
    %82 = vector.extract_strided_slice %6 {offsets = [8, 0], sizes = [8, 32], strides = [1, 1]} : vector<32x32xf32> to vector<8x32xf32>
    %cst_33 = arith.constant dense<0.000000e+00> : vector<8x32xf32>
    %83 = tpu.matmul %81, %82, %cst_33 {dimension_numbers = #tpu.dot_dimension_numbers<[1], [0], [0], [1], [0, 0, 1, 1], [], []>} : vector<8x8xf32>, vector<8x32xf32>, vector<8x32xf32> -> vector<8x32xf32>
    %84 = arith.addf %63, %83 : vector<8x32xf32>
    %85 = vector.extract_strided_slice %33 {offsets = [0, 16], sizes = [8, 8], strides = [1, 1]} : vector<8x32xf32> to vector<8x8xf32>
    %86 = vector.extract_strided_slice %34 {offsets = [0, 16], sizes = [8, 8], strides = [1, 1]} : vector<8x32xf32> to vector<8x8xf32>
    %cst_34 = arith.constant dense<0.000000e+00> : vector<8x8xf32>
    %87 = tpu.matmul %85, %86, %cst_34 {dimension_numbers = #tpu.dot_dimension_numbers<[1], [1], [0], [0], [0, 0, 1, 0], [], []>} : vector<8x8xf32>, vector<8x8xf32>, vector<8x8xf32> -> vector<8x8xf32>
    %cst_35 = arith.constant 0.353553385 : f32
    %88 = vector.broadcast %cst_35 : f32 to vector<8x8xf32>
    %89 = arith.mulf %87, %88 : vector<8x8xf32>
    %90 = arith.addf %89, %41 : vector<8x8xf32>
    %cst_36 = arith.constant dense<0xFF800000> : vector<8xf32>
    %91 = vector.multi_reduction <maximumf>, %90, %cst_36 [1] : vector<8x8xf32> to vector<8xf32>
    %92 = vector.shape_cast %91 : vector<8xf32> to vector<8x1xf32>
    %93 = vector.broadcast %92 : vector<8x1xf32> to vector<8x8xf32>
    %94 = arith.subf %90, %93 : vector<8x8xf32>
    %95 = math.exp %94 : vector<8x8xf32>
    %cst_37 = arith.constant dense<0.000000e+00> : vector<8xf32>
    %96 = vector.multi_reduction <add>, %95, %cst_37 [1] : vector<8x8xf32> to vector<8xf32>
    %97 = vector.shape_cast %96 : vector<8xf32> to vector<8x1xf32>
    %98 = tpu.reciprocal %97 {approx = true} : vector<8x1xf32> -> vector<8x1xf32>
    %99 = vector.broadcast %98 : vector<8x1xf32> to vector<8x8xf32>
    %100 = arith.mulf %95, %99 : vector<8x8xf32>
    %101 = vector.extract_strided_slice %35 {offsets = [0, 16], sizes = [8, 8], strides = [1, 1]} : vector<8x32xf32> to vector<8x8xf32>
    %cst_38 = arith.constant dense<0.000000e+00> : vector<8x8xf32>
    %102 = tpu.matmul %100, %101, %cst_38 {dimension_numbers = #tpu.dot_dimension_numbers<[1], [0], [0], [1], [0, 0, 1, 1], [], []>} : vector<8x8xf32>, vector<8x8xf32>, vector<8x8xf32> -> vector<8x8xf32>
    %103 = vector.extract_strided_slice %6 {offsets = [16, 0], sizes = [8, 32], strides = [1, 1]} : vector<32x32xf32> to vector<8x32xf32>
    %cst_39 = arith.constant dense<0.000000e+00> : vector<8x32xf32>
    %104 = tpu.matmul %102, %103, %cst_39 {dimension_numbers = #tpu.dot_dimension_numbers<[1], [0], [0], [1], [0, 0, 1, 1], [], []>} : vector<8x8xf32>, vector<8x32xf32>, vector<8x32xf32> -> vector<8x32xf32>
    %105 = arith.addf %84, %104 : vector<8x32xf32>
    %106 = vector.extract_strided_slice %33 {offsets = [0, 24], sizes = [8, 8], strides = [1, 1]} : vector<8x32xf32> to vector<8x8xf32>
    %107 = vector.extract_strided_slice %34 {offsets = [0, 24], sizes = [8, 8], strides = [1, 1]} : vector<8x32xf32> to vector<8x8xf32>
    %cst_40 = arith.constant dense<0.000000e+00> : vector<8x8xf32>
    %108 = tpu.matmul %106, %107, %cst_40 {dimension_numbers = #tpu.dot_dimension_numbers<[1], [1], [0], [0], [0, 0, 1, 0], [], []>} : vector<8x8xf32>, vector<8x8xf32>, vector<8x8xf32> -> vector<8x8xf32>
    %cst_41 = arith.constant 0.353553385 : f32
    %109 = vector.broadcast %cst_41 : f32 to vector<8x8xf32>
    %110 = arith.mulf %108, %109 : vector<8x8xf32>
    %111 = arith.addf %110, %41 : vector<8x8xf32>
    %cst_42 = arith.constant dense<0xFF800000> : vector<8xf32>
    %112 = vector.multi_reduction <maximumf>, %111, %cst_42 [1] : vector<8x8xf32> to vector<8xf32>
    %113 = vector.shape_cast %112 : vector<8xf32> to vector<8x1xf32>
    %114 = vector.broadcast %113 : vector<8x1xf32> to vector<8x8xf32>
    %115 = arith.subf %111, %114 : vector<8x8xf32>
    %116 = math.exp %115 : vector<8x8xf32>
    %cst_43 = arith.constant dense<0.000000e+00> : vector<8xf32>
    %117 = vector.multi_reduction <add>, %116, %cst_43 [1] : vector<8x8xf32> to vector<8xf32>
    %118 = vector.shape_cast %117 : vector<8xf32> to vector<8x1xf32>
    %119 = tpu.reciprocal %118 {approx = true} : vector<8x1xf32> -> vector<8x1xf32>
    %120 = vector.broadcast %119 : vector<8x1xf32> to vector<8x8xf32>
    %121 = arith.mulf %116, %120 : vector<8x8xf32>
    %122 = vector.extract_strided_slice %35 {offsets = [0, 24], sizes = [8, 8], strides = [1, 1]} : vector<8x32xf32> to vector<8x8xf32>
    %cst_44 = arith.constant dense<0.000000e+00> : vector<8x8xf32>
    %123 = tpu.matmul %121, %122, %cst_44 {dimension_numbers = #tpu.dot_dimension_numbers<[1], [0], [0], [1], [0, 0, 1, 1], [], []>} : vector<8x8xf32>, vector<8x8xf32>, vector<8x8xf32> -> vector<8x8xf32>
    %124 = vector.extract_strided_slice %6 {offsets = [24, 0], sizes = [8, 32], strides = [1, 1]} : vector<32x32xf32> to vector<8x32xf32>
    %cst_45 = arith.constant dense<0.000000e+00> : vector<8x32xf32>
    %125 = tpu.matmul %123, %124, %cst_45 {dimension_numbers = #tpu.dot_dimension_numbers<[1], [0], [0], [1], [0, 0, 1, 1], [], []>} : vector<8x8xf32>, vector<8x32xf32>, vector<8x32xf32> -> vector<8x32xf32>
    %126 = arith.addf %105, %125 : vector<8x32xf32>
    %127 = arith.addf %1, %126 : vector<8x32xf32>
    %128 = vector.broadcast %7 : vector<1x32xf32> to vector<8x32xf32>
    %129 = arith.addf %127, %128 : vector<8x32xf32>
    %c0_46 = arith.constant 0 : index
    %c0_47 = arith.constant 0 : index
    %c0_48 = arith.constant 0 : index
    %130 = vector.load %arg8[%c0_46, %c0_47, %c0_48] : memref<1x8x32xf32, #tpu.memory_space<vmem>>, vector<1x8x32xf32>
    %131 = vector.shape_cast %130 : vector<1x8x32xf32> to vector<8x32xf32>
    %132 = vector.shape_cast %129 : vector<8x32xf32> to vector<1x8x32xf32>
    tpu.vector_store %arg8[%c0_46, %c0_47, %c0_48], %132 {strides = array<i32>} : memref<1x8x32xf32, #tpu.memory_space<vmem>>, vector<1x8x32xf32>,
    return
  }
  func.func @transform_0(%arg0: i32) -> (i32, i32, i32) {
    %c0_i32 = arith.constant 0 : i32
    %c0_i32_0 = arith.constant 0 : i32
    %c0_i32_1 = arith.constant 0 : i32
    return %arg0, %c0_i32, %c0_i32_0 : i32, i32, i32
  }
  func.func @transform_1(%arg0: i32) -> (i32, i32) {
    %c0_i32 = arith.constant 0 : i32
    %c0_i32_0 = arith.constant 0 : i32
    %c0_i32_1 = arith.constant 0 : i32
    return %c0_i32, %c0_i32_0 : i32, i32
  }
  func.func @transform_2(%arg0: i32) -> (i32, i32) {
    %c0_i32 = arith.constant 0 : i32
    %c0_i32_0 = arith.constant 0 : i32
    %c0_i32_1 = arith.constant 0 : i32
    return %c0_i32, %c0_i32_0 : i32, i32
  }
  func.func @transform_3(%arg0: i32) -> (i32, i32) {
    %c0_i32 = arith.constant 0 : i32
    %c0_i32_0 = arith.constant 0 : i32
    %c0_i32_1 = arith.constant 0 : i32
    return %c0_i32, %c0_i32_0 : i32, i32
  }
  func.func @transform_4(%arg0: i32) -> (i32, i32) {
    %c0_i32 = arith.constant 0 : i32
    %c0_i32_0 = arith.constant 0 : i32
    %c0_i32_1 = arith.constant 0 : i32
    return %c0_i32, %c0_i32_0 : i32, i32
  }
  func.func @transform_5(%arg0: i32) -> (i32, i32) {
    %c0_i32 = arith.constant 0 : i32
    %c0_i32_0 = arith.constant 0 : i32
    %c0_i32_1 = arith.constant 0 : i32
    return %c0_i32, %c0_i32_0 : i32, i32
  }
  func.func @transform_6(%arg0: i32) -> (i32, i32) {
    %c0_i32 = arith.constant 0 : i32
    %c0_i32_0 = arith.constant 0 : i32
    %c0_i32_1 = arith.constant 0 : i32
    return %c0_i32, %c0_i32_0 : i32, i32
  }
  func.func @transform_7(%arg0: i32) -> (i32, i32, i32) {
    %c0_i32 = arith.constant 0 : i32
    %c0_i32_0 = arith.constant 0 : i32
    %c0_i32_1 = arith.constant 0 : i32
    return %arg0, %c0_i32, %c0_i32_0 : i32, i32, i32
  }
}

module attributes {stable_mosaic.version = 11 : i64} {
  func.func @_ffn_block_kernel(%arg0: i32, %arg1: memref<16x32xf32, #tpu.memory_space<vmem>>, %arg2: memref<1x32xf32, #tpu.memory_space<vmem>>, %arg3: memref<1x32xf32, #tpu.memory_space<vmem>>, %arg4: memref<32x64xf32, #tpu.memory_space<vmem>>, %arg5: memref<1x64xf32, #tpu.memory_space<vmem>>, %arg6: memref<64x32xf32, #tpu.memory_space<vmem>>, %arg7: memref<1x32xf32, #tpu.memory_space<vmem>>, %arg8: memref<16x32xf32, #tpu.memory_space<vmem>>) attributes {dimension_semantics = [#tpu.dimension_semantics<parallel>], iteration_bounds = array<i64: 1>, scalar_prefetch = 0 : i64, scratch_operands = 0 : i64, tpu.core_type = #tpu.core_type<tc>, window_params = [{transform_indices = @transform_0, window_bounds = array<i64: 16, 32>}, {pipeline_mode = #tpu.pipeline_mode<synchronous>, transform_indices = @transform_1, window_bounds = array<i64: 1, 32>}, {pipeline_mode = #tpu.pipeline_mode<synchronous>, transform_indices = @transform_2, window_bounds = array<i64: 1, 32>}, {pipeline_mode = #tpu.pipeline_mode<synchronous>, transform_indices = @transform_3, window_bounds = array<i64: 32, 64>}, {pipeline_mode = #tpu.pipeline_mode<synchronous>, transform_indices = @transform_4, window_bounds = array<i64: 1, 64>}, {pipeline_mode = #tpu.pipeline_mode<synchronous>, transform_indices = @transform_5, window_bounds = array<i64: 64, 32>}, {pipeline_mode = #tpu.pipeline_mode<synchronous>, transform_indices = @transform_6, window_bounds = array<i64: 1, 32>}, {transform_indices = @transform_7, window_bounds = array<i64: 16, 32>}]} {
    %c0 = arith.constant 0 : index
    %c0_0 = arith.constant 0 : index
    %0 = vector.load %arg1[%c0, %c0_0] : memref<16x32xf32, #tpu.memory_space<vmem>>, vector<16x32xf32>
    %c0_1 = arith.constant 0 : index
    %c0_2 = arith.constant 0 : index
    %1 = vector.load %arg2[%c0_1, %c0_2] : memref<1x32xf32, #tpu.memory_space<vmem>>, vector<1x32xf32>
    %c0_3 = arith.constant 0 : index
    %c0_4 = arith.constant 0 : index
    %2 = vector.load %arg3[%c0_3, %c0_4] : memref<1x32xf32, #tpu.memory_space<vmem>>, vector<1x32xf32>
    %cst = arith.constant dense<0.000000e+00> : vector<16xf32>
    %3 = vector.multi_reduction <add>, %0, %cst [1] : vector<16x32xf32> to vector<16xf32>
    %4 = vector.shape_cast %3 : vector<16xf32> to vector<16x1xf32>
    %cst_5 = arith.constant 3.200000e+01 : f32
    %5 = vector.broadcast %cst_5 : f32 to vector<16x1xf32>
    %6 = arith.divf %4, %5 : vector<16x1xf32>
    %7 = vector.broadcast %6 : vector<16x1xf32> to vector<16x32xf32>
    %8 = arith.subf %0, %7 : vector<16x32xf32>
    %9 = arith.mulf %8, %8 : vector<16x32xf32>
    %cst_6 = arith.constant dense<0.000000e+00> : vector<16xf32>
    %10 = vector.multi_reduction <add>, %9, %cst_6 [1] : vector<16x32xf32> to vector<16xf32>
    %11 = vector.shape_cast %10 : vector<16xf32> to vector<16x1xf32>
    %cst_7 = arith.constant 3.200000e+01 : f32
    %12 = vector.broadcast %cst_7 : f32 to vector<16x1xf32>
    %13 = arith.divf %11, %12 : vector<16x1xf32>
    %14 = vector.broadcast %6 : vector<16x1xf32> to vector<16x32xf32>
    %15 = arith.subf %0, %14 : vector<16x32xf32>
    %cst_8 = arith.constant 9.99999974E-6 : f32
    %16 = vector.broadcast %cst_8 : f32 to vector<16x1xf32>
    %17 = arith.addf %13, %16 : vector<16x1xf32>
    %18 = math.rsqrt %17 : vector<16x1xf32>
    %19 = vector.broadcast %18 : vector<16x1xf32> to vector<16x32xf32>
    %20 = arith.mulf %15, %19 : vector<16x32xf32>
    %21 = vector.broadcast %1 : vector<1x32xf32> to vector<16x32xf32>
    %22 = arith.mulf %20, %21 : vector<16x32xf32>
    %23 = vector.broadcast %2 : vector<1x32xf32> to vector<16x32xf32>
    %24 = arith.addf %22, %23 : vector<16x32xf32>
    %c0_9 = arith.constant 0 : index
    %c0_10 = arith.constant 0 : index
    %25 = vector.load %arg4[%c0_9, %c0_10] : memref<32x64xf32, #tpu.memory_space<vmem>>, vector<32x64xf32>
    %cst_11 = arith.constant dense<0.000000e+00> : vector<16x64xf32>
    %26 = tpu.matmul %24, %25, %cst_11 {dimension_numbers = #tpu.dot_dimension_numbers<[1], [0], [0], [1], [0, 0, 1, 1], [], []>} : vector<16x32xf32>, vector<32x64xf32>, vector<16x64xf32> -> vector<16x64xf32>
    %c0_12 = arith.constant 0 : index
    %c0_13 = arith.constant 0 : index
    %27 = vector.load %arg5[%c0_12, %c0_13] : memref<1x64xf32, #tpu.memory_space<vmem>>, vector<1x64xf32>
    %28 = vector.broadcast %27 : vector<1x64xf32> to vector<16x64xf32>
    %29 = arith.addf %26, %28 : vector<16x64xf32>
    %cst_14 = arith.constant 0.000000e+00 : f32
    %30 = vector.broadcast %cst_14 : f32 to vector<16x64xf32>
    %31 = arith.maximumf %29, %30 : vector<16x64xf32>
    %c0_15 = arith.constant 0 : index
    %c0_16 = arith.constant 0 : index
    %32 = vector.load %arg6[%c0_15, %c0_16] : memref<64x32xf32, #tpu.memory_space<vmem>>, vector<64x32xf32>
    %cst_17 = arith.constant dense<0.000000e+00> : vector<16x32xf32>
    %33 = tpu.matmul %31, %32, %cst_17 {dimension_numbers = #tpu.dot_dimension_numbers<[1], [0], [0], [1], [0, 0, 1, 1], [], []>} : vector<16x64xf32>, vector<64x32xf32>, vector<16x32xf32> -> vector<16x32xf32>
    %c0_18 = arith.constant 0 : index
    %c0_19 = arith.constant 0 : index
    %34 = vector.load %arg7[%c0_18, %c0_19] : memref<1x32xf32, #tpu.memory_space<vmem>>, vector<1x32xf32>
    %35 = vector.broadcast %34 : vector<1x32xf32> to vector<16x32xf32>
    %36 = arith.addf %33, %35 : vector<16x32xf32>
    %37 = arith.addf %0, %36 : vector<16x32xf32>
    %c0_20 = arith.constant 0 : index
    %c0_21 = arith.constant 0 : index
    %38 = vector.load %arg8[%c0_20, %c0_21] : memref<16x32xf32, #tpu.memory_space<vmem>>, vector<16x32xf32>
    tpu.vector_store %arg8[%c0_20, %c0_21], %37 {strides = array<i32>} : memref<16x32xf32, #tpu.memory_space<vmem>>, vector<16x32xf32>,
    return
  }
  func.func @transform_0(%arg0: i32) -> (i32, i32) {
    %c0_i32 = arith.constant 0 : i32
    %c0_i32_0 = arith.constant 0 : i32
    return %arg0, %c0_i32 : i32, i32
  }
  func.func @transform_1(%arg0: i32) -> (i32, i32) {
    %c0_i32 = arith.constant 0 : i32
    %c0_i32_0 = arith.constant 0 : i32
    %c0_i32_1 = arith.constant 0 : i32
    return %c0_i32, %c0_i32_0 : i32, i32
  }
  func.func @transform_2(%arg0: i32) -> (i32, i32) {
    %c0_i32 = arith.constant 0 : i32
    %c0_i32_0 = arith.constant 0 : i32
    %c0_i32_1 = arith.constant 0 : i32
    return %c0_i32, %c0_i32_0 : i32, i32
  }
  func.func @transform_3(%arg0: i32) -> (i32, i32) {
    %c0_i32 = arith.constant 0 : i32
    %c0_i32_0 = arith.constant 0 : i32
    %c0_i32_1 = arith.constant 0 : i32
    return %c0_i32, %c0_i32_0 : i32, i32
  }
  func.func @transform_4(%arg0: i32) -> (i32, i32) {
    %c0_i32 = arith.constant 0 : i32
    %c0_i32_0 = arith.constant 0 : i32
    %c0_i32_1 = arith.constant 0 : i32
    return %c0_i32, %c0_i32_0 : i32, i32
  }
  func.func @transform_5(%arg0: i32) -> (i32, i32) {
    %c0_i32 = arith.constant 0 : i32
    %c0_i32_0 = arith.constant 0 : i32
    %c0_i32_1 = arith.constant 0 : i32
    return %c0_i32, %c0_i32_0 : i32, i32
  }
  func.func @transform_6(%arg0: i32) -> (i32, i32) {
    %c0_i32 = arith.constant 0 : i32
    %c0_i32_0 = arith.constant 0 : i32
    %c0_i32_1 = arith.constant 0 : i32
    return %c0_i32, %c0_i32_0 : i32, i32
  }
  func.func @transform_7(%arg0: i32) -> (i32, i32) {
    %c0_i32 = arith.constant 0 : i32
    %c0_i32_0 = arith.constant 0 : i32
    return %arg0, %c0_i32 : i32, i32
  }
}

module attributes {stable_mosaic.version = 11 : i64} {
  func.func @_cross_attn_kernel(%arg0: i32, %arg1: memref<1x8x32xf32, #tpu.memory_space<vmem>>, %arg2: memref<1x8x32xf32, #tpu.memory_space<vmem>>, %arg3: memref<1x32xf32, #tpu.memory_space<vmem>>, %arg4: memref<1x32xf32, #tpu.memory_space<vmem>>, %arg5: memref<32x96xf32, #tpu.memory_space<vmem>>, %arg6: memref<1x96xf32, #tpu.memory_space<vmem>>, %arg7: memref<32x32xf32, #tpu.memory_space<vmem>>, %arg8: memref<1x32xf32, #tpu.memory_space<vmem>>, %arg9: memref<1x8x32xf32, #tpu.memory_space<vmem>>) attributes {dimension_semantics = [#tpu.dimension_semantics<parallel>], iteration_bounds = array<i64: 2>, scalar_prefetch = 0 : i64, scratch_operands = 0 : i64, tpu.core_type = #tpu.core_type<tc>, window_params = [{transform_indices = @transform_0, window_bounds = array<i64: 1, 8, 32>}, {transform_indices = @transform_1, window_bounds = array<i64: 1, 8, 32>}, {pipeline_mode = #tpu.pipeline_mode<synchronous>, transform_indices = @transform_2, window_bounds = array<i64: 1, 32>}, {pipeline_mode = #tpu.pipeline_mode<synchronous>, transform_indices = @transform_3, window_bounds = array<i64: 1, 32>}, {pipeline_mode = #tpu.pipeline_mode<synchronous>, transform_indices = @transform_4, window_bounds = array<i64: 32, 96>}, {pipeline_mode = #tpu.pipeline_mode<synchronous>, transform_indices = @transform_5, window_bounds = array<i64: 1, 96>}, {pipeline_mode = #tpu.pipeline_mode<synchronous>, transform_indices = @transform_6, window_bounds = array<i64: 32, 32>}, {pipeline_mode = #tpu.pipeline_mode<synchronous>, transform_indices = @transform_7, window_bounds = array<i64: 1, 32>}, {transform_indices = @transform_8, window_bounds = array<i64: 1, 8, 32>}]} {
    %c0 = arith.constant 0 : index
    %c0_0 = arith.constant 0 : index
    %c0_1 = arith.constant 0 : index
    %0 = vector.load %arg1[%c0, %c0_0, %c0_1] : memref<1x8x32xf32, #tpu.memory_space<vmem>>, vector<1x8x32xf32>
    %1 = vector.shape_cast %0 : vector<1x8x32xf32> to vector<8x32xf32>
    %c0_2 = arith.constant 0 : index
    %c0_3 = arith.constant 0 : index
    %c0_4 = arith.constant 0 : index
    %2 = vector.load %arg2[%c0_2, %c0_3, %c0_4] : memref<1x8x32xf32, #tpu.memory_space<vmem>>, vector<1x8x32xf32>
    %3 = vector.shape_cast %2 : vector<1x8x32xf32> to vector<8x32xf32>
    %c0_5 = arith.constant 0 : index
    %c0_6 = arith.constant 0 : index
    %4 = vector.load %arg3[%c0_5, %c0_6] : memref<1x32xf32, #tpu.memory_space<vmem>>, vector<1x32xf32>
    %c0_7 = arith.constant 0 : index
    %c0_8 = arith.constant 0 : index
    %5 = vector.load %arg4[%c0_7, %c0_8] : memref<1x32xf32, #tpu.memory_space<vmem>>, vector<1x32xf32>
    %c0_9 = arith.constant 0 : index
    %c0_10 = arith.constant 0 : index
    %6 = vector.load %arg5[%c0_9, %c0_10] : memref<32x96xf32, #tpu.memory_space<vmem>>, vector<32x96xf32>
    %c0_11 = arith.constant 0 : index
    %c0_12 = arith.constant 0 : index
    %7 = vector.load %arg6[%c0_11, %c0_12] : memref<1x96xf32, #tpu.memory_space<vmem>>, vector<1x96xf32>
    %c0_13 = arith.constant 0 : index
    %c0_14 = arith.constant 0 : index
    %8 = vector.load %arg7[%c0_13, %c0_14] : memref<32x32xf32, #tpu.memory_space<vmem>>, vector<32x32xf32>
    %c0_15 = arith.constant 0 : index
    %c0_16 = arith.constant 0 : index
    %9 = vector.load %arg8[%c0_15, %c0_16] : memref<1x32xf32, #tpu.memory_space<vmem>>, vector<1x32xf32>
    %cst = arith.constant dense<0.000000e+00> : vector<8xf32>
    %10 = vector.multi_reduction <add>, %1, %cst [1] : vector<8x32xf32> to vector<8xf32>
    %11 = vector.shape_cast %10 : vector<8xf32> to vector<8x1xf32>
    %cst_17 = arith.constant 3.200000e+01 : f32
    %12 = vector.broadcast %cst_17 : f32 to vector<8x1xf32>
    %13 = arith.divf %11, %12 : vector<8x1xf32>
    %14 = vector.broadcast %13 : vector<8x1xf32> to vector<8x32xf32>
    %15 = arith.subf %1, %14 : vector<8x32xf32>
    %16 = arith.mulf %15, %15 : vector<8x32xf32>
    %cst_18 = arith.constant dense<0.000000e+00> : vector<8xf32>
    %17 = vector.multi_reduction <add>, %16, %cst_18 [1] : vector<8x32xf32> to vector<8xf32>
    %18 = vector.shape_cast %17 : vector<8xf32> to vector<8x1xf32>
    %cst_19 = arith.constant 3.200000e+01 : f32
    %19 = vector.broadcast %cst_19 : f32 to vector<8x1xf32>
    %20 = arith.divf %18, %19 : vector<8x1xf32>
    %21 = vector.broadcast %13 : vector<8x1xf32> to vector<8x32xf32>
    %22 = arith.subf %1, %21 : vector<8x32xf32>
    %cst_20 = arith.constant 9.99999974E-6 : f32
    %23 = vector.broadcast %cst_20 : f32 to vector<8x1xf32>
    %24 = arith.addf %20, %23 : vector<8x1xf32>
    %25 = math.rsqrt %24 : vector<8x1xf32>
    %26 = vector.broadcast %25 : vector<8x1xf32> to vector<8x32xf32>
    %27 = arith.mulf %22, %26 : vector<8x32xf32>
    %28 = vector.broadcast %4 : vector<1x32xf32> to vector<8x32xf32>
    %29 = arith.mulf %27, %28 : vector<8x32xf32>
    %30 = vector.broadcast %5 : vector<1x32xf32> to vector<8x32xf32>
    %31 = arith.addf %29, %30 : vector<8x32xf32>
    %32 = vector.extract_strided_slice %6 {offsets = [0, 0], sizes = [32, 32], strides = [1, 1]} : vector<32x96xf32> to vector<32x32xf32>
    %cst_21 = arith.constant dense<0.000000e+00> : vector<8x32xf32>
    %33 = tpu.matmul %31, %32, %cst_21 {dimension_numbers = #tpu.dot_dimension_numbers<[1], [0], [0], [1], [0, 0, 1, 1], [], []>} : vector<8x32xf32>, vector<32x32xf32>, vector<8x32xf32> -> vector<8x32xf32>
    %34 = vector.extract_strided_slice %7 {offsets = [0, 0], sizes = [1, 32], strides = [1, 1]} : vector<1x96xf32> to vector<1x32xf32>
    %35 = vector.broadcast %34 : vector<1x32xf32> to vector<8x32xf32>
    %36 = arith.addf %33, %35 : vector<8x32xf32>
    %37 = vector.extract_strided_slice %6 {offsets = [0, 32], sizes = [32, 64], strides = [1, 1]} : vector<32x96xf32> to vector<32x64xf32>
    %cst_22 = arith.constant dense<0.000000e+00> : vector<8x64xf32>
    %38 = tpu.matmul %3, %37, %cst_22 {dimension_numbers = #tpu.dot_dimension_numbers<[1], [0], [0], [1], [0, 0, 1, 1], [], []>} : vector<8x32xf32>, vector<32x64xf32>, vector<8x64xf32> -> vector<8x64xf32>
    %39 = vector.extract_strided_slice %7 {offsets = [0, 32], sizes = [1, 64], strides = [1, 1]} : vector<1x96xf32> to vector<1x64xf32>
    %40 = vector.broadcast %39 : vector<1x64xf32> to vector<8x64xf32>
    %41 = arith.addf %38, %40 : vector<8x64xf32>
    %42 = vector.extract_strided_slice %41 {offsets = [0, 0], sizes = [8, 32], strides = [1, 1]} : vector<8x64xf32> to vector<8x32xf32>
    %43 = vector.extract_strided_slice %41 {offsets = [0, 32], sizes = [8, 32], strides = [1, 1]} : vector<8x64xf32> to vector<8x32xf32>
    %cst_23 = arith.constant 0.000000e+00 : f32
    %44 = vector.broadcast %cst_23 : f32 to vector<8x32xf32>
    %45 = vector.extract_strided_slice %36 {offsets = [0, 0], sizes = [8, 8], strides = [1, 1]} : vector<8x32xf32> to vector<8x8xf32>
    %46 = vector.extract_strided_slice %42 {offsets = [0, 0], sizes = [8, 8], strides = [1, 1]} : vector<8x32xf32> to vector<8x8xf32>
    %cst_24 = arith.constant dense<0.000000e+00> : vector<8x8xf32>
    %47 = tpu.matmul %45, %46, %cst_24 {dimension_numbers = #tpu.dot_dimension_numbers<[1], [1], [0], [0], [0, 0, 1, 0], [], []>} : vector<8x8xf32>, vector<8x8xf32>, vector<8x8xf32> -> vector<8x8xf32>
    %cst_25 = arith.constant 0.353553385 : f32
    %48 = vector.broadcast %cst_25 : f32 to vector<8x8xf32>
    %49 = arith.mulf %47, %48 : vector<8x8xf32>
    %cst_26 = arith.constant dense<0xFF800000> : vector<8xf32>
    %50 = vector.multi_reduction <maximumf>, %49, %cst_26 [1] : vector<8x8xf32> to vector<8xf32>
    %51 = vector.shape_cast %50 : vector<8xf32> to vector<8x1xf32>
    %52 = vector.broadcast %51 : vector<8x1xf32> to vector<8x8xf32>
    %53 = arith.subf %49, %52 : vector<8x8xf32>
    %54 = math.exp %53 : vector<8x8xf32>
    %cst_27 = arith.constant dense<0.000000e+00> : vector<8xf32>
    %55 = vector.multi_reduction <add>, %54, %cst_27 [1] : vector<8x8xf32> to vector<8xf32>
    %56 = vector.shape_cast %55 : vector<8xf32> to vector<8x1xf32>
    %57 = tpu.reciprocal %56 {approx = true} : vector<8x1xf32> -> vector<8x1xf32>
    %58 = vector.broadcast %57 : vector<8x1xf32> to vector<8x8xf32>
    %59 = arith.mulf %54, %58 : vector<8x8xf32>
    %60 = vector.extract_strided_slice %43 {offsets = [0, 0], sizes = [8, 8], strides = [1, 1]} : vector<8x32xf32> to vector<8x8xf32>
    %cst_28 = arith.constant dense<0.000000e+00> : vector<8x8xf32>
    %61 = tpu.matmul %59, %60, %cst_28 {dimension_numbers = #tpu.dot_dimension_numbers<[1], [0], [0], [1], [0, 0, 1, 1], [], []>} : vector<8x8xf32>, vector<8x8xf32>, vector<8x8xf32> -> vector<8x8xf32>
    %62 = vector.extract_strided_slice %8 {offsets = [0, 0], sizes = [8, 32], strides = [1, 1]} : vector<32x32xf32> to vector<8x32xf32>
    %cst_29 = arith.constant dense<0.000000e+00> : vector<8x32xf32>
    %63 = tpu.matmul %61, %62, %cst_29 {dimension_numbers = #tpu.dot_dimension_numbers<[1], [0], [0], [1], [0, 0, 1, 1], [], []>} : vector<8x8xf32>, vector<8x32xf32>, vector<8x32xf32> -> vector<8x32xf32>
    %64 = arith.addf %44, %63 : vector<8x32xf32>
    %65 = vector.extract_strided_slice %36 {offsets = [0, 8], sizes = [8, 8], strides = [1, 1]} : vector<8x32xf32> to vector<8x8xf32>
    %66 = vector.extract_strided_slice %42 {offsets = [0, 8], sizes = [8, 8], strides = [1, 1]} : vector<8x32xf32> to vector<8x8xf32>
    %cst_30 = arith.constant dense<0.000000e+00> : vector<8x8xf32>
    %67 = tpu.matmul %65, %66, %cst_30 {dimension_numbers = #tpu.dot_dimension_numbers<[1], [1], [0], [0], [0, 0, 1, 0], [], []>} : vector<8x8xf32>, vector<8x8xf32>, vector<8x8xf32> -> vector<8x8xf32>
    %cst_31 = arith.constant 0.353553385 : f32
    %68 = vector.broadcast %cst_31 : f32 to vector<8x8xf32>
    %69 = arith.mulf %67, %68 : vector<8x8xf32>
    %cst_32 = arith.constant dense<0xFF800000> : vector<8xf32>
    %70 = vector.multi_reduction <maximumf>, %69, %cst_32 [1] : vector<8x8xf32> to vector<8xf32>
    %71 = vector.shape_cast %70 : vector<8xf32> to vector<8x1xf32>
    %72 = vector.broadcast %71 : vector<8x1xf32> to vector<8x8xf32>
    %73 = arith.subf %69, %72 : vector<8x8xf32>
    %74 = math.exp %73 : vector<8x8xf32>
    %cst_33 = arith.constant dense<0.000000e+00> : vector<8xf32>
    %75 = vector.multi_reduction <add>, %74, %cst_33 [1] : vector<8x8xf32> to vector<8xf32>
    %76 = vector.shape_cast %75 : vector<8xf32> to vector<8x1xf32>
    %77 = tpu.reciprocal %76 {approx = true} : vector<8x1xf32> -> vector<8x1xf32>
    %78 = vector.broadcast %77 : vector<8x1xf32> to vector<8x8xf32>
    %79 = arith.mulf %74, %78 : vector<8x8xf32>
    %80 = vector.extract_strided_slice %43 {offsets = [0, 8], sizes = [8, 8], strides = [1, 1]} : vector<8x32xf32> to vector<8x8xf32>
    %cst_34 = arith.constant dense<0.000000e+00> : vector<8x8xf32>
    %81 = tpu.matmul %79, %80, %cst_34 {dimension_numbers = #tpu.dot_dimension_numbers<[1], [0], [0], [1], [0, 0, 1, 1], [], []>} : vector<8x8xf32>, vector<8x8xf32>, vector<8x8xf32> -> vector<8x8xf32>
    %82 = vector.extract_strided_slice %8 {offsets = [8, 0], sizes = [8, 32], strides = [1, 1]} : vector<32x32xf32> to vector<8x32xf32>
    %cst_35 = arith.constant dense<0.000000e+00> : vector<8x32xf32>
    %83 = tpu.matmul %81, %82, %cst_35 {dimension_numbers = #tpu.dot_dimension_numbers<[1], [0], [0], [1], [0, 0, 1, 1], [], []>} : vector<8x8xf32>, vector<8x32xf32>, vector<8x32xf32> -> vector<8x32xf32>
    %84 = arith.addf %64, %83 : vector<8x32xf32>
    %85 = vector.extract_strided_slice %36 {offsets = [0, 16], sizes = [8, 8], strides = [1, 1]} : vector<8x32xf32> to vector<8x8xf32>
    %86 = vector.extract_strided_slice %42 {offsets = [0, 16], sizes = [8, 8], strides = [1, 1]} : vector<8x32xf32> to vector<8x8xf32>
    %cst_36 = arith.constant dense<0.000000e+00> : vector<8x8xf32>
    %87 = tpu.matmul %85, %86, %cst_36 {dimension_numbers = #tpu.dot_dimension_numbers<[1], [1], [0], [0], [0, 0, 1, 0], [], []>} : vector<8x8xf32>, vector<8x8xf32>, vector<8x8xf32> -> vector<8x8xf32>
    %cst_37 = arith.constant 0.353553385 : f32
    %88 = vector.broadcast %cst_37 : f32 to vector<8x8xf32>
    %89 = arith.mulf %87, %88 : vector<8x8xf32>
    %cst_38 = arith.constant dense<0xFF800000> : vector<8xf32>
    %90 = vector.multi_reduction <maximumf>, %89, %cst_38 [1] : vector<8x8xf32> to vector<8xf32>
    %91 = vector.shape_cast %90 : vector<8xf32> to vector<8x1xf32>
    %92 = vector.broadcast %91 : vector<8x1xf32> to vector<8x8xf32>
    %93 = arith.subf %89, %92 : vector<8x8xf32>
    %94 = math.exp %93 : vector<8x8xf32>
    %cst_39 = arith.constant dense<0.000000e+00> : vector<8xf32>
    %95 = vector.multi_reduction <add>, %94, %cst_39 [1] : vector<8x8xf32> to vector<8xf32>
    %96 = vector.shape_cast %95 : vector<8xf32> to vector<8x1xf32>
    %97 = tpu.reciprocal %96 {approx = true} : vector<8x1xf32> -> vector<8x1xf32>
    %98 = vector.broadcast %97 : vector<8x1xf32> to vector<8x8xf32>
    %99 = arith.mulf %94, %98 : vector<8x8xf32>
    %100 = vector.extract_strided_slice %43 {offsets = [0, 16], sizes = [8, 8], strides = [1, 1]} : vector<8x32xf32> to vector<8x8xf32>
    %cst_40 = arith.constant dense<0.000000e+00> : vector<8x8xf32>
    %101 = tpu.matmul %99, %100, %cst_40 {dimension_numbers = #tpu.dot_dimension_numbers<[1], [0], [0], [1], [0, 0, 1, 1], [], []>} : vector<8x8xf32>, vector<8x8xf32>, vector<8x8xf32> -> vector<8x8xf32>
    %102 = vector.extract_strided_slice %8 {offsets = [16, 0], sizes = [8, 32], strides = [1, 1]} : vector<32x32xf32> to vector<8x32xf32>
    %cst_41 = arith.constant dense<0.000000e+00> : vector<8x32xf32>
    %103 = tpu.matmul %101, %102, %cst_41 {dimension_numbers = #tpu.dot_dimension_numbers<[1], [0], [0], [1], [0, 0, 1, 1], [], []>} : vector<8x8xf32>, vector<8x32xf32>, vector<8x32xf32> -> vector<8x32xf32>
    %104 = arith.addf %84, %103 : vector<8x32xf32>
    %105 = vector.extract_strided_slice %36 {offsets = [0, 24], sizes = [8, 8], strides = [1, 1]} : vector<8x32xf32> to vector<8x8xf32>
    %106 = vector.extract_strided_slice %42 {offsets = [0, 24], sizes = [8, 8], strides = [1, 1]} : vector<8x32xf32> to vector<8x8xf32>
    %cst_42 = arith.constant dense<0.000000e+00> : vector<8x8xf32>
    %107 = tpu.matmul %105, %106, %cst_42 {dimension_numbers = #tpu.dot_dimension_numbers<[1], [1], [0], [0], [0, 0, 1, 0], [], []>} : vector<8x8xf32>, vector<8x8xf32>, vector<8x8xf32> -> vector<8x8xf32>
    %cst_43 = arith.constant 0.353553385 : f32
    %108 = vector.broadcast %cst_43 : f32 to vector<8x8xf32>
    %109 = arith.mulf %107, %108 : vector<8x8xf32>
    %cst_44 = arith.constant dense<0xFF800000> : vector<8xf32>
    %110 = vector.multi_reduction <maximumf>, %109, %cst_44 [1] : vector<8x8xf32> to vector<8xf32>
    %111 = vector.shape_cast %110 : vector<8xf32> to vector<8x1xf32>
    %112 = vector.broadcast %111 : vector<8x1xf32> to vector<8x8xf32>
    %113 = arith.subf %109, %112 : vector<8x8xf32>
    %114 = math.exp %113 : vector<8x8xf32>
    %cst_45 = arith.constant dense<0.000000e+00> : vector<8xf32>
    %115 = vector.multi_reduction <add>, %114, %cst_45 [1] : vector<8x8xf32> to vector<8xf32>
    %116 = vector.shape_cast %115 : vector<8xf32> to vector<8x1xf32>
    %117 = tpu.reciprocal %116 {approx = true} : vector<8x1xf32> -> vector<8x1xf32>
    %118 = vector.broadcast %117 : vector<8x1xf32> to vector<8x8xf32>
    %119 = arith.mulf %114, %118 : vector<8x8xf32>
    %120 = vector.extract_strided_slice %43 {offsets = [0, 24], sizes = [8, 8], strides = [1, 1]} : vector<8x32xf32> to vector<8x8xf32>
    %cst_46 = arith.constant dense<0.000000e+00> : vector<8x8xf32>
    %121 = tpu.matmul %119, %120, %cst_46 {dimension_numbers = #tpu.dot_dimension_numbers<[1], [0], [0], [1], [0, 0, 1, 1], [], []>} : vector<8x8xf32>, vector<8x8xf32>, vector<8x8xf32> -> vector<8x8xf32>
    %122 = vector.extract_strided_slice %8 {offsets = [24, 0], sizes = [8, 32], strides = [1, 1]} : vector<32x32xf32> to vector<8x32xf32>
    %cst_47 = arith.constant dense<0.000000e+00> : vector<8x32xf32>
    %123 = tpu.matmul %121, %122, %cst_47 {dimension_numbers = #tpu.dot_dimension_numbers<[1], [0], [0], [1], [0, 0, 1, 1], [], []>} : vector<8x8xf32>, vector<8x32xf32>, vector<8x32xf32> -> vector<8x32xf32>
    %124 = arith.addf %104, %123 : vector<8x32xf32>
    %125 = arith.addf %1, %124 : vector<8x32xf32>
    %126 = vector.broadcast %9 : vector<1x32xf32> to vector<8x32xf32>
    %127 = arith.addf %125, %126 : vector<8x32xf32>
    %c0_48 = arith.constant 0 : index
    %c0_49 = arith.constant 0 : index
    %c0_50 = arith.constant 0 : index
    %128 = vector.load %arg9[%c0_48, %c0_49, %c0_50] : memref<1x8x32xf32, #tpu.memory_space<vmem>>, vector<1x8x32xf32>
    %129 = vector.shape_cast %128 : vector<1x8x32xf32> to vector<8x32xf32>
    %130 = vector.shape_cast %127 : vector<8x32xf32> to vector<1x8x32xf32>
    tpu.vector_store %arg9[%c0_48, %c0_49, %c0_50], %130 {strides = array<i32>} : memref<1x8x32xf32, #tpu.memory_space<vmem>>, vector<1x8x32xf32>,
    return
  }
  func.func @transform_0(%arg0: i32) -> (i32, i32, i32) {
    %c0_i32 = arith.constant 0 : i32
    %c0_i32_0 = arith.constant 0 : i32
    %c0_i32_1 = arith.constant 0 : i32
    return %arg0, %c0_i32, %c0_i32_0 : i32, i32, i32
  }
  func.func @transform_1(%arg0: i32) -> (i32, i32, i32) {
    %c0_i32 = arith.constant 0 : i32
    %c0_i32_0 = arith.constant 0 : i32
    %c0_i32_1 = arith.constant 0 : i32
    return %arg0, %c0_i32, %c0_i32_0 : i32, i32, i32
  }
  func.func @transform_2(%arg0: i32) -> (i32, i32) {
    %c0_i32 = arith.constant 0 : i32
    %c0_i32_0 = arith.constant 0 : i32
    %c0_i32_1 = arith.constant 0 : i32
    return %c0_i32, %c0_i32_0 : i32, i32
  }
  func.func @transform_3(%arg0: i32) -> (i32, i32) {
    %c0_i32 = arith.constant 0 : i32
    %c0_i32_0 = arith.constant 0 : i32
    %c0_i32_1 = arith.constant 0 : i32
    return %c0_i32, %c0_i32_0 : i32, i32
  }
  func.func @transform_4(%arg0: i32) -> (i32, i32) {
    %c0_i32 = arith.constant 0 : i32
    %c0_i32_0 = arith.constant 0 : i32
    %c0_i32_1 = arith.constant 0 : i32
    return %c0_i32, %c0_i32_0 : i32, i32
  }
  func.func @transform_5(%arg0: i32) -> (i32, i32) {
    %c0_i32 = arith.constant 0 : i32
    %c0_i32_0 = arith.constant 0 : i32
    %c0_i32_1 = arith.constant 0 : i32
    return %c0_i32, %c0_i32_0 : i32, i32
  }
  func.func @transform_6(%arg0: i32) -> (i32, i32) {
    %c0_i32 = arith.constant 0 : i32
    %c0_i32_0 = arith.constant 0 : i32
    %c0_i32_1 = arith.constant 0 : i32
    return %c0_i32, %c0_i32_0 : i32, i32
  }
  func.func @transform_7(%arg0: i32) -> (i32, i32) {
    %c0_i32 = arith.constant 0 : i32
    %c0_i32_0 = arith.constant 0 : i32
    %c0_i32_1 = arith.constant 0 : i32
    return %c0_i32, %c0_i32_0 : i32, i32
  }
  func.func @transform_8(%arg0: i32) -> (i32, i32, i32) {
    %c0_i32 = arith.constant 0 : i32
    %c0_i32_0 = arith.constant 0 : i32
    %c0_i32_1 = arith.constant 0 : i32
    return %arg0, %c0_i32, %c0_i32_0 : i32, i32, i32
  }
}

module attributes {stable_mosaic.version = 11 : i64} {
  func.func @_final_kernel(%arg0: i32, %arg1: memref<16x32xf32, #tpu.memory_space<vmem>>, %arg2: memref<1x32xf32, #tpu.memory_space<vmem>>, %arg3: memref<1x32xf32, #tpu.memory_space<vmem>>, %arg4: memref<32x128xf32, #tpu.memory_space<vmem>>, %arg5: memref<1x128xf32, #tpu.memory_space<vmem>>, %arg6: memref<16x128xf32, #tpu.memory_space<vmem>>) attributes {dimension_semantics = [#tpu.dimension_semantics<parallel>], iteration_bounds = array<i64: 1>, scalar_prefetch = 0 : i64, scratch_operands = 0 : i64, tpu.core_type = #tpu.core_type<tc>, window_params = [{transform_indices = @transform_0, window_bounds = array<i64: 16, 32>}, {pipeline_mode = #tpu.pipeline_mode<synchronous>, transform_indices = @transform_1, window_bounds = array<i64: 1, 32>}, {pipeline_mode = #tpu.pipeline_mode<synchronous>, transform_indices = @transform_2, window_bounds = array<i64: 1, 32>}, {pipeline_mode = #tpu.pipeline_mode<synchronous>, transform_indices = @transform_3, window_bounds = array<i64: 32, 128>}, {pipeline_mode = #tpu.pipeline_mode<synchronous>, transform_indices = @transform_4, window_bounds = array<i64: 1, 128>}, {transform_indices = @transform_5, window_bounds = array<i64: 16, 128>}]} {
    %c0 = arith.constant 0 : index
    %c0_0 = arith.constant 0 : index
    %0 = vector.load %arg1[%c0, %c0_0] : memref<16x32xf32, #tpu.memory_space<vmem>>, vector<16x32xf32>
    %c0_1 = arith.constant 0 : index
    %c0_2 = arith.constant 0 : index
    %1 = vector.load %arg2[%c0_1, %c0_2] : memref<1x32xf32, #tpu.memory_space<vmem>>, vector<1x32xf32>
    %c0_3 = arith.constant 0 : index
    %c0_4 = arith.constant 0 : index
    %2 = vector.load %arg3[%c0_3, %c0_4] : memref<1x32xf32, #tpu.memory_space<vmem>>, vector<1x32xf32>
    %cst = arith.constant dense<0.000000e+00> : vector<16xf32>
    %3 = vector.multi_reduction <add>, %0, %cst [1] : vector<16x32xf32> to vector<16xf32>
    %4 = vector.shape_cast %3 : vector<16xf32> to vector<16x1xf32>
    %cst_5 = arith.constant 3.200000e+01 : f32
    %5 = vector.broadcast %cst_5 : f32 to vector<16x1xf32>
    %6 = arith.divf %4, %5 : vector<16x1xf32>
    %7 = vector.broadcast %6 : vector<16x1xf32> to vector<16x32xf32>
    %8 = arith.subf %0, %7 : vector<16x32xf32>
    %9 = arith.mulf %8, %8 : vector<16x32xf32>
    %cst_6 = arith.constant dense<0.000000e+00> : vector<16xf32>
    %10 = vector.multi_reduction <add>, %9, %cst_6 [1] : vector<16x32xf32> to vector<16xf32>
    %11 = vector.shape_cast %10 : vector<16xf32> to vector<16x1xf32>
    %cst_7 = arith.constant 3.200000e+01 : f32
    %12 = vector.broadcast %cst_7 : f32 to vector<16x1xf32>
    %13 = arith.divf %11, %12 : vector<16x1xf32>
    %14 = vector.broadcast %6 : vector<16x1xf32> to vector<16x32xf32>
    %15 = arith.subf %0, %14 : vector<16x32xf32>
    %cst_8 = arith.constant 9.99999974E-6 : f32
    %16 = vector.broadcast %cst_8 : f32 to vector<16x1xf32>
    %17 = arith.addf %13, %16 : vector<16x1xf32>
    %18 = math.rsqrt %17 : vector<16x1xf32>
    %19 = vector.broadcast %18 : vector<16x1xf32> to vector<16x32xf32>
    %20 = arith.mulf %15, %19 : vector<16x32xf32>
    %21 = vector.broadcast %1 : vector<1x32xf32> to vector<16x32xf32>
    %22 = arith.mulf %20, %21 : vector<16x32xf32>
    %23 = vector.broadcast %2 : vector<1x32xf32> to vector<16x32xf32>
    %24 = arith.addf %22, %23 : vector<16x32xf32>
    %c0_9 = arith.constant 0 : index
    %c0_10 = arith.constant 0 : index
    %25 = vector.load %arg4[%c0_9, %c0_10] : memref<32x128xf32, #tpu.memory_space<vmem>>, vector<32x128xf32>
    %cst_11 = arith.constant dense<0.000000e+00> : vector<16x128xf32>
    %26 = tpu.matmul %24, %25, %cst_11 {dimension_numbers = #tpu.dot_dimension_numbers<[1], [0], [0], [1], [0, 0, 1, 1], [], []>} : vector<16x32xf32>, vector<32x128xf32>, vector<16x128xf32> -> vector<16x128xf32>
    %c0_12 = arith.constant 0 : index
    %c0_13 = arith.constant 0 : index
    %27 = vector.load %arg5[%c0_12, %c0_13] : memref<1x128xf32, #tpu.memory_space<vmem>>, vector<1x128xf32>
    %28 = vector.broadcast %27 : vector<1x128xf32> to vector<16x128xf32>
    %29 = arith.addf %26, %28 : vector<16x128xf32>
    %c0_14 = arith.constant 0 : index
    %c0_15 = arith.constant 0 : index
    %30 = vector.load %arg6[%c0_14, %c0_15] : memref<16x128xf32, #tpu.memory_space<vmem>>, vector<16x128xf32>
    tpu.vector_store %arg6[%c0_14, %c0_15], %29 {strides = array<i32>} : memref<16x128xf32, #tpu.memory_space<vmem>>, vector<16x128xf32>,
    return
  }
  func.func @transform_0(%arg0: i32) -> (i32, i32) {
    %c0_i32 = arith.constant 0 : i32
    %c0_i32_0 = arith.constant 0 : i32
    return %arg0, %c0_i32 : i32, i32
  }
  func.func @transform_1(%arg0: i32) -> (i32, i32) {
    %c0_i32 = arith.constant 0 : i32
    %c0_i32_0 = arith.constant 0 : i32
    %c0_i32_1 = arith.constant 0 : i32
    return %c0_i32, %c0_i32_0 : i32, i32
  }
  func.func @transform_2(%arg0: i32) -> (i32, i32) {
    %c0_i32 = arith.constant 0 : i32
    %c0_i32_0 = arith.constant 0 : i32
    %c0_i32_1 = arith.constant 0 : i32
    return %c0_i32, %c0_i32_0 : i32, i32
  }
  func.func @transform_3(%arg0: i32) -> (i32, i32) {
    %c0_i32 = arith.constant 0 : i32
    %c0_i32_0 = arith.constant 0 : i32
    %c0_i32_1 = arith.constant 0 : i32
    return %c0_i32, %c0_i32_0 : i32, i32
  }
  func.func @transform_4(%arg0: i32) -> (i32, i32) {
    %c0_i32 = arith.constant 0 : i32
    %c0_i32_0 = arith.constant 0 : i32
    %c0_i32_1 = arith.constant 0 : i32
    return %c0_i32, %c0_i32_0 : i32, i32
  }
  func.func @transform_5(%arg0: i32) -> (i32, i32) {
    %c0_i32 = arith.constant 0 : i32
    %c0_i32_0 = arith.constant 0 : i32
    return %arg0, %c0_i32 : i32, i32
  }
}

</mosaic_0001>

<llo_original>
// kernel: transformer_decoder_forward.13
$region0: #{transformer_decoder_forward.13}
  #allocation0 [shape = 'u32[]', space=smem, size = 0x4, offset = 0x4, fixed_abs, tag = 'smem constant byte address 0x4 - core index']
  #allocation1 [shape = 'u32[144,128]{1,0:T(1,128)}', space=vmem, size = 0x12000, scoped, tag = 'internal scratch']
  %s0 = inlined_call_operand.vmem [shape: f32[16,32], index: 0, kind: input, shape index: {}]
  %s1 = inlined_call_operand.vmem [shape: f32[1,32], index: 1, kind: input, shape index: {}]
  %s2 = inlined_call_operand.vmem [shape: f32[1,32], index: 2, kind: input, shape index: {}]
  %s3 = inlined_call_operand.vmem [shape: f32[32,128], index: 3, kind: input, shape index: {}]
  %s4 = inlined_call_operand.vmem [shape: f32[1,128], index: 4, kind: input, shape index: {}]
  %s5 = inlined_call_operand.vmem [shape: f32[16,128], index: 5, kind: output, shape index: {}]
  %s6 = sld [smem:[#allocation0]]
  $region30: #{transformer_decoder_forward.13} parent=0
    _
  %s8 = ssub.s32 1, %s6
  %s9 = scalar_select 0, %s8, %s6
  // Predicated region
  $region2: #{transformer_decoder_forward.13} parent=0 // pred_check
    _
  $region3: #{transformer_decoder_forward.13} parent=0 // pred_check_branch
    %11 = sbr.rel (0) target = $region5
  $region4: #{transformer_decoder_forward.13} parent=0 // pred_region
    _
  $region5: #{transformer_decoder_forward.13} parent=0 // pred_fallthru
    _
  // Predicated region
  $region6: #{transformer_decoder_forward.13} parent=0 // pred_check
    _
  $region7: #{transformer_decoder_forward.13} parent=0 // pred_check_branch
    %13 = sbr.rel (0) target = $region9
  $region8: #{transformer_decoder_forward.13} parent=0 // pred_region
    _
  $region9: #{transformer_decoder_forward.13} parent=0 // pred_fallthru
    _
  // Predicated region
  $region10: #{transformer_decoder_forward.13} parent=0 // pred_check
    _
  $region11: #{transformer_decoder_forward.13} parent=0 // pred_check_branch
    %15 = sbr.rel (0) target = $region13
  $region12: #{transformer_decoder_forward.13} parent=0 // pred_region
    _
  $region13: #{transformer_decoder_forward.13} parent=0 // pred_fallthru
    _
  // Predicated region
  $region14: #{transformer_decoder_forward.13} parent=0 // pred_check
    _
  $region15: #{transformer_decoder_forward.13} parent=0 // pred_check_branch
    %17 = sbr.rel (0) target = $region17
  $region16: #{transformer_decoder_forward.13} parent=0 // pred_region
    _
  $region17: #{transformer_decoder_forward.13} parent=0 // pred_fallthru
    _
  // Predicated region
  $region18: #{transformer_decoder_forward.13} parent=0 // pred_check
    _
  $region19: #{transformer_decoder_forward.13} parent=0 // pred_check_branch
    %19 = sbr.rel (0) target = $region21
  $region20: #{transformer_decoder_forward.13} parent=0 // pred_region
    _
  $region21: #{transformer_decoder_forward.13} parent=0 // pred_fallthru
    _
  %v20 = vld [vmem:[%s0] sm:$0xff]
  %v21 = vld [vmem:[%s0 + $0x8] sm:$0xff]
  %v22 = vld [vmem:[%s1] sm:$0x1]
  %v23 = vld [vmem:[%s2] sm:$0x1]
  %vm24 = vcmask 261120
  %v25 = vsel %vm24, %v20, 0.0
  %26 = vadd.xlane.f32.xlu0 %v25
  %v27 = vpop.xlane.xlu0 %26
  %v28 = vsel %vm24, %v21, 0.0
  %29 = vadd.xlane.f32.xlu0 %v28
  %v30 = vpop.xlane.xlu0 %29
  %v31 = vrcp.pop 32.0
  %v32 = vmul.f32 %v27, %v31
  %v33 = vmul.f32 %v30, %v31
  %v34 = vsub.f32 %v20, %v32
  %v35 = vsub.f32 %v21, %v33
  %v36 = vmul.f32 %v34, %v34
  %v37 = vmul.f32 %v35, %v35
  %v38 = vsel %vm24, %v36, 0.0
  %39 = vadd.xlane.f32.xlu0 %v38
  %v40 = vpop.xlane.xlu0 %39
  %v41 = vsel %vm24, %v37, 0.0
  %42 = vadd.xlane.f32.xlu0 %v41
  %v43 = vpop.xlane.xlu0 %42
  %v44 = vmul.f32 %v40, %v31
  %v45 = vmul.f32 %v43, %v31
  %v46 = vadd.f32 %v44, 1e-05
  %v47 = vadd.f32 %v45, 1e-05
  %v48 = vrsqrt.pop %v46
  %v49 = vrsqrt.pop %v47
  %v50 = vmul.f32 %v34, %v48
  %v51 = vmul.f32 %v35, %v49
  %v53 = vlaneseq
  %v54 = vshrl.u32 %v53, 7
  %v55 = vsub.s32 0, %v54
  %v56 = vrot.slane %v22, %v55
  %v58 = vmul.f32 %v50, %v56
  %v59 = vmul.f32 %v51, %v56
  %v61 = vlaneseq
  %v62 = vshrl.u32 %v61, 7
  %v63 = vsub.s32 0, %v62
  %v64 = vrot.slane %v23, %v63
  %v66 = vadd.f32 %v58, %v64
  %v67 = vadd.f32 %v59, %v64
  %v68 = vld [vmem:[%s3] sm:$0xff]
  %v69 = vld [vmem:[%s3 + $0x8] sm:$0xff]
  %v70 = vld [vmem:[%s3 + $0x10] sm:$0xff]
  %v71 = vld [vmem:[%s3 + $0x18] sm:$0xff]
  %v72 = vld [vmem:[%s4] sm:$0x1]
  %v74 = vlaneseq
  %v75 = vshrl.u32 %v74, 7
  %v76 = vsub.s32 0, %v75
  %v77 = vrot.slane %v72, %v76
  %v80 = vsel %vm24, %v66, 0
  %v83 = vsel %vm24, %v67, 0
  %85 = vmatprep.subr.mxu0 0.0
  %86 = vmatpush1.msra.mxu0 %v68
  %87 = vmatprep.subr.mxu0 0.0
  %88 = vmatpush1.msra.mxu0 %v69
  %89 = vmatprep.subr.mxu0 0.0
  %90 = vmatpush1.msra.mxu0 %v70
  %91 = vmatprep.subr.mxu0 0.0
  %92 = vmatpush1.msra.mxu0 %v71
  %93 = vmatprep.subr.mxu0 0.0
  %94 = vmatpush1.msra.mxu0 0.0
  %95 = vmatprep.subr.mxu0 0.0
  %96 = vmatpush1.msra.mxu0 0.0
  %97 = vmatprep.subr.mxu0 0.0
  %98 = vmatpush1.msra.mxu0 0.0
  %99 = vmatprep.subr.mxu0 0.0
  %100 = vmatpush1.msra.mxu0 0.0
  %101 = vmatprep.subr.mxu0 0.0
  %102 = vmatpush1.msra.mxu0 0.0
  %103 = vmatprep.subr.mxu0 0.0
  %104 = vmatpush1.msra.mxu0 0.0
  %105 = vmatprep.subr.mxu0 0.0
  %106 = vmatpush1.msra.mxu0 0.0
  %107 = vmatprep.subr.mxu0 0.0
  %108 = vmatpush1.msra.mxu0 0.0
  %109 = vmatprep.subr.mxu0 0.0
  %110 = vmatpush1.msra.mxu0 0.0
  %111 = vmatprep.subr.mxu0 0.0
  %112 = vmatpush1.msra.mxu0 0.0
  %113 = vmatprep.subr.mxu0 0.0
  %114 = vmatpush1.msra.mxu0 0.0
  %115 = vmatprep.subr.mxu0 0.0
  %116 = vmatpush1.msra.mxu0 0.0
  %117 = vmatprep.subr.mxu0 0.0
  %118 = vmatpush1.msra.mxu0 0.0
  %119 = vmatprep.subr.mxu0 0.0
  %120 = vmatpush1.msra.mxu0 0.0
  %121 = vmatprep.subr.mxu0 0.0
  %122 = vmatpush1.msra.mxu0 0.0
  %123 = vmatprep.subr.mxu0 0.0
  %124 = vmatpush1.msra.mxu0 0.0
  %125 = vmatprep.subr.mxu0 0.0
  %126 = vmatpush1.msra.mxu0 0.0
  %127 = vmatprep.subr.mxu0 0.0
  %128 = vmatpush1.msra.mxu0 0.0
  %129 = vmatprep.subr.mxu0 0.0
  %130 = vmatpush1.msra.mxu0 0.0
  %131 = vmatprep.subr.mxu0 0.0
  %132 = vmatpush1.msra.mxu0 0.0
  %133 = vmatprep.subr.mxu0 0.0
  %134 = vmatpush1.msra.mxu0 0.0
  %135 = vmatprep.subr.mxu0 0.0
  %136 = vmatpush1.msra.mxu0 0.0
  %137 = vmatprep.subr.mxu0 0.0
  %138 = vmatpush1.msra.mxu0 0.0
  %139 = vmatprep.subr.mxu0 0.0
  %140 = vmatpush1.msra.mxu0 0.0
  %141 = vmatprep.subr.mxu0 0.0
  %142 = vmatpush1.msra.mxu0 0.0
  %143 = vmatprep.subr.mxu0 0.0
  %144 = vmatpush1.msra.mxu0 0.0
  %145 = vmatprep.subr.mxu0 0.0
  %146 = vmatpush1.msra.mxu0 0.0
  %147 = vmatprep.subr.mxu0 0.0
  %148 = vmatpush1.msra.mxu0 0.0
  %149 = vmatprep.mubr.f32.mxu0 0.0
  %150 = vmatmul.mubr.f32.gmra.mrb[0].mxu0 %v80
  %v151 = vpop.f32.mrb[0].mxu0
  %v152 = vadd.f32 %v77, %v151
  %v153 = vpop.f32.mrb[0].mxu0
  %154 = vmatprep.mubr.f32.mxu0 0.0
  %155 = vmatmul.mubr.f32.gmra.mrb[0].mxu0 %v83
  %v156 = vpop.f32.mrb[0].mxu0
  %v157 = vadd.f32 %v77, %v156
  %v158 = vpop.f32.mrb[0].mxu0
  %159 = vdwg.mxu0
  %160 = vst [vmem:[%s5] sm:$0xff] %v152
  %161 = vst [vmem:[%s5 + $0x8] sm:$0xff] %v157
  // Predicated region
  $region22: #{transformer_decoder_forward.13} parent=0 // pred_check
    _
  $region23: #{transformer_decoder_forward.13} parent=0 // pred_check_branch
    %163 = sbr.rel (0) target = $region25
  $region24: #{transformer_decoder_forward.13} parent=0 // pred_region
    _
  $region25: #{transformer_decoder_forward.13} parent=0 // pred_fallthru
    _
  // Predicated region
  $region26: #{transformer_decoder_forward.13} parent=0 // pred_check
    _
  $region27: #{transformer_decoder_forward.13} parent=0 // pred_check_branch
    %165 = sbr.rel (0) target = $region29
  $region28: #{transformer_decoder_forward.13} parent=0 // pred_region
    _
  $region29: #{transformer_decoder_forward.13} parent=0 // pred_fallthru
    _

// kernel: transformer_decoder_forward.9
$region0: #{transformer_decoder_forward.9}
  #allocation0 [shape = 'u32[]', space=smem, size = 0x4, offset = 0x4, fixed_abs, tag = 'smem constant byte address 0x4 - core index']
  #allocation1 [shape = 'u32[144,128]{1,0:T(1,128)}', space=vmem, size = 0x12000, scoped, tag = 'internal scratch']
  %s0 = inlined_call_operand.vmem [shape: f32[16,32], index: 0, kind: input, shape index: {}]
  %s1 = inlined_call_operand.vmem [shape: f32[1,32], index: 1, kind: input, shape index: {}]
  %s2 = inlined_call_operand.vmem [shape: f32[1,32], index: 2, kind: input, shape index: {}]
  %s3 = inlined_call_operand.vmem [shape: f32[32,64], index: 3, kind: input, shape index: {}]
  %s4 = inlined_call_operand.vmem [shape: f32[1,64], index: 4, kind: input, shape index: {}]
  %s5 = inlined_call_operand.vmem [shape: f32[64,32], index: 5, kind: input, shape index: {}]
  %s6 = inlined_call_operand.vmem [shape: f32[1,32], index: 6, kind: input, shape index: {}]
  %s7 = inlined_call_operand.vmem [shape: f32[16,32], index: 7, kind: output, shape index: {}]
  %s8 = sld [smem:[#allocation0]]
  $region38: #{transformer_decoder_forward.9} parent=0
    _
  %s10 = ssub.s32 1, %s8
  %s11 = scalar_select 0, %s10, %s8
  // Predicated region
  $region2: #{transformer_decoder_forward.9} parent=0 // pred_check
    _
  $region3: #{transformer_decoder_forward.9} parent=0 // pred_check_branch
    %13 = sbr.rel (0) target = $region5
  $region4: #{transformer_decoder_forward.9} parent=0 // pred_region
    _
  $region5: #{transformer_decoder_forward.9} parent=0 // pred_fallthru
    _
  // Predicated region
  $region6: #{transformer_decoder_forward.9} parent=0 // pred_check
    _
  $region7: #{transformer_decoder_forward.9} parent=0 // pred_check_branch
    %15 = sbr.rel (0) target = $region9
  $region8: #{transformer_decoder_forward.9} parent=0 // pred_region
    _
  $region9: #{transformer_decoder_forward.9} parent=0 // pred_fallthru
    _
  // Predicated region
  $region10: #{transformer_decoder_forward.9} parent=0 // pred_check
    _
  $region11: #{transformer_decoder_forward.9} parent=0 // pred_check_branch
    %17 = sbr.rel (0) target = $region13
  $region12: #{transformer_decoder_forward.9} parent=0 // pred_region
    _
  $region13: #{transformer_decoder_forward.9} parent=0 // pred_fallthru
    _
  // Predicated region
  $region14: #{transformer_decoder_forward.9} parent=0 // pred_check
    _
  $region15: #{transformer_decoder_forward.9} parent=0 // pred_check_branch
    %19 = sbr.rel (0) target = $region17
  $region16: #{transformer_decoder_forward.9} parent=0 // pred_region
    _
  $region17: #{transformer_decoder_forward.9} parent=0 // pred_fallthru
    _
  // Predicated region
  $region18: #{transformer_decoder_forward.9} parent=0 // pred_check
    _
  $region19: #{transformer_decoder_forward.9} parent=0 // pred_check_branch
    %21 = sbr.rel (0) target = $region21
  $region20: #{transformer_decoder_forward.9} parent=0 // pred_region
    _
  $region21: #{transformer_decoder_forward.9} parent=0 // pred_fallthru
    _
  // Predicated region
  $region22: #{transformer_decoder_forward.9} parent=0 // pred_check
    _
  $region23: #{transformer_decoder_forward.9} parent=0 // pred_check_branch
    %23 = sbr.rel (0) target = $region25
  $region24: #{transformer_decoder_forward.9} parent=0 // pred_region
    _
  $region25: #{transformer_decoder_forward.9} parent=0 // pred_fallthru
    _
  // Predicated region
  $region26: #{transformer_decoder_forward.9} parent=0 // pred_check
    _
  $region27: #{transformer_decoder_forward.9} parent=0 // pred_check_branch
    %25 = sbr.rel (0) target = $region29
  $region28: #{transformer_decoder_forward.9} parent=0 // pred_region
    _
  $region29: #{transformer_decoder_forward.9} parent=0 // pred_fallthru
    _
  %v26 = vld [vmem:[%s0] sm:$0xff]
  %v27 = vld [vmem:[%s0 + $0x8] sm:$0xff]
  %v28 = vld [vmem:[%s1] sm:$0x1]
  %v29 = vld [vmem:[%s2] sm:$0x1]
  %vm30 = vcmask 261120
  %v31 = vsel %vm30, %v26, 0.0
  %32 = vadd.xlane.f32.xlu0 %v31
  %v33 = vpop.xlane.xlu0 %32
  %v34 = vsel %vm30, %v27, 0.0
  %35 = vadd.xlane.f32.xlu0 %v34
  %v36 = vpop.xlane.xlu0 %35
  %v37 = vrcp.pop 32.0
  %v38 = vmul.f32 %v33, %v37
  %v39 = vmul.f32 %v36, %v37
  %v40 = vsub.f32 %v26, %v38
  %v41 = vsub.f32 %v27, %v39
  %v42 = vmul.f32 %v40, %v40
  %v43 = vmul.f32 %v41, %v41
  %v44 = vsel %vm30, %v42, 0.0
  %45 = vadd.xlane.f32.xlu0 %v44
  %v46 = vpop.xlane.xlu0 %45
  %v47 = vsel %vm30, %v43, 0.0
  %48 = vadd.xlane.f32.xlu0 %v47
  %v49 = vpop.xlane.xlu0 %48
  %v50 = vmul.f32 %v46, %v37
  %v51 = vmul.f32 %v49, %v37
  %v52 = vadd.f32 %v50, 1e-05
  %v53 = vadd.f32 %v51, 1e-05
  %v54 = vrsqrt.pop %v52
  %v55 = vrsqrt.pop %v53
  %v56 = vmul.f32 %v40, %v54
  %v57 = vmul.f32 %v41, %v55
  %v59 = vlaneseq
  %v60 = vshrl.u32 %v59, 7
  %v61 = vsub.s32 0, %v60
  %v62 = vrot.slane %v28, %v61
  %v64 = vmul.f32 %v56, %v62
  %v65 = vmul.f32 %v57, %v62
  %v67 = vlaneseq
  %v68 = vshrl.u32 %v67, 7
  %v69 = vsub.s32 0, %v68
  %v70 = vrot.slane %v29, %v69
  %v72 = vadd.f32 %v64, %v70
  %v73 = vadd.f32 %v65, %v70
  %v74 = vld [vmem:[%s3] sm:$0xff]
  %v75 = vld [vmem:[%s3 + $0x8] sm:$0xff]
  %v76 = vld [vmem:[%s3 + $0x10] sm:$0xff]
  %v77 = vld [vmem:[%s3 + $0x18] sm:$0xff]
  %v78 = vld [vmem:[%s4] sm:$0x1]
  %v80 = vlaneseq
  %v81 = vshrl.u32 %v80, 7
  %v82 = vsub.s32 0, %v81
  %v83 = vrot.slane %v78, %v82
  %v86 = vsel %vm30, %v72, 0
  %v89 = vsel %vm30, %v73, 0
  %91 = vmatprep.subr.mxu0 0.0
  %92 = vmatpush1.msra.mxu0 %v74
  %93 = vmatprep.subr.mxu0 0.0
  %94 = vmatpush1.msra.mxu0 %v75
  %95 = vmatprep.subr.mxu0 0.0
  %96 = vmatpush1.msra.mxu0 %v76
  %97 = vmatprep.subr.mxu0 0.0
  %98 = vmatpush1.msra.mxu0 %v77
  %99 = vmatprep.subr.mxu0 0.0
  %100 = vmatpush1.msra.mxu0 0.0
  %101 = vmatprep.subr.mxu0 0.0
  %102 = vmatpush1.msra.mxu0 0.0
  %103 = vmatprep.subr.mxu0 0.0
  %104 = vmatpush1.msra.mxu0 0.0
  %105 = vmatprep.subr.mxu0 0.0
  %106 = vmatpush1.msra.mxu0 0.0
  %107 = vmatprep.subr.mxu0 0.0
  %108 = vmatpush1.msra.mxu0 0.0
  %109 = vmatprep.subr.mxu0 0.0
  %110 = vmatpush1.msra.mxu0 0.0
  %111 = vmatprep.subr.mxu0 0.0
  %112 = vmatpush1.msra.mxu0 0.0
  %113 = vmatprep.subr.mxu0 0.0
  %114 = vmatpush1.msra.mxu0 0.0
  %115 = vmatprep.subr.mxu0 0.0
  %116 = vmatpush1.msra.mxu0 0.0
  %117 = vmatprep.subr.mxu0 0.0
  %118 = vmatpush1.msra.mxu0 0.0
  %119 = vmatprep.subr.mxu0 0.0
  %120 = vmatpush1.msra.mxu0 0.0
  %121 = vmatprep.subr.mxu0 0.0
  %122 = vmatpush1.msra.mxu0 0.0
  %123 = vmatprep.subr.mxu0 0.0
  %124 = vmatpush1.msra.mxu0 0.0
  %125 = vmatprep.subr.mxu0 0.0
  %126 = vmatpush1.msra.mxu0 0.0
  %127 = vmatprep.subr.mxu0 0.0
  %128 = vmatpush1.msra.mxu0 0.0
  %129 = vmatprep.subr.mxu0 0.0
  %130 = vmatpush1.msra.mxu0 0.0
  %131 = vmatprep.subr.mxu0 0.0
  %132 = vmatpush1.msra.mxu0 0.0
  %133 = vmatprep.subr.mxu0 0.0
  %134 = vmatpush1.msra.mxu0 0.0
  %135 = vmatprep.subr.mxu0 0.0
  %136 = vmatpush1.msra.mxu0 0.0
  %137 = vmatprep.subr.mxu0 0.0
  %138 = vmatpush1.msra.mxu0 0.0
  %139 = vmatprep.subr.mxu0 0.0
  %140 = vmatpush1.msra.mxu0 0.0
  %141 = vmatprep.subr.mxu0 0.0
  %142 = vmatpush1.msra.mxu0 0.0
  %143 = vmatprep.subr.mxu0 0.0
  %144 = vmatpush1.msra.mxu0 0.0
  %145 = vmatprep.subr.mxu0 0.0
  %146 = vmatpush1.msra.mxu0 0.0
  %147 = vmatprep.subr.mxu0 0.0
  %148 = vmatpush1.msra.mxu0 0.0
  %149 = vmatprep.subr.mxu0 0.0
  %150 = vmatpush1.msra.mxu0 0.0
  %151 = vmatprep.subr.mxu0 0.0
  %152 = vmatpush1.msra.mxu0 0.0
  %153 = vmatprep.subr.mxu0 0.0
  %154 = vmatpush1.msra.mxu0 0.0
  %155 = vmatprep.mubr.f32.mxu0 0.0
  %156 = vmatmul.mubr.f32.gmra.mrb[0].mxu0 %v86
  %v157 = vpop.f32.mrb[0].mxu0
  %v158 = vadd.f32 %v83, %v157
  %v159 = vpop.f32.mrb[0].mxu0
  %160 = vmatprep.mubr.f32.mxu0 0.0
  %161 = vmatmul.mubr.f32.gmra.mrb[0].mxu0 %v89
  %v162 = vpop.f32.mrb[0].mxu0
  %v163 = vadd.f32 %v83, %v162
  %v164 = vpop.f32.mrb[0].mxu0
  %165 = vdwg.mxu0
  %v166 = vmax.f32 %v158, 0.0
  %v167 = vmax.f32 %v163, 0.0
  %v168 = vld [vmem:[%s5] sm:$0xff]
  %v169 = vld [vmem:[%s5 + $0x8] sm:$0xff]
  %v170 = vld [vmem:[%s5 + $0x10] sm:$0xff]
  %v171 = vld [vmem:[%s5 + $0x18] sm:$0xff]
  %v172 = vld [vmem:[%s5 + $0x20] sm:$0xff]
  %v173 = vld [vmem:[%s5 + $0x28] sm:$0xff]
  %v174 = vld [vmem:[%s5 + $0x30] sm:$0xff]
  %v175 = vld [vmem:[%s5 + $0x38] sm:$0xff]
  %v176 = vld [vmem:[%s6] sm:$0x1]
  %v178 = vlaneseq
  %v179 = vshrl.u32 %v178, 7
  %v180 = vsub.s32 0, %v179
  %v181 = vrot.slane %v176, %v180
  %vm183 = vcmask 523264
  %v185 = vsel %vm183, %v166, 0
  %v188 = vsel %vm183, %v167, 0
  %190 = vmatprep.subr.mxu0 0.0
  %191 = vmatpush1.msra.mxu0 %v168
  %192 = vmatprep.subr.mxu0 0.0
  %193 = vmatpush1.msra.mxu0 %v169
  %194 = vmatprep.subr.mxu0 0.0
  %195 = vmatpush1.msra.mxu0 %v170
  %196 = vmatprep.subr.mxu0 0.0
  %197 = vmatpush1.msra.mxu0 %v171
  %198 = vmatprep.subr.mxu0 0.0
  %199 = vmatpush1.msra.mxu0 %v172
  %200 = vmatprep.subr.mxu0 0.0
  %201 = vmatpush1.msra.mxu0 %v173
  %202 = vmatprep.subr.mxu0 0.0
  %203 = vmatpush1.msra.mxu0 %v174
  %204 = vmatprep.subr.mxu0 0.0
  %205 = vmatpush1.msra.mxu0 %v175
  %206 = vmatprep.subr.mxu0 0.0
  %207 = vmatpush1.msra.mxu0 0.0
  %208 = vmatprep.subr.mxu0 0.0
  %209 = vmatpush1.msra.mxu0 0.0
  %210 = vmatprep.subr.mxu0 0.0
  %211 = vmatpush1.msra.mxu0 0.0
  %212 = vmatprep.subr.mxu0 0.0
  %213 = vmatpush1.msra.mxu0 0.0
  %214 = vmatprep.subr.mxu0 0.0
  %215 = vmatpush1.msra.mxu0 0.0
  %216 = vmatprep.subr.mxu0 0.0
  %217 = vmatpush1.msra.mxu0 0.0
  %218 = vmatprep.subr.mxu0 0.0
  %219 = vmatpush1.msra.mxu0 0.0
  %220 = vmatprep.subr.mxu0 0.0
  %221 = vmatpush1.msra.mxu0 0.0
  %222 = vmatprep.subr.mxu0 0.0
  %223 = vmatpush1.msra.mxu0 0.0
  %224 = vmatprep.subr.mxu0 0.0
  %225 = vmatpush1.msra.mxu0 0.0
  %226 = vmatprep.subr.mxu0 0.0
  %227 = vmatpush1.msra.mxu0 0.0
  %228 = vmatprep.subr.mxu0 0.0
  %229 = vmatpush1.msra.mxu0 0.0
  %230 = vmatprep.subr.mxu0 0.0
  %231 = vmatpush1.msra.mxu0 0.0
  %232 = vmatprep.subr.mxu0 0.0
  %233 = vmatpush1.msra.mxu0 0.0
  %234 = vmatprep.subr.mxu0 0.0
  %235 = vmatpush1.msra.mxu0 0.0
  %236 = vmatprep.subr.mxu0 0.0
  %237 = vmatpush1.msra.mxu0 0.0
  %238 = vmatprep.subr.mxu0 0.0
  %239 = vmatpush1.msra.mxu0 0.0
  %240 = vmatprep.subr.mxu0 0.0
  %241 = vmatpush1.msra.mxu0 0.0
  %242 = vmatprep.subr.mxu0 0.0
  %243 = vmatpush1.msra.mxu0 0.0
  %244 = vmatprep.subr.mxu0 0.0
  %245 = vmatpush1.msra.mxu0 0.0
  %246 = vmatprep.subr.mxu0 0.0
  %247 = vmatpush1.msra.mxu0 0.0
  %248 = vmatprep.subr.mxu0 0.0
  %249 = vmatpush1.msra.mxu0 0.0
  %250 = vmatprep.subr.mxu0 0.0
  %251 = vmatpush1.msra.mxu0 0.0
  %252 = vmatprep.subr.mxu0 0.0
  %253 = vmatpush1.msra.mxu0 0.0
  %254 = vmatprep.mubr.f32.mxu0 0.0
  %255 = vmatmul.mubr.f32.gmra.mrb[0].mxu0 %v185
  %v256 = vpop.f32.mrb[0].mxu0
  %v257 = vadd.f32 %v181, %v256
  %v258 = vpop.f32.mrb[0].mxu0
  %259 = vmatprep.mubr.f32.mxu0 0.0
  %260 = vmatmul.mubr.f32.gmra.mrb[0].mxu0 %v188
  %v261 = vpop.f32.mrb[0].mxu0
  %v262 = vadd.f32 %v181, %v261
  %v263 = vpop.f32.mrb[0].mxu0
  %264 = vdwg.mxu0
  %v265 = vadd.f32 %v26, %v257
  %v266 = vadd.f32 %v27, %v262
  %267 = vst.msk [vmem:[%s7] sm:$0xff] %vm30, %v265
  %268 = vst.msk [vmem:[%s7 + $0x8] sm:$0xff] %vm30, %v266
  // Predicated region
  $region30: #{transformer_decoder_forward.9} parent=0 // pred_check
    _
  $region31: #{transformer_decoder_forward.9} parent=0 // pred_check_branch
    %270 = sbr.rel (0) target = $region33
  $region32: #{transformer_decoder_forward.9} parent=0 // pred_region
    _
  $region33: #{transformer_decoder_forward.9} parent=0 // pred_fallthru
    _
  // Predicated region
  $region34: #{transformer_decoder_forward.9} parent=0 // pred_check
    _
  $region35: #{transformer_decoder_forward.9} parent=0 // pred_check_branch
    %272 = sbr.rel (0) target = $region37
  $region36: #{transformer_decoder_forward.9} parent=0 // pred_region
    _
  $region37: #{transformer_decoder_forward.9} parent=0 // pred_fallthru
    _

// kernel: transformer_decoder_forward.7
$region0: #{transformer_decoder_forward.7}
  #allocation0 [shape = 'u32[]', space=smem, size = 0x4, offset = 0x4, fixed_abs, tag = 'smem constant byte address 0x4 - core index']
  #allocation1 [shape = 'u32[144,128]{1,0:T(1,128)}', space=vmem, size = 0x12000, scoped, tag = 'internal scratch']
  %s0 = inlined_call_operand.vmem [shape: f32[2,8,32], index: 0, kind: input, shape index: {}]
  %s1 = inlined_call_operand.vmem [shape: f32[1,32], index: 1, kind: input, shape index: {}]
  %s2 = inlined_call_operand.vmem [shape: f32[1,32], index: 2, kind: input, shape index: {}]
  %s3 = inlined_call_operand.vmem [shape: f32[32,96], index: 3, kind: input, shape index: {}]
  %s4 = inlined_call_operand.vmem [shape: f32[1,96], index: 4, kind: input, shape index: {}]
  %s5 = inlined_call_operand.vmem [shape: f32[32,32], index: 5, kind: input, shape index: {}]
  %s6 = inlined_call_operand.vmem [shape: f32[1,32], index: 6, kind: input, shape index: {}]
  %s7 = inlined_call_operand.vmem [shape: f32[2,8,32], index: 7, kind: output, shape index: {}]
  %s8 = sld [smem:[#allocation0]]
  $region61: #{transformer_decoder_forward.7} parent=0
    _
  %s10 = ssub.s32 1, %s8
  %s11 = scalar_select 0, %s10, %s8
  loop: start=0, step=1, limit=4
  $region2: #{transformer_decoder_forward.7} parent=0 // loop_pre_header
    _
  $region3: #{transformer_decoder_forward.7} parent=0 // loop_header
    %s13 = sphi 0, %s17
    %p14 = scmp.ge.s32.totalorder %s13, 4
    %s23 = sphi 0, %s25
    %s26 = sphi 0, %s23
    %s27 = sphi 0, %s26
    %s43 = sphi 0, %s27
    %s47 = sphi 0, %s47
    %s49 = sphi 0, %s47
    %s50 = sphi 0, %s49
    %s64 = sphi 0, %s50
    %s68 = sphi 0, %s68
    %s70 = sphi 0, %s68
    %s71 = sphi 0, %s70
    %s85 = sphi 0, %s71
    %s89 = sphi 0, %s89
    %s91 = sphi 0, %s89
    %s92 = sphi 0, %s91
    %s106 = sphi 0, %s92
    %s110 = sphi 0, %s110
    %s112 = sphi 0, %s110
    %s113 = sphi 0, %s112
    %s127 = sphi 0, %s113
    %s131 = sphi 0, %s131
    %s133 = sphi 0, %s131
    %s134 = sphi 0, %s133
    %s148 = sphi 0, %s134
    %s152 = sphi 0, %s152
    %s154 = sphi 0, %s152
    %s155 = sphi 0, %s154
    %s169 = sphi 0, %s155
    %s175 = sphi 0, %s177
    %s178 = sphi 0, %s175
    %s179 = sphi 0, %s178
    %s195 = sphi 0, %s179
  $region4: #{transformer_decoder_forward.7} parent=0 // loop_header_branch
    %16 = sbr.rel (%p14) target = $region8
  $region5: #{transformer_decoder_forward.7} parent=0 // loop_body
    %s18 = ssub.s32 %s13, 1
    %s19 = ssub.s32 %s13, 2
    %s20 = sadd.s32 %s13, 1
    %s21 = ssub.s32 %s13, %s20
    %p22 = scmp.eq.s32.totalorder %s21, 0
    %s24 = sadd.s32 %s23, 1
    %s25 = scalar_select %p22, %s23, %s24
    %p28 = pneg %p22
    %p29 = scmp.eq.s32.totalorder %s13, 1
    %p30 = por %p28, %p29
    %p31 = scmp.ne.s32.totalorder %s23, %s26
    %p32 = scmp.eq.s32.totalorder %s13, 0
    %p33 = por %p31, %p32
    %p34 = scmp.ne.s32.totalorder %s23, %s26
    %p35 = scmp.eq.s32.totalorder %s18, 1
    %p36 = por %p34, %p35
    %p37 = scmp.ne.s32.totalorder %s26, %s27
    %p38 = scmp.eq.s32.totalorder %s18, 0
    %p39 = por %p37, %p38
    %p40 = scmp.ne.s32.totalorder %s26, %s27
    %p41 = scmp.eq.s32.totalorder %s19, 1
    %p42 = por %p40, %p41
    %p44 = scmp.ne.s32.totalorder %s27, %s43
    %p45 = scmp.eq.s32.totalorder %s19, 0
    %p46 = por %p44, %p45
    %s48 = sadd.s32 %s47, 1
    %p51 = scmp.eq.s32.totalorder %s13, 1
    %p52 = scmp.ne.s32.totalorder %s47, %s49
    %p53 = scmp.eq.s32.totalorder %s13, 0
    %p54 = por %p52, %p53
    %p55 = scmp.ne.s32.totalorder %s47, %s49
    %p56 = scmp.eq.s32.totalorder %s18, 1
    %p57 = por %p55, %p56
    %p58 = scmp.ne.s32.totalorder %s49, %s50
    %p59 = scmp.eq.s32.totalorder %s18, 0
    %p60 = por %p58, %p59
    %p61 = scmp.ne.s32.totalorder %s49, %s50
    %p62 = scmp.eq.s32.totalorder %s19, 1
    %p63 = por %p61, %p62
    %p65 = scmp.ne.s32.totalorder %s50, %s64
    %p66 = scmp.eq.s32.totalorder %s19, 0
    %p67 = por %p65, %p66
    %s69 = sadd.s32 %s68, 1
    %p72 = scmp.eq.s32.totalorder %s13, 1
    %p73 = scmp.ne.s32.totalorder %s68, %s70
    %p74 = scmp.eq.s32.totalorder %s13, 0
    %p75 = por %p73, %p74
    %p76 = scmp.ne.s32.totalorder %s68, %s70
    %p77 = scmp.eq.s32.totalorder %s18, 1
    %p78 = por %p76, %p77
    %p79 = scmp.ne.s32.totalorder %s70, %s71
    %p80 = scmp.eq.s32.totalorder %s18, 0
    %p81 = por %p79, %p80
    %p82 = scmp.ne.s32.totalorder %s70, %s71
    %p83 = scmp.eq.s32.totalorder %s19, 1
    %p84 = por %p82, %p83
    %p86 = scmp.ne.s32.totalorder %s71, %s85
    %p87 = scmp.eq.s32.totalorder %s19, 0
    %p88 = por %p86, %p87
    %s90 = sadd.s32 %s89, 1
    %p93 = scmp.eq.s32.totalorder %s13, 1
    %p94 = scmp.ne.s32.totalorder %s89, %s91
    %p95 = scmp.eq.s32.totalorder %s13, 0
    %p96 = por %p94, %p95
    %p97 = scmp.ne.s32.totalorder %s89, %s91
    %p98 = scmp.eq.s32.totalorder %s18, 1
    %p99 = por %p97, %p98
    %p100 = scmp.ne.s32.totalorder %s91, %s92
    %p101 = scmp.eq.s32.totalorder %s18, 0
    %p102 = por %p100, %p101
    %p103 = scmp.ne.s32.totalorder %s91, %s92
    %p104 = scmp.eq.s32.totalorder %s19, 1
    %p105 = por %p103, %p104
    %p107 = scmp.ne.s32.totalorder %s92, %s106
    %p108 = scmp.eq.s32.totalorder %s19, 0
    %p109 = por %p107, %p108
    %s111 = sadd.s32 %s110, 1
    %p114 = scmp.eq.s32.totalorder %s13, 1
    %p115 = scmp.ne.s32.totalorder %s110, %s112
    %p116 = scmp.eq.s32.totalorder %s13, 0
    %p117 = por %p115, %p116
    %p118 = scmp.ne.s32.totalorder %s110, %s112
    %p119 = scmp.eq.s32.totalorder %s18, 1
    %p120 = por %p118, %p119
    %p121 = scmp.ne.s32.totalorder %s112, %s113
    %p122 = scmp.eq.s32.totalorder %s18, 0
    %p123 = por %p121, %p122
    %p124 = scmp.ne.s32.totalorder %s112, %s113
    %p125 = scmp.eq.s32.totalorder %s19, 1
    %p126 = por %p124, %p125
    %p128 = scmp.ne.s32.totalorder %s113, %s127
    %p129 = scmp.eq.s32.totalorder %s19, 0
    %p130 = por %p128, %p129
    %s132 = sadd.s32 %s131, 1
    %p135 = scmp.eq.s32.totalorder %s13, 1
    %p136 = scmp.ne.s32.totalorder %s131, %s133
    %p137 = scmp.eq.s32.totalorder %s13, 0
    %p138 = por %p136, %p137
    %p139 = scmp.ne.s32.totalorder %s131, %s133
    %p140 = scmp.eq.s32.totalorder %s18, 1
    %p141 = por %p139, %p140
    %p142 = scmp.ne.s32.totalorder %s133, %s134
    %p143 = scmp.eq.s32.totalorder %s18, 0
    %p144 = por %p142, %p143
    %p145 = scmp.ne.s32.totalorder %s133, %s134
    %p146 = scmp.eq.s32.totalorder %s19, 1
    %p147 = por %p145, %p146
    %p149 = scmp.ne.s32.totalorder %s134, %s148
    %p150 = scmp.eq.s32.totalorder %s19, 0
    %p151 = por %p149, %p150
    %s153 = sadd.s32 %s152, 1
    %p156 = scmp.eq.s32.totalorder %s13, 1
    %p157 = scmp.ne.s32.totalorder %s152, %s154
    %p158 = scmp.eq.s32.totalorder %s13, 0
    %p159 = por %p157, %p158
    %p160 = scmp.ne.s32.totalorder %s152, %s154
    %p161 = scmp.eq.s32.totalorder %s18, 1
    %p162 = por %p160, %p161
    %p163 = scmp.ne.s32.totalorder %s154, %s155
    %p164 = scmp.eq.s32.totalorder %s18, 0
    %p165 = por %p163, %p164
    %p166 = scmp.ne.s32.totalorder %s154, %s155
    %p167 = scmp.eq.s32.totalorder %s19, 1
    %p168 = por %p166, %p167
    %p170 = scmp.ne.s32.totalorder %s155, %s169
    %p171 = scmp.eq.s32.totalorder %s19, 0
    %p172 = por %p170, %p171
    %s173 = ssub.s32 %s13, %s20
    %p174 = scmp.eq.s32.totalorder %s173, 0
    %s176 = sadd.s32 %s175, 1
    %s177 = scalar_select %p174, %s175, %s176
    %p180 = pneg %p174
    %p181 = scmp.eq.s32.totalorder %s13, 1
    %p182 = por %p180, %p181
    %p183 = scmp.ne.s32.totalorder %s175, %s178
    %p184 = scmp.eq.s32.totalorder %s13, 0
    %p185 = por %p183, %p184
    %p186 = scmp.ne.s32.totalorder %s175, %s178
    %p187 = scmp.eq.s32.totalorder %s18, 1
    %p188 = por %p186, %p187
    %p189 = scmp.ne.s32.totalorder %s178, %s179
    %p190 = scmp.eq.s32.totalorder %s18, 0
    %p191 = por %p189, %p190
    %p192 = scmp.ne.s32.totalorder %s178, %s179
    %p193 = scmp.eq.s32.totalorder %s19, 1
    %p194 = por %p192, %p193
    %p196 = scmp.ne.s32.totalorder %s179, %s195
    %p197 = scmp.eq.s32.totalorder %s19, 0
    %p198 = por %p196, %p197
    %p199 = scmp.le.s32.totalorder 1, %s13
    %p200 = scmp.lt.s32.totalorder %s13, 3
    %p201 = pnand %p199, %p200
    %p202 = pneg %p201
    // Predicated region
    $region9: #{transformer_decoder_forward.7} parent=5 // pred_check
      _
    $region10: #{transformer_decoder_forward.7} parent=5 // pred_check_branch
      %204 = sbr.rel (%p201) target = $region12
    $region11: #{transformer_decoder_forward.7} parent=5 // pred_region
      %s205 = ssub.s32 %s13, 1
      // Predicated region
      $region13: #{transformer_decoder_forward.7} parent=11 // pred_check
        %p206 = pneg %p60
      $region14: #{transformer_decoder_forward.7} parent=11 // pred_check_branch
        %208 = sbr.rel (%p206) target = $region16
      $region15: #{transformer_decoder_forward.7} parent=11 // pred_region
        _
      $region16: #{transformer_decoder_forward.7} parent=11 // pred_fallthru
        _
      // Predicated region
      $region17: #{transformer_decoder_forward.7} parent=11 // pred_check
        %p209 = pneg %p81
      $region18: #{transformer_decoder_forward.7} parent=11 // pred_check_branch
        %211 = sbr.rel (%p209) target = $region20
      $region19: #{transformer_decoder_forward.7} parent=11 // pred_region
        _
      $region20: #{transformer_decoder_forward.7} parent=11 // pred_fallthru
        _
      // Predicated region
      $region21: #{transformer_decoder_forward.7} parent=11 // pred_check
        %p212 = pneg %p102
      $region22: #{transformer_decoder_forward.7} parent=11 // pred_check_branch
        %214 = sbr.rel (%p212) target = $region24
      $region23: #{transformer_decoder_forward.7} parent=11 // pred_region
        _
      $region24: #{transformer_decoder_forward.7} parent=11 // pred_fallthru
        _
      // Predicated region
      $region25: #{transformer_decoder_forward.7} parent=11 // pred_check
        %p215 = pneg %p123
      $region26: #{transformer_decoder_forward.7} parent=11 // pred_check_branch
        %217 = sbr.rel (%p215) target = $region28
      $region27: #{transformer_decoder_forward.7} parent=11 // pred_region
        _
      $region28: #{transformer_decoder_forward.7} parent=11 // pred_fallthru
        _
      // Predicated region
      $region29: #{transformer_decoder_forward.7} parent=11 // pred_check
        %p218 = pneg %p144
      $region30: #{transformer_decoder_forward.7} parent=11 // pred_check_branch
        %220 = sbr.rel (%p218) target = $region32
      $region31: #{transformer_decoder_forward.7} parent=11 // pred_region
        _
      $region32: #{transformer_decoder_forward.7} parent=11 // pred_fallthru
        _
      // Predicated region
      $region33: #{transformer_decoder_forward.7} parent=11 // pred_check
        %p221 = pneg %p165
      $region34: #{transformer_decoder_forward.7} parent=11 // pred_check_branch
        %223 = sbr.rel (%p221) target = $region36
      $region35: #{transformer_decoder_forward.7} parent=11 // pred_region
        _
      $region36: #{transformer_decoder_forward.7} parent=11 // pred_fallthru
        _
    $region12: #{transformer_decoder_forward.7} parent=5 // pred_fallthru
      _
    %p224 = scmp.lt.s32.totalorder %s13, 2
    // Predicated region
    $region37: #{transformer_decoder_forward.7} parent=5 // pred_check
      %p225 = pneg %p224
    $region38: #{transformer_decoder_forward.7} parent=5 // pred_check_branch
      %227 = sbr.rel (%p225) target = $region40
    $region39: #{transformer_decoder_forward.7} parent=5 // pred_region
      // Predicated region
      $region41: #{transformer_decoder_forward.7} parent=39 // pred_check
        %p228 = pneg %p33
      $region42: #{transformer_decoder_forward.7} parent=39 // pred_check_branch
        %230 = sbr.rel (%p228) target = $region44
      $region43: #{transformer_decoder_forward.7} parent=39 // pred_region
        %p231 = scmp.lt.s32.totalorder %s13, 1
        %s232 = scalar_select %p231, %s13, 1
        %s233 = smul.addr %s232, 8
        %s234 = scalar_lea.vmem %s0, %s233
      $region44: #{transformer_decoder_forward.7} parent=39 // pred_fallthru
        _
    $region40: #{transformer_decoder_forward.7} parent=5 // pred_fallthru
      _
    %p235 = scmp.le.s32.totalorder 1, %s13
    %p236 = scmp.lt.s32.totalorder %s13, 3
    %p237 = pnand %p235, %p236
    %p238 = pneg %p237
    // Predicated region
    $region45: #{transformer_decoder_forward.7} parent=5 // pred_check
      _
    $region46: #{transformer_decoder_forward.7} parent=5 // pred_check_branch
      %240 = sbr.rel (%p237) target = $region48
    $region47: #{transformer_decoder_forward.7} parent=5 // pred_region
      %s241 = ssub.s32 %s13, 1
      %p242 = scmp.lt.s32.totalorder %s18, 1
      %s243 = scalar_select %p242, %s18, 1
      %s244 = smul.addr %s243, 8
      %s245 = scalar_lea.vmem %s0, %s244
      %p246 = pneg %p39
      %p247 = pneg %p36
      %p248 = pneg %p60
      %p249 = pneg %p57
      %p250 = pneg %p81
      %p251 = pneg %p78
      %p252 = pneg %p102
      %p253 = pneg %p99
      %p254 = pneg %p123
      %p255 = pneg %p120
      %p256 = pneg %p144
      %p257 = pneg %p141
      %p258 = pneg %p165
      %p259 = pneg %p162
      %p260 = pneg %p191
      %p261 = pneg %p188
      %p262 = scmp.lt.s32.totalorder %s18, 1
      %s263 = scalar_select %p262, %s18, 1
      %s264 = smul.addr %s263, 8
      %s265 = scalar_lea.vmem %s7, %s264
      %p266 = scmp.lt.s32.totalorder %s18, 1
      %s267 = scalar_select %p266, %s18, 1
      %s268 = smul.addr %s267, 8
      %s269 = scalar_lea.vmem %s0, %s268
      %p270 = scmp.lt.s32.totalorder %s18, 1
      %s271 = scalar_select %p270, %s18, 1
      %s272 = smul.addr %s271, 8
      %s273 = scalar_lea.vmem %s7, %s272
      %v274 = vld [vmem:[%s269] sm:$0xff]
      %v275 = vld [vmem:[%s1] sm:$0x1]
      %v276 = vld [vmem:[%s2] sm:$0x1]
      %v277 = vld [vmem:[%s3] sm:$0xff]
      %v278 = vld [vmem:[%s3 + $0x8] sm:$0xff]
      %v279 = vld [vmem:[%s3 + $0x10] sm:$0xff]
      %v280 = vld [vmem:[%s3 + $0x18] sm:$0xff]
      %v281 = vld [vmem:[%s4] sm:$0x1]
      %v282 = vld [vmem:[%s5] sm:$0xff]
      %v283 = vld [vmem:[%s5 + $0x8] sm:$0xff]
      %v284 = vld [vmem:[%s5 + $0x10] sm:$0xff]
      %v285 = vld [vmem:[%s5 + $0x18] sm:$0xff]
      %v286 = vld [vmem:[%s6] sm:$0x1]
      %vm287 = vcmask 261120
      %v288 = vsel %vm287, %v274, 0.0
      %289 = vadd.xlane.f32.xlu0 %v288
      %v290 = vpop.xlane.xlu0 %289
      %v291 = vrcp.pop 32.0
      %v292 = vmul.f32 %v290, %v291
      %v293 = vsub.f32 %v274, %v292
      %v294 = vmul.f32 %v293, %v293
      %v295 = vsel %vm287, %v294, 0.0
      %296 = vadd.xlane.f32.xlu0 %v295
      %v297 = vpop.xlane.xlu0 %296
      %v298 = vmul.f32 %v297, %v291
      %v299 = vadd.f32 %v298, 1e-05
      %v300 = vrsqrt.pop %v299
      %v301 = vmul.f32 %v293, %v300
      %v303 = vlaneseq
      %v304 = vshrl.u32 %v303, 7
      %v305 = vsub.s32 0, %v304
      %v306 = vrot.slane %v275, %v305
      %v308 = vmul.f32 %v301, %v306
      %v310 = vlaneseq
      %v311 = vshrl.u32 %v310, 7
      %v312 = vsub.s32 0, %v311
      %v313 = vrot.slane %v276, %v312
      %v315 = vadd.f32 %v308, %v313
      %v317 = vlaneseq
      %v318 = vshrl.u32 %v317, 7
      %v319 = vsub.s32 0, %v318
      %v320 = vrot.slane %v281, %v319
      %v323 = vsel %vm287, %v315, 0
      %325 = vmatprep.subr.mxu0 0.0
      %326 = vmatpush1.msra.mxu0 %v277
      %327 = vmatprep.subr.mxu0 0.0
      %328 = vmatpush1.msra.mxu0 %v278
      %329 = vmatprep.subr.mxu0 0.0
      %330 = vmatpush1.msra.mxu0 %v279
      %331 = vmatprep.subr.mxu0 0.0
      %332 = vmatpush1.msra.mxu0 %v280
      %333 = vmatprep.subr.mxu0 0.0
      %334 = vmatpush1.msra.mxu0 0.0
      %335 = vmatprep.subr.mxu0 0.0
      %336 = vmatpush1.msra.mxu0 0.0
      %337 = vmatprep.subr.mxu0 0.0
      %338 = vmatpush1.msra.mxu0 0.0
      %339 = vmatprep.subr.mxu0 0.0
      %340 = vmatpush1.msra.mxu0 0.0
      %341 = vmatprep.subr.mxu0 0.0
      %342 = vmatpush1.msra.mxu0 0.0
      %343 = vmatprep.subr.mxu0 0.0
      %344 = vmatpush1.msra.mxu0 0.0
      %345 = vmatprep.subr.mxu0 0.0
      %346 = vmatpush1.msra.mxu0 0.0
      %347 = vmatprep.subr.mxu0 0.0
      %348 = vmatpush1.msra.mxu0 0.0
      %349 = vmatprep.subr.mxu0 0.0
      %350 = vmatpush1.msra.mxu0 0.0
      %351 = vmatprep.subr.mxu0 0.0
      %352 = vmatpush1.msra.mxu0 0.0
      %353 = vmatprep.subr.mxu0 0.0
      %354 = vmatpush1.msra.mxu0 0.0
      %355 = vmatprep.subr.mxu0 0.0
      %356 = vmatpush1.msra.mxu0 0.0
      %357 = vmatprep.subr.mxu0 0.0
      %358 = vmatpush1.msra.mxu0 0.0
      %359 = vmatprep.subr.mxu0 0.0
      %360 = vmatpush1.msra.mxu0 0.0
      %361 = vmatprep.subr.mxu0 0.0
      %362 = vmatpush1.msra.mxu0 0.0
      %363 = vmatprep.subr.mxu0 0.0
      %364 = vmatpush1.msra.mxu0 0.0
      %365 = vmatprep.subr.mxu0 0.0
      %366 = vmatpush1.msra.mxu0 0.0
      %367 = vmatprep.subr.mxu0 0.0
      %368 = vmatpush1.msra.mxu0 0.0
      %369 = vmatprep.subr.mxu0 0.0
      %370 = vmatpush1.msra.mxu0 0.0
      %371 = vmatprep.subr.mxu0 0.0
      %372 = vmatpush1.msra.mxu0 0.0
      %373 = vmatprep.subr.mxu0 0.0
      %374 = vmatpush1.msra.mxu0 0.0
      %375 = vmatprep.subr.mxu0 0.0
      %376 = vmatpush1.msra.mxu0 0.0
      %377 = vmatprep.subr.mxu0 0.0
      %378 = vmatpush1.msra.mxu0 0.0
      %379 = vmatprep.subr.mxu0 0.0
      %380 = vmatpush1.msra.mxu0 0.0
      %381 = vmatprep.subr.mxu0 0.0
      %382 = vmatpush1.msra.mxu0 0.0
      %383 = vmatprep.subr.mxu0 0.0
      %384 = vmatpush1.msra.mxu0 0.0
      %385 = vmatprep.subr.mxu0 0.0
      %386 = vmatpush1.msra.mxu0 0.0
      %387 = vmatprep.subr.mxu0 0.0
      %388 = vmatpush1.msra.mxu0 0.0
      %389 = vmatprep.mubr.f32.mxu0 0.0
      %390 = vmatmul.mubr.f32.gmra.mrb[0].mxu0 %v323
      %v391 = vpop.f32.mrb[0].mxu0
      %v392 = vadd.f32 %v320, %v391
      %v393 = vpop.f32.mrb[0].mxu0
      %394 = vdwg.mxu0
      %v395 = vlaneseq
      %v396 = vshrl.u32 %v395, 7
      %v397 = vlaneseq
      %v398 = vand.u32 %v397, 127
      %vm399 = vcmp.gt.s32.totalorder %v398, %v396
      %v400 = vsel %vm399, -1e+09, 0.0
      %402 = vrot.lane.b32.xlu0 %v392, 96
      %v403 = vpop.permute.xlu0 %402
      %vm404 = vcmask 64512
      %v405 = vsel %vm404, %v392, 0
      %v407 = vsel %vm404, %v403, 0
      %409 = vmatprep.subr.mxu0 0.0
      %410 = vmatpush1.xpose.msra.mxu0 %v407
      %411 = vmatprep.subr.mxu0 0.0
      %412 = vmatpush1.xpose.msra.mxu0 0.0
      %413 = vmatprep.subr.mxu0 0.0
      %414 = vmatpush1.xpose.msra.mxu0 0.0
      %415 = vmatprep.subr.mxu0 0.0
      %416 = vmatpush1.xpose.msra.mxu0 0.0
      %417 = vmatprep.subr.mxu0 0.0
      %418 = vmatpush1.xpose.msra.mxu0 0.0
      %419 = vmatprep.subr.mxu0 0.0
      %420 = vmatpush1.xpose.msra.mxu0 0.0
      %421 = vmatprep.subr.mxu0 0.0
      %422 = vmatpush1.xpose.msra.mxu0 0.0
      %423 = vmatprep.subr.mxu0 0.0
      %424 = vmatpush1.xpose.msra.mxu0 0.0
      %425 = vmatprep.subr.mxu0 0.0
      %426 = vmatpush1.xpose.msra.mxu0 0.0
      %427 = vmatprep.subr.mxu0 0.0
      %428 = vmatpush1.xpose.msra.mxu0 0.0
      %429 = vmatprep.subr.mxu0 0.0
      %430 = vmatpush1.xpose.msra.mxu0 0.0
      %431 = vmatprep.subr.mxu0 0.0
      %432 = vmatpush1.xpose.msra.mxu0 0.0
      %433 = vmatprep.subr.mxu0 0.0
      %434 = vmatpush1.xpose.msra.mxu0 0.0
      %435 = vmatprep.subr.mxu0 0.0
      %436 = vmatpush1.xpose.msra.mxu0 0.0
      %437 = vmatprep.subr.mxu0 0.0
      %438 = vmatpush1.xpose.msra.mxu0 0.0
      %439 = vmatprep.subr.mxu0 0.0
      %440 = vmatpush1.xpose.msra.mxu0 0.0
      %441 = vmatprep.subr.mxu0 0.0
      %442 = vmatpush1.xpose.msra.mxu0 0.0
      %443 = vmatprep.subr.mxu0 0.0
      %444 = vmatpush1.xpose.msra.mxu0 0.0
      %445 = vmatprep.subr.mxu0 0.0
      %446 = vmatpush1.xpose.msra.mxu0 0.0
      %447 = vmatprep.subr.mxu0 0.0
      %448 = vmatpush1.xpose.msra.mxu0 0.0
      %449 = vmatprep.subr.mxu0 0.0
      %450 = vmatpush1.xpose.msra.mxu0 0.0
      %451 = vmatprep.subr.mxu0 0.0
      %452 = vmatpush1.xpose.msra.mxu0 0.0
      %453 = vmatprep.subr.mxu0 0.0
      %454 = vmatpush1.xpose.msra.mxu0 0.0
      %455 = vmatprep.subr.mxu0 0.0
      %456 = vmatpush1.xpose.msra.mxu0 0.0
      %457 = vmatprep.subr.mxu0 0.0
      %458 = vmatpush1.xpose.msra.mxu0 0.0
      %459 = vmatprep.subr.mxu0 0.0
      %460 = vmatpush1.xpose.msra.mxu0 0.0
      %461 = vmatprep.subr.mxu0 0.0
      %462 = vmatpush1.xpose.msra.mxu0 0.0
      %463 = vmatprep.subr.mxu0 0.0
      %464 = vmatpush1.xpose.msra.mxu0 0.0
      %465 = vmatprep.subr.mxu0 0.0
      %466 = vmatpush1.xpose.msra.mxu0 0.0
      %467 = vmatprep.subr.mxu0 0.0
      %468 = vmatpush1.xpose.msra.mxu0 0.0
      %469 = vmatprep.subr.mxu0 0.0
      %470 = vmatpush1.xpose.msra.mxu0 0.0
      %471 = vmatprep.subr.mxu0 0.0
      %472 = vmatpush1.xpose.msra.mxu0 0.0
      %473 = vmatprep.mubr.f32.mxu0 0.0
      %474 = vmatmul.mubr.f32.gmra.mrb[0].mxu0 %v405
      %v475 = vpop.f32.mrb[0].mxu0
      %v476 = vadd.f32 0.0, %v475
      %v477 = vpop.f32.mrb[0].mxu0
      %478 = vdwg.mxu0
      %v479 = vmul.f32 %v476, 0.35355338
      %v480 = vadd.f32 %v479, %v400
      %v481 = vsel %vm404, %v480, -inf
      %482 = vmax.xlane.f32.xlu0 %v481
      %v483 = vpop.xlane.xlu0 %482
      %v484 = vsub.f32 %v480, %v483
      %v485 = vmul.f32 %v484, 1.442695
      %v486 = vpow.pop %v485
      %v487 = vsel %vm404, %v486, 0.0
      %488 = vadd.xlane.f32.xlu0 %v487
      %v489 = vpop.xlane.xlu0 %488
      %v490 = vrcp.pop %v489
      %v491 = vmul.f32 %v486, %v490
      %492 = vrot.lane.b32.xlu0 %v392, 64
      %v493 = vpop.permute.xlu0 %492
      %v496 = vsel %vm404, %v491, 0
      %498 = vmatprep.subr.mxu0 0.0
      %499 = vmatpush1.msra.mxu0 %v493
      %500 = vmatprep.subr.mxu0 0.0
      %501 = vmatpush1.msra.mxu0 0.0
      %502 = vmatprep.subr.mxu0 0.0
      %503 = vmatpush1.msra.mxu0 0.0
      %504 = vmatprep.subr.mxu0 0.0
      %505 = vmatpush1.msra.mxu0 0.0
      %506 = vmatprep.subr.mxu0 0.0
      %507 = vmatpush1.msra.mxu0 0.0
      %508 = vmatprep.subr.mxu0 0.0
      %509 = vmatpush1.msra.mxu0 0.0
      %510 = vmatprep.subr.mxu0 0.0
      %511 = vmatpush1.msra.mxu0 0.0
      %512 = vmatprep.subr.mxu0 0.0
      %513 = vmatpush1.msra.mxu0 0.0
      %514 = vmatprep.subr.mxu0 0.0
      %515 = vmatpush1.msra.mxu0 0.0
      %516 = vmatprep.subr.mxu0 0.0
      %517 = vmatpush1.msra.mxu0 0.0
      %518 = vmatprep.subr.mxu0 0.0
      %519 = vmatpush1.msra.mxu0 0.0
      %520 = vmatprep.subr.mxu0 0.0
      %521 = vmatpush1.msra.mxu0 0.0
      %522 = vmatprep.subr.mxu0 0.0
      %523 = vmatpush1.msra.mxu0 0.0
      %524 = vmatprep.subr.mxu0 0.0
      %525 = vmatpush1.msra.mxu0 0.0
      %526 = vmatprep.subr.mxu0 0.0
      %527 = vmatpush1.msra.mxu0 0.0
      %528 = vmatprep.subr.mxu0 0.0
      %529 = vmatpush1.msra.mxu0 0.0
      %530 = vmatprep.subr.mxu0 0.0
      %531 = vmatpush1.msra.mxu0 0.0
      %532 = vmatprep.subr.mxu0 0.0
      %533 = vmatpush1.msra.mxu0 0.0
      %534 = vmatprep.subr.mxu0 0.0
      %535 = vmatpush1.msra.mxu0 0.0
      %536 = vmatprep.subr.mxu0 0.0
      %537 = vmatpush1.msra.mxu0 0.0
      %538 = vmatprep.subr.mxu0 0.0
      %539 = vmatpush1.msra.mxu0 0.0
      %540 = vmatprep.subr.mxu0 0.0
      %541 = vmatpush1.msra.mxu0 0.0
      %542 = vmatprep.subr.mxu0 0.0
      %543 = vmatpush1.msra.mxu0 0.0
      %544 = vmatprep.subr.mxu0 0.0
      %545 = vmatpush1.msra.mxu0 0.0
      %546 = vmatprep.subr.mxu0 0.0
      %547 = vmatpush1.msra.mxu0 0.0
      %548 = vmatprep.subr.mxu0 0.0
      %549 = vmatpush1.msra.mxu0 0.0
      %550 = vmatprep.subr.mxu0 0.0
      %551 = vmatpush1.msra.mxu0 0.0
      %552 = vmatprep.subr.mxu0 0.0
      %553 = vmatpush1.msra.mxu0 0.0
      %554 = vmatprep.subr.mxu0 0.0
      %555 = vmatpush1.msra.mxu0 0.0
      %556 = vmatprep.subr.mxu0 0.0
      %557 = vmatpush1.msra.mxu0 0.0
      %558 = vmatprep.subr.mxu0 0.0
      %559 = vmatpush1.msra.mxu0 0.0
      %560 = vmatprep.subr.mxu0 0.0
      %561 = vmatpush1.msra.mxu0 0.0
      %562 = vmatprep.mubr.f32.mxu0 0.0
      %563 = vmatmul.mubr.f32.gmra.mrb[0].mxu0 %v496
      %v564 = vpop.f32.mrb[0].mxu0
      %v565 = vadd.f32 0.0, %v564
      %v566 = vpop.f32.mrb[0].mxu0
      %567 = vdwg.mxu0
      %568 = vrot.lane.b32.xlu0 %v392, 120
      %v569 = vpop.permute.xlu0 %568
      %570 = vrot.lane.b32.xlu0 %v392, 88
      %v571 = vpop.permute.xlu0 %570
      %v572 = vsel %vm404, %v569, 0
      %v574 = vsel %vm404, %v571, 0
      %576 = vmatprep.subr.mxu0 0.0
      %577 = vmatpush1.xpose.msra.mxu0 %v574
      %578 = vmatprep.subr.mxu0 0.0
      %579 = vmatpush1.xpose.msra.mxu0 0.0
      %580 = vmatprep.subr.mxu0 0.0
      %581 = vmatpush1.xpose.msra.mxu0 0.0
      %582 = vmatprep.subr.mxu0 0.0
      %583 = vmatpush1.xpose.msra.mxu0 0.0
      %584 = vmatprep.subr.mxu0 0.0
      %585 = vmatpush1.xpose.msra.mxu0 0.0
      %586 = vmatprep.subr.mxu0 0.0
      %587 = vmatpush1.xpose.msra.mxu0 0.0
      %588 = vmatprep.subr.mxu0 0.0
      %589 = vmatpush1.xpose.msra.mxu0 0.0
      %590 = vmatprep.subr.mxu0 0.0
      %591 = vmatpush1.xpose.msra.mxu0 0.0
      %592 = vmatprep.subr.mxu0 0.0
      %593 = vmatpush1.xpose.msra.mxu0 0.0
      %594 = vmatprep.subr.mxu0 0.0
      %595 = vmatpush1.xpose.msra.mxu0 0.0
      %596 = vmatprep.subr.mxu0 0.0
      %597 = vmatpush1.xpose.msra.mxu0 0.0
      %598 = vmatprep.subr.mxu0 0.0
      %599 = vmatpush1.xpose.msra.mxu0 0.0
      %600 = vmatprep.subr.mxu0 0.0
      %601 = vmatpush1.xpose.msra.mxu0 0.0
      %602 = vmatprep.subr.mxu0 0.0
      %603 = vmatpush1.xpose.msra.mxu0 0.0
      %604 = vmatprep.subr.mxu0 0.0
      %605 = vmatpush1.xpose.msra.mxu0 0.0
      %606 = vmatprep.subr.mxu0 0.0
      %607 = vmatpush1.xpose.msra.mxu0 0.0
      %608 = vmatprep.subr.mxu0 0.0
      %609 = vmatpush1.xpose.msra.mxu0 0.0
      %610 = vmatprep.subr.mxu0 0.0
      %611 = vmatpush1.xpose.msra.mxu0 0.0
      %612 = vmatprep.subr.mxu0 0.0
      %613 = vmatpush1.xpose.msra.mxu0 0.0
      %614 = vmatprep.subr.mxu0 0.0
      %615 = vmatpush1.xpose.msra.mxu0 0.0
      %616 = vmatprep.subr.mxu0 0.0
      %617 = vmatpush1.xpose.msra.mxu0 0.0
      %618 = vmatprep.subr.mxu0 0.0
      %619 = vmatpush1.xpose.msra.mxu0 0.0
      %620 = vmatprep.subr.mxu0 0.0
      %621 = vmatpush1.xpose.msra.mxu0 0.0
      %622 = vmatprep.subr.mxu0 0.0
      %623 = vmatpush1.xpose.msra.mxu0 0.0
      %624 = vmatprep.subr.mxu0 0.0
      %625 = vmatpush1.xpose.msra.mxu0 0.0
      %626 = vmatprep.subr.mxu0 0.0
      %627 = vmatpush1.xpose.msra.mxu0 0.0
      %628 = vmatprep.subr.mxu0 0.0
      %629 = vmatpush1.xpose.msra.mxu0 0.0
      %630 = vmatprep.subr.mxu0 0.0
      %631 = vmatpush1.xpose.msra.mxu0 0.0
      %632 = vmatprep.subr.mxu0 0.0
      %633 = vmatpush1.xpose.msra.mxu0 0.0
      %634 = vmatprep.subr.mxu0 0.0
      %635 = vmatpush1.xpose.msra.mxu0 0.0
      %636 = vmatprep.subr.mxu0 0.0
      %637 = vmatpush1.xpose.msra.mxu0 0.0
      %638 = vmatprep.subr.mxu0 0.0
      %639 = vmatpush1.xpose.msra.mxu0 0.0
      %640 = vmatprep.mubr.f32.mxu0 0.0
      %641 = vmatmul.mubr.f32.gmra.mrb[0].mxu0 %v572
      %v642 = vpop.f32.mrb[0].mxu0
      %v643 = vadd.f32 0.0, %v642
      %v644 = vpop.f32.mrb[0].mxu0
      %645 = vdwg.mxu0
      %v646 = vmul.f32 %v643, 0.35355338
      %v647 = vadd.f32 %v646, %v400
      %v648 = vsel %vm404, %v647, -inf
      %649 = vmax.xlane.f32.xlu0 %v648
      %v650 = vpop.xlane.xlu0 %649
      %v651 = vsub.f32 %v647, %v650
      %v652 = vmul.f32 %v651, 1.442695
      %v653 = vpow.pop %v652
      %v654 = vsel %vm404, %v653, 0.0
      %655 = vadd.xlane.f32.xlu0 %v654
      %v656 = vpop.xlane.xlu0 %655
      %v657 = vrcp.pop %v656
      %v658 = vmul.f32 %v653, %v657
      %659 = vrot.lane.b32.xlu0 %v392, 56
      %v660 = vpop.permute.xlu0 %659
      %v663 = vsel %vm404, %v658, 0
      %665 = vmatprep.subr.mxu0 0.0
      %666 = vmatpush1.msra.mxu0 %v660
      %667 = vmatprep.subr.mxu0 0.0
      %668 = vmatpush1.msra.mxu0 0.0
      %669 = vmatprep.subr.mxu0 0.0
      %670 = vmatpush1.msra.mxu0 0.0
      %671 = vmatprep.subr.mxu0 0.0
      %672 = vmatpush1.msra.mxu0 0.0
      %673 = vmatprep.subr.mxu0 0.0
      %674 = vmatpush1.msra.mxu0 0.0
      %675 = vmatprep.subr.mxu0 0.0
      %676 = vmatpush1.msra.mxu0 0.0
      %677 = vmatprep.subr.mxu0 0.0
      %678 = vmatpush1.msra.mxu0 0.0
      %679 = vmatprep.subr.mxu0 0.0
      %680 = vmatpush1.msra.mxu0 0.0
      %681 = vmatprep.subr.mxu0 0.0
      %682 = vmatpush1.msra.mxu0 0.0
      %683 = vmatprep.subr.mxu0 0.0
      %684 = vmatpush1.msra.mxu0 0.0
      %685 = vmatprep.subr.mxu0 0.0
      %686 = vmatpush1.msra.mxu0 0.0
      %687 = vmatprep.subr.mxu0 0.0
      %688 = vmatpush1.msra.mxu0 0.0
      %689 = vmatprep.subr.mxu0 0.0
      %690 = vmatpush1.msra.mxu0 0.0
      %691 = vmatprep.subr.mxu0 0.0
      %692 = vmatpush1.msra.mxu0 0.0
      %693 = vmatprep.subr.mxu0 0.0
      %694 = vmatpush1.msra.mxu0 0.0
      %695 = vmatprep.subr.mxu0 0.0
      %696 = vmatpush1.msra.mxu0 0.0
      %697 = vmatprep.subr.mxu0 0.0
      %698 = vmatpush1.msra.mxu0 0.0
      %699 = vmatprep.subr.mxu0 0.0
      %700 = vmatpush1.msra.mxu0 0.0
      %701 = vmatprep.subr.mxu0 0.0
      %702 = vmatpush1.msra.mxu0 0.0
      %703 = vmatprep.subr.mxu0 0.0
      %704 = vmatpush1.msra.mxu0 0.0
      %705 = vmatprep.subr.mxu0 0.0
      %706 = vmatpush1.msra.mxu0 0.0
      %707 = vmatprep.subr.mxu0 0.0
      %708 = vmatpush1.msra.mxu0 0.0
      %709 = vmatprep.subr.mxu0 0.0
      %710 = vmatpush1.msra.mxu0 0.0
      %711 = vmatprep.subr.mxu0 0.0
      %712 = vmatpush1.msra.mxu0 0.0
      %713 = vmatprep.subr.mxu0 0.0
      %714 = vmatpush1.msra.mxu0 0.0
      %715 = vmatprep.subr.mxu0 0.0
      %716 = vmatpush1.msra.mxu0 0.0
      %717 = vmatprep.subr.mxu0 0.0
      %718 = vmatpush1.msra.mxu0 0.0
      %719 = vmatprep.subr.mxu0 0.0
      %720 = vmatpush1.msra.mxu0 0.0
      %721 = vmatprep.subr.mxu0 0.0
      %722 = vmatpush1.msra.mxu0 0.0
      %723 = vmatprep.subr.mxu0 0.0
      %724 = vmatpush1.msra.mxu0 0.0
      %725 = vmatprep.subr.mxu0 0.0
      %726 = vmatpush1.msra.mxu0 0.0
      %727 = vmatprep.subr.mxu0 0.0
      %728 = vmatpush1.msra.mxu0 0.0
      %729 = vmatprep.mubr.f32.mxu0 0.0
      %730 = vmatmul.mubr.f32.gmra.mrb[0].mxu0 %v663
      %v731 = vpop.f32.mrb[0].mxu0
      %v732 = vadd.f32 0.0, %v731
      %v733 = vpop.f32.mrb[0].mxu0
      %734 = vdwg.mxu0
      %v736 = vsel %vm404, %v732, 0
      %738 = vmatprep.subr.mxu0 0.0
      %739 = vmatpush1.msra.mxu0 %v283
      %740 = vmatprep.subr.mxu0 0.0
      %741 = vmatpush1.msra.mxu0 0.0
      %742 = vmatprep.subr.mxu0 0.0
      %743 = vmatpush1.msra.mxu0 0.0
      %744 = vmatprep.subr.mxu0 0.0
      %745 = vmatpush1.msra.mxu0 0.0
      %746 = vmatprep.subr.mxu0 0.0
      %747 = vmatpush1.msra.mxu0 0.0
      %748 = vmatprep.subr.mxu0 0.0
      %749 = vmatpush1.msra.mxu0 0.0
      %750 = vmatprep.subr.mxu0 0.0
      %751 = vmatpush1.msra.mxu0 0.0
      %752 = vmatprep.subr.mxu0 0.0
      %753 = vmatpush1.msra.mxu0 0.0
      %754 = vmatprep.subr.mxu0 0.0
      %755 = vmatpush1.msra.mxu0 0.0
      %756 = vmatprep.subr.mxu0 0.0
      %757 = vmatpush1.msra.mxu0 0.0
      %758 = vmatprep.subr.mxu0 0.0
      %759 = vmatpush1.msra.mxu0 0.0
      %760 = vmatprep.subr.mxu0 0.0
      %761 = vmatpush1.msra.mxu0 0.0
      %762 = vmatprep.subr.mxu0 0.0
      %763 = vmatpush1.msra.mxu0 0.0
      %764 = vmatprep.subr.mxu0 0.0
      %765 = vmatpush1.msra.mxu0 0.0
      %766 = vmatprep.subr.mxu0 0.0
      %767 = vmatpush1.msra.mxu0 0.0
      %768 = vmatprep.subr.mxu0 0.0
      %769 = vmatpush1.msra.mxu0 0.0
      %770 = vmatprep.subr.mxu0 0.0
      %771 = vmatpush1.msra.mxu0 0.0
      %772 = vmatprep.subr.mxu0 0.0
      %773 = vmatpush1.msra.mxu0 0.0
      %774 = vmatprep.subr.mxu0 0.0
      %775 = vmatpush1.msra.mxu0 0.0
      %776 = vmatprep.subr.mxu0 0.0
      %777 = vmatpush1.msra.mxu0 0.0
      %778 = vmatprep.subr.mxu0 0.0
      %779 = vmatpush1.msra.mxu0 0.0
      %780 = vmatprep.subr.mxu0 0.0
      %781 = vmatpush1.msra.mxu0 0.0
      %782 = vmatprep.subr.mxu0 0.0
      %783 = vmatpush1.msra.mxu0 0.0
      %784 = vmatprep.subr.mxu0 0.0
      %785 = vmatpush1.msra.mxu0 0.0
      %786 = vmatprep.subr.mxu0 0.0
      %787 = vmatpush1.msra.mxu0 0.0
      %788 = vmatprep.subr.mxu0 0.0
      %789 = vmatpush1.msra.mxu0 0.0
      %790 = vmatprep.subr.mxu0 0.0
      %791 = vmatpush1.msra.mxu0 0.0
      %792 = vmatprep.subr.mxu0 0.0
      %793 = vmatpush1.msra.mxu0 0.0
      %794 = vmatprep.subr.mxu0 0.0
      %795 = vmatpush1.msra.mxu0 0.0
      %796 = vmatprep.subr.mxu0 0.0
      %797 = vmatpush1.msra.mxu0 0.0
      %798 = vmatprep.subr.mxu0 0.0
      %799 = vmatpush1.msra.mxu0 0.0
      %800 = vmatprep.subr.mxu0 0.0
      %801 = vmatpush1.msra.mxu0 0.0
      %802 = vmatprep.mubr.f32.mxu0 0.0
      %803 = vmatmul.mubr.f32.gmra.mrb[0].mxu0 %v736
      %v804 = vpop.f32.mrb[0].mxu0
      %v805 = vadd.f32 0.0, %v804
      %v806 = vpop.f32.mrb[0].mxu0
      %807 = vdwg.mxu0
      %v809 = vsel %vm404, %v565, 0
      %811 = vmatprep.subr.mxu0 0.0
      %812 = vmatpush1.msra.mxu0 %v282
      %813 = vmatprep.subr.mxu0 0.0
      %814 = vmatpush1.msra.mxu0 0.0
      %815 = vmatprep.subr.mxu0 0.0
      %816 = vmatpush1.msra.mxu0 0.0
      %817 = vmatprep.subr.mxu0 0.0
      %818 = vmatpush1.msra.mxu0 0.0
      %819 = vmatprep.subr.mxu0 0.0
      %820 = vmatpush1.msra.mxu0 0.0
      %821 = vmatprep.subr.mxu0 0.0
      %822 = vmatpush1.msra.mxu0 0.0
      %823 = vmatprep.subr.mxu0 0.0
      %824 = vmatpush1.msra.mxu0 0.0
      %825 = vmatprep.subr.mxu0 0.0
      %826 = vmatpush1.msra.mxu0 0.0
      %827 = vmatprep.subr.mxu0 0.0
      %828 = vmatpush1.msra.mxu0 0.0
      %829 = vmatprep.subr.mxu0 0.0
      %830 = vmatpush1.msra.mxu0 0.0
      %831 = vmatprep.subr.mxu0 0.0
      %832 = vmatpush1.msra.mxu0 0.0
      %833 = vmatprep.subr.mxu0 0.0
      %834 = vmatpush1.msra.mxu0 0.0
      %835 = vmatprep.subr.mxu0 0.0
      %836 = vmatpush1.msra.mxu0 0.0
      %837 = vmatprep.subr.mxu0 0.0
      %838 = vmatpush1.msra.mxu0 0.0
      %839 = vmatprep.subr.mxu0 0.0
      %840 = vmatpush1.msra.mxu0 0.0
      %841 = vmatprep.subr.mxu0 0.0
      %842 = vmatpush1.msra.mxu0 0.0
      %843 = vmatprep.subr.mxu0 0.0
      %844 = vmatpush1.msra.mxu0 0.0
      %845 = vmatprep.subr.mxu0 0.0
      %846 = vmatpush1.msra.mxu0 0.0
      %847 = vmatprep.subr.mxu0 0.0
      %848 = vmatpush1.msra.mxu0 0.0
      %849 = vmatprep.subr.mxu0 0.0
      %850 = vmatpush1.msra.mxu0 0.0
      %851 = vmatprep.subr.mxu0 0.0
      %852 = vmatpush1.msra.mxu0 0.0
      %853 = vmatprep.subr.mxu0 0.0
      %854 = vmatpush1.msra.mxu0 0.0
      %855 = vmatprep.subr.mxu0 0.0
      %856 = vmatpush1.msra.mxu0 0.0
      %857 = vmatprep.subr.mxu0 0.0
      %858 = vmatpush1.msra.mxu0 0.0
      %859 = vmatprep.subr.mxu0 0.0
      %860 = vmatpush1.msra.mxu0 0.0
      %861 = vmatprep.subr.mxu0 0.0
      %862 = vmatpush1.msra.mxu0 0.0
      %863 = vmatprep.subr.mxu0 0.0
      %864 = vmatpush1.msra.mxu0 0.0
      %865 = vmatprep.subr.mxu0 0.0
      %866 = vmatpush1.msra.mxu0 0.0
      %867 = vmatprep.subr.mxu0 0.0
      %868 = vmatpush1.msra.mxu0 0.0
      %869 = vmatprep.subr.mxu0 0.0
      %870 = vmatpush1.msra.mxu0 0.0
      %871 = vmatprep.subr.mxu0 0.0
      %872 = vmatpush1.msra.mxu0 0.0
      %873 = vmatprep.subr.mxu0 0.0
      %874 = vmatpush1.msra.mxu0 0.0
      %875 = vmatprep.mubr.f32.mxu0 0.0
      %876 = vmatmul.mubr.f32.gmra.mrb[0].mxu0 %v809
      %v877 = vpop.f32.mrb[0].mxu0
      %v878 = vadd.f32 %v805, %v877
      %v879 = vpop.f32.mrb[0].mxu0
      %880 = vdwg.mxu0
      %881 = vrot.lane.b32.xlu0 %v392, 112
      %v882 = vpop.permute.xlu0 %881
      %883 = vrot.lane.b32.xlu0 %v392, 80
      %v884 = vpop.permute.xlu0 %883
      %v885 = vsel %vm404, %v882, 0
      %v887 = vsel %vm404, %v884, 0
      %889 = vmatprep.subr.mxu0 0.0
      %890 = vmatpush1.xpose.msra.mxu0 %v887
      %891 = vmatprep.subr.mxu0 0.0
      %892 = vmatpush1.xpose.msra.mxu0 0.0
      %893 = vmatprep.subr.mxu0 0.0
      %894 = vmatpush1.xpose.msra.mxu0 0.0
      %895 = vmatprep.subr.mxu0 0.0
      %896 = vmatpush1.xpose.msra.mxu0 0.0
      %897 = vmatprep.subr.mxu0 0.0
      %898 = vmatpush1.xpose.msra.mxu0 0.0
      %899 = vmatprep.subr.mxu0 0.0
      %900 = vmatpush1.xpose.msra.mxu0 0.0
      %901 = vmatprep.subr.mxu0 0.0
      %902 = vmatpush1.xpose.msra.mxu0 0.0
      %903 = vmatprep.subr.mxu0 0.0
      %904 = vmatpush1.xpose.msra.mxu0 0.0
      %905 = vmatprep.subr.mxu0 0.0
      %906 = vmatpush1.xpose.msra.mxu0 0.0
      %907 = vmatprep.subr.mxu0 0.0
      %908 = vmatpush1.xpose.msra.mxu0 0.0
      %909 = vmatprep.subr.mxu0 0.0
      %910 = vmatpush1.xpose.msra.mxu0 0.0
      %911 = vmatprep.subr.mxu0 0.0
      %912 = vmatpush1.xpose.msra.mxu0 0.0
      %913 = vmatprep.subr.mxu0 0.0
      %914 = vmatpush1.xpose.msra.mxu0 0.0
      %915 = vmatprep.subr.mxu0 0.0
      %916 = vmatpush1.xpose.msra.mxu0 0.0
      %917 = vmatprep.subr.mxu0 0.0
      %918 = vmatpush1.xpose.msra.mxu0 0.0
      %919 = vmatprep.subr.mxu0 0.0
      %920 = vmatpush1.xpose.msra.mxu0 0.0
      %921 = vmatprep.subr.mxu0 0.0
      %922 = vmatpush1.xpose.msra.mxu0 0.0
      %923 = vmatprep.subr.mxu0 0.0
      %924 = vmatpush1.xpose.msra.mxu0 0.0
      %925 = vmatprep.subr.mxu0 0.0
      %926 = vmatpush1.xpose.msra.mxu0 0.0
      %927 = vmatprep.subr.mxu0 0.0
      %928 = vmatpush1.xpose.msra.mxu0 0.0
      %929 = vmatprep.subr.mxu0 0.0
      %930 = vmatpush1.xpose.msra.mxu0 0.0
      %931 = vmatprep.subr.mxu0 0.0
      %932 = vmatpush1.xpose.msra.mxu0 0.0
      %933 = vmatprep.subr.mxu0 0.0
      %934 = vmatpush1.xpose.msra.mxu0 0.0
      %935 = vmatprep.subr.mxu0 0.0
      %936 = vmatpush1.xpose.msra.mxu0 0.0
      %937 = vmatprep.subr.mxu0 0.0
      %938 = vmatpush1.xpose.msra.mxu0 0.0
      %939 = vmatprep.subr.mxu0 0.0
      %940 = vmatpush1.xpose.msra.mxu0 0.0
      %941 = vmatprep.subr.mxu0 0.0
      %942 = vmatpush1.xpose.msra.mxu0 0.0
      %943 = vmatprep.subr.mxu0 0.0
      %944 = vmatpush1.xpose.msra.mxu0 0.0
      %945 = vmatprep.subr.mxu0 0.0
      %946 = vmatpush1.xpose.msra.mxu0 0.0
      %947 = vmatprep.subr.mxu0 0.0
      %948 = vmatpush1.xpose.msra.mxu0 0.0
      %949 = vmatprep.subr.mxu0 0.0
      %950 = vmatpush1.xpose.msra.mxu0 0.0
      %951 = vmatprep.subr.mxu0 0.0
      %952 = vmatpush1.xpose.msra.mxu0 0.0
      %953 = vmatprep.mubr.f32.mxu0 0.0
      %954 = vmatmul.mubr.f32.gmra.mrb[0].mxu0 %v885
      %v955 = vpop.f32.mrb[0].mxu0
      %v956 = vadd.f32 0.0, %v955
      %v957 = vpop.f32.mrb[0].mxu0
      %958 = vdwg.mxu0
      %v959 = vmul.f32 %v956, 0.35355338
      %v960 = vadd.f32 %v959, %v400
      %v961 = vsel %vm404, %v960, -inf
      %962 = vmax.xlane.f32.xlu0 %v961
      %v963 = vpop.xlane.xlu0 %962
      %v964 = vsub.f32 %v960, %v963
      %v965 = vmul.f32 %v964, 1.442695
      %v966 = vpow.pop %v965
      %v967 = vsel %vm404, %v966, 0.0
      %968 = vadd.xlane.f32.xlu0 %v967
      %v969 = vpop.xlane.xlu0 %968
      %v970 = vrcp.pop %v969
      %v971 = vmul.f32 %v966, %v970
      %972 = vrot.lane.b32.xlu0 %v392, 48
      %v973 = vpop.permute.xlu0 %972
      %v976 = vsel %vm404, %v971, 0
      %978 = vmatprep.subr.mxu0 0.0
      %979 = vmatpush1.msra.mxu0 %v973
      %980 = vmatprep.subr.mxu0 0.0
      %981 = vmatpush1.msra.mxu0 0.0
      %982 = vmatprep.subr.mxu0 0.0
      %983 = vmatpush1.msra.mxu0 0.0
      %984 = vmatprep.subr.mxu0 0.0
      %985 = vmatpush1.msra.mxu0 0.0
      %986 = vmatprep.subr.mxu0 0.0
      %987 = vmatpush1.msra.mxu0 0.0
      %988 = vmatprep.subr.mxu0 0.0
      %989 = vmatpush1.msra.mxu0 0.0
      %990 = vmatprep.subr.mxu0 0.0
      %991 = vmatpush1.msra.mxu0 0.0
      %992 = vmatprep.subr.mxu0 0.0
      %993 = vmatpush1.msra.mxu0 0.0
      %994 = vmatprep.subr.mxu0 0.0
      %995 = vmatpush1.msra.mxu0 0.0
      %996 = vmatprep.subr.mxu0 0.0
      %997 = vmatpush1.msra.mxu0 0.0
      %998 = vmatprep.subr.mxu0 0.0
      %999 = vmatpush1.msra.mxu0 0.0
      %1000 = vmatprep.subr.mxu0 0.0
      %1001 = vmatpush1.msra.mxu0 0.0
      %1002 = vmatprep.subr.mxu0 0.0
      %1003 = vmatpush1.msra.mxu0 0.0
      %1004 = vmatprep.subr.mxu0 0.0
      %1005 = vmatpush1.msra.mxu0 0.0
      %1006 = vmatprep.subr.mxu0 0.0
      %1007 = vmatpush1.msra.mxu0 0.0
      %1008 = vmatprep.subr.mxu0 0.0
      %1009 = vmatpush1.msra.mxu0 0.0
      %1010 = vmatprep.subr.mxu0 0.0
      %1011 = vmatpush1.msra.mxu0 0.0
      %1012 = vmatprep.subr.mxu0 0.0
      %1013 = vmatpush1.msra.mxu0 0.0
      %1014 = vmatprep.subr.mxu0 0.0
      %1015 = vmatpush1.msra.mxu0 0.0
      %1016 = vmatprep.subr.mxu0 0.0
      %1017 = vmatpush1.msra.mxu0 0.0
      %1018 = vmatprep.subr.mxu0 0.0
      %1019 = vmatpush1.msra.mxu0 0.0
      %1020 = vmatprep.subr.mxu0 0.0
      %1021 = vmatpush1.msra.mxu0 0.0
      %1022 = vmatprep.subr.mxu0 0.0
      %1023 = vmatpush1.msra.mxu0 0.0
      %1024 = vmatprep.subr.mxu0 0.0
      %1025 = vmatpush1.msra.mxu0 0.0
      %1026 = vmatprep.subr.mxu0 0.0
      %1027 = vmatpush1.msra.mxu0 0.0
      %1028 = vmatprep.subr.mxu0 0.0
      %1029 = vmatpush1.msra.mxu0 0.0
      %1030 = vmatprep.subr.mxu0 0.0
      %1031 = vmatpush1.msra.mxu0 0.0
      %1032 = vmatprep.subr.mxu0 0.0
      %1033 = vmatpush1.msra.mxu0 0.0
      %1034 = vmatprep.subr.mxu0 0.0
      %1035 = vmatpush1.msra.mxu0 0.0
      %1036 = vmatprep.subr.mxu0 0.0
      %1037 = vmatpush1.msra.mxu0 0.0
      %1038 = vmatprep.subr.mxu0 0.0
      %1039 = vmatpush1.msra.mxu0 0.0
      %1040 = vmatprep.subr.mxu0 0.0
      %1041 = vmatpush1.msra.mxu0 0.0
      %1042 = vmatprep.mubr.f32.mxu0 0.0
      %1043 = vmatmul.mubr.f32.gmra.mrb[0].mxu0 %v976
      %v1044 = vpop.f32.mrb[0].mxu0
      %v1045 = vadd.f32 0.0, %v1044
      %v1046 = vpop.f32.mrb[0].mxu0
      %1047 = vdwg.mxu0
      %v1049 = vsel %vm404, %v1045, 0
      %1051 = vmatprep.subr.mxu0 0.0
      %1052 = vmatpush1.msra.mxu0 %v284
      %1053 = vmatprep.subr.mxu0 0.0
      %1054 = vmatpush1.msra.mxu0 0.0
      %1055 = vmatprep.subr.mxu0 0.0
      %1056 = vmatpush1.msra.mxu0 0.0
      %1057 = vmatprep.subr.mxu0 0.0
      %1058 = vmatpush1.msra.mxu0 0.0
      %1059 = vmatprep.subr.mxu0 0.0
      %1060 = vmatpush1.msra.mxu0 0.0
      %1061 = vmatprep.subr.mxu0 0.0
      %1062 = vmatpush1.msra.mxu0 0.0
      %1063 = vmatprep.subr.mxu0 0.0
      %1064 = vmatpush1.msra.mxu0 0.0
      %1065 = vmatprep.subr.mxu0 0.0
      %1066 = vmatpush1.msra.mxu0 0.0
      %1067 = vmatprep.subr.mxu0 0.0
      %1068 = vmatpush1.msra.mxu0 0.0
      %1069 = vmatprep.subr.mxu0 0.0
      %1070 = vmatpush1.msra.mxu0 0.0
      %1071 = vmatprep.subr.mxu0 0.0
      %1072 = vmatpush1.msra.mxu0 0.0
      %1073 = vmatprep.subr.mxu0 0.0
      %1074 = vmatpush1.msra.mxu0 0.0
      %1075 = vmatprep.subr.mxu0 0.0
      %1076 = vmatpush1.msra.mxu0 0.0
      %1077 = vmatprep.subr.mxu0 0.0
      %1078 = vmatpush1.msra.mxu0 0.0
      %1079 = vmatprep.subr.mxu0 0.0
      %1080 = vmatpush1.msra.mxu0 0.0
      %1081 = vmatprep.subr.mxu0 0.0
      %1082 = vmatpush1.msra.mxu0 0.0
      %1083 = vmatprep.subr.mxu0 0.0
      %1084 = vmatpush1.msra.mxu0 0.0
      %1085 = vmatprep.subr.mxu0 0.0
      %1086 = vmatpush1.msra.mxu0 0.0
      %1087 = vmatprep.subr.mxu0 0.0
      %1088 = vmatpush1.msra.mxu0 0.0
      %1089 = vmatprep.subr.mxu0 0.0
      %1090 = vmatpush1.msra.mxu0 0.0
      %1091 = vmatprep.subr.mxu0 0.0
      %1092 = vmatpush1.msra.mxu0 0.0
      %1093 = vmatprep.subr.mxu0 0.0
      %1094 = vmatpush1.msra.mxu0 0.0
      %1095 = vmatprep.subr.mxu0 0.0
      %1096 = vmatpush1.msra.mxu0 0.0
      %1097 = vmatprep.subr.mxu0 0.0
      %1098 = vmatpush1.msra.mxu0 0.0
      %1099 = vmatprep.subr.mxu0 0.0
      %1100 = vmatpush1.msra.mxu0 0.0
      %1101 = vmatprep.subr.mxu0 0.0
      %1102 = vmatpush1.msra.mxu0 0.0
      %1103 = vmatprep.subr.mxu0 0.0
      %1104 = vmatpush1.msra.mxu0 0.0
      %1105 = vmatprep.subr.mxu0 0.0
      %1106 = vmatpush1.msra.mxu0 0.0
      %1107 = vmatprep.subr.mxu0 0.0
      %1108 = vmatpush1.msra.mxu0 0.0
      %1109 = vmatprep.subr.mxu0 0.0
      %1110 = vmatpush1.msra.mxu0 0.0
      %1111 = vmatprep.subr.mxu0 0.0
      %1112 = vmatpush1.msra.mxu0 0.0
      %1113 = vmatprep.subr.mxu0 0.0
      %1114 = vmatpush1.msra.mxu0 0.0
      %1115 = vmatprep.mubr.f32.mxu0 0.0
      %1116 = vmatmul.mubr.f32.gmra.mrb[0].mxu0 %v1049
      %v1117 = vpop.f32.mrb[0].mxu0
      %v1118 = vadd.f32 0.0, %v1117
      %v1119 = vpop.f32.mrb[0].mxu0
      %1120 = vdwg.mxu0
      %v1121 = vadd.f32 %v878, %v1118
      %1122 = vrot.lane.b32.xlu0 %v392, 104
      %v1123 = vpop.permute.xlu0 %1122
      %1124 = vrot.lane.b32.xlu0 %v392, 72
      %v1125 = vpop.permute.xlu0 %1124
      %v1126 = vsel %vm404, %v1123, 0
      %v1128 = vsel %vm404, %v1125, 0
      %1130 = vmatprep.subr.mxu0 0.0
      %1131 = vmatpush1.xpose.msra.mxu0 %v1128
      %1132 = vmatprep.subr.mxu0 0.0
      %1133 = vmatpush1.xpose.msra.mxu0 0.0
      %1134 = vmatprep.subr.mxu0 0.0
      %1135 = vmatpush1.xpose.msra.mxu0 0.0
      %1136 = vmatprep.subr.mxu0 0.0
      %1137 = vmatpush1.xpose.msra.mxu0 0.0
      %1138 = vmatprep.subr.mxu0 0.0
      %1139 = vmatpush1.xpose.msra.mxu0 0.0
      %1140 = vmatprep.subr.mxu0 0.0
      %1141 = vmatpush1.xpose.msra.mxu0 0.0
      %1142 = vmatprep.subr.mxu0 0.0
      %1143 = vmatpush1.xpose.msra.mxu0 0.0
      %1144 = vmatprep.subr.mxu0 0.0
      %1145 = vmatpush1.xpose.msra.mxu0 0.0
      %1146 = vmatprep.subr.mxu0 0.0
      %1147 = vmatpush1.xpose.msra.mxu0 0.0
      %1148 = vmatprep.subr.mxu0 0.0
      %1149 = vmatpush1.xpose.msra.mxu0 0.0
      %1150 = vmatprep.subr.mxu0 0.0
      %1151 = vmatpush1.xpose.msra.mxu0 0.0
      %1152 = vmatprep.subr.mxu0 0.0
      %1153 = vmatpush1.xpose.msra.mxu0 0.0
      %1154 = vmatprep.subr.mxu0 0.0
      %1155 = vmatpush1.xpose.msra.mxu0 0.0
      %1156 = vmatprep.subr.mxu0 0.0
      %1157 = vmatpush1.xpose.msra.mxu0 0.0
      %1158 = vmatprep.subr.mxu0 0.0
      %1159 = vmatpush1.xpose.msra.mxu0 0.0
      %1160 = vmatprep.subr.mxu0 0.0
      %1161 = vmatpush1.xpose.msra.mxu0 0.0
      %1162 = vmatprep.subr.mxu0 0.0
      %1163 = vmatpush1.xpose.msra.mxu0 0.0
      %1164 = vmatprep.subr.mxu0 0.0
      %1165 = vmatpush1.xpose.msra.mxu0 0.0
      %1166 = vmatprep.subr.mxu0 0.0
      %1167 = vmatpush1.xpose.msra.mxu0 0.0
      %1168 = vmatprep.subr.mxu0 0.0
      %1169 = vmatpush1.xpose.msra.mxu0 0.0
      %1170 = vmatprep.subr.mxu0 0.0
      %1171 = vmatpush1.xpose.msra.mxu0 0.0
      %1172 = vmatprep.subr.mxu0 0.0
      %1173 = vmatpush1.xpose.msra.mxu0 0.0
      %1174 = vmatprep.subr.mxu0 0.0
      %1175 = vmatpush1.xpose.msra.mxu0 0.0
      %1176 = vmatprep.subr.mxu0 0.0
      %1177 = vmatpush1.xpose.msra.mxu0 0.0
      %1178 = vmatprep.subr.mxu0 0.0
      %1179 = vmatpush1.xpose.msra.mxu0 0.0
      %1180 = vmatprep.subr.mxu0 0.0
      %1181 = vmatpush1.xpose.msra.mxu0 0.0
      %1182 = vmatprep.subr.mxu0 0.0
      %1183 = vmatpush1.xpose.msra.mxu0 0.0
      %1184 = vmatprep.subr.mxu0 0.0
      %1185 = vmatpush1.xpose.msra.mxu0 0.0
      %1186 = vmatprep.subr.mxu0 0.0
      %1187 = vmatpush1.xpose.msra.mxu0 0.0
      %1188 = vmatprep.subr.mxu0 0.0
      %1189 = vmatpush1.xpose.msra.mxu0 0.0
      %1190 = vmatprep.subr.mxu0 0.0
      %1191 = vmatpush1.xpose.msra.mxu0 0.0
      %1192 = vmatprep.subr.mxu0 0.0
      %1193 = vmatpush1.xpose.msra.mxu0 0.0
      %1194 = vmatprep.mubr.f32.mxu0 0.0
      %1195 = vmatmul.mubr.f32.gmra.mrb[0].mxu0 %v1126
      %v1196 = vpop.f32.mrb[0].mxu0
      %v1197 = vadd.f32 0.0, %v1196
      %v1198 = vpop.f32.mrb[0].mxu0
      %1199 = vdwg.mxu0
      %v1200 = vmul.f32 %v1197, 0.35355338
      %v1201 = vadd.f32 %v1200, %v400
      %v1202 = vsel %vm404, %v1201, -inf
      %1203 = vmax.xlane.f32.xlu0 %v1202
      %v1204 = vpop.xlane.xlu0 %1203
      %v1205 = vsub.f32 %v1201, %v1204
      %v1206 = vmul.f32 %v1205, 1.442695
      %v1207 = vpow.pop %v1206
      %v1208 = vsel %vm404, %v1207, 0.0
      %1209 = vadd.xlane.f32.xlu0 %v1208
      %v1210 = vpop.xlane.xlu0 %1209
      %v1211 = vrcp.pop %v1210
      %v1212 = vmul.f32 %v1207, %v1211
      %1213 = vrot.lane.b32.xlu0 %v392, 40
      %v1214 = vpop.permute.xlu0 %1213
      %v1217 = vsel %vm404, %v1212, 0
      %1219 = vmatprep.subr.mxu0 0.0
      %1220 = vmatpush1.msra.mxu0 %v1214
      %1221 = vmatprep.subr.mxu0 0.0
      %1222 = vmatpush1.msra.mxu0 0.0
      %1223 = vmatprep.subr.mxu0 0.0
      %1224 = vmatpush1.msra.mxu0 0.0
      %1225 = vmatprep.subr.mxu0 0.0
      %1226 = vmatpush1.msra.mxu0 0.0
      %1227 = vmatprep.subr.mxu0 0.0
      %1228 = vmatpush1.msra.mxu0 0.0
      %1229 = vmatprep.subr.mxu0 0.0
      %1230 = vmatpush1.msra.mxu0 0.0
      %1231 = vmatprep.subr.mxu0 0.0
      %1232 = vmatpush1.msra.mxu0 0.0
      %1233 = vmatprep.subr.mxu0 0.0
      %1234 = vmatpush1.msra.mxu0 0.0
      %1235 = vmatprep.subr.mxu0 0.0
      %1236 = vmatpush1.msra.mxu0 0.0
      %1237 = vmatprep.subr.mxu0 0.0
      %1238 = vmatpush1.msra.mxu0 0.0
      %1239 = vmatprep.subr.mxu0 0.0
      %1240 = vmatpush1.msra.mxu0 0.0
      %1241 = vmatprep.subr.mxu0 0.0
      %1242 = vmatpush1.msra.mxu0 0.0
      %1243 = vmatprep.subr.mxu0 0.0
      %1244 = vmatpush1.msra.mxu0 0.0
      %1245 = vmatprep.subr.mxu0 0.0
      %1246 = vmatpush1.msra.mxu0 0.0
      %1247 = vmatprep.subr.mxu0 0.0
      %1248 = vmatpush1.msra.mxu0 0.0
      %1249 = vmatprep.subr.mxu0 0.0
      %1250 = vmatpush1.msra.mxu0 0.0
      %1251 = vmatprep.subr.mxu0 0.0
      %1252 = vmatpush1.msra.mxu0 0.0
      %1253 = vmatprep.subr.mxu0 0.0
      %1254 = vmatpush1.msra.mxu0 0.0
      %1255 = vmatprep.subr.mxu0 0.0
      %1256 = vmatpush1.msra.mxu0 0.0
      %1257 = vmatprep.subr.mxu0 0.0
      %1258 = vmatpush1.msra.mxu0 0.0
      %1259 = vmatprep.subr.mxu0 0.0
      %1260 = vmatpush1.msra.mxu0 0.0
      %1261 = vmatprep.subr.mxu0 0.0
      %1262 = vmatpush1.msra.mxu0 0.0
      %1263 = vmatprep.subr.mxu0 0.0
      %1264 = vmatpush1.msra.mxu0 0.0
      %1265 = vmatprep.subr.mxu0 0.0
      %1266 = vmatpush1.msra.mxu0 0.0
      %1267 = vmatprep.subr.mxu0 0.0
      %1268 = vmatpush1.msra.mxu0 0.0
      %1269 = vmatprep.subr.mxu0 0.0
      %1270 = vmatpush1.msra.mxu0 0.0
      %1271 = vmatprep.subr.mxu0 0.0
      %1272 = vmatpush1.msra.mxu0 0.0
      %1273 = vmatprep.subr.mxu0 0.0
      %1274 = vmatpush1.msra.mxu0 0.0
      %1275 = vmatprep.subr.mxu0 0.0
      %1276 = vmatpush1.msra.mxu0 0.0
      %1277 = vmatprep.subr.mxu0 0.0
      %1278 = vmatpush1.msra.mxu0 0.0
      %1279 = vmatprep.subr.mxu0 0.0
      %1280 = vmatpush1.msra.mxu0 0.0
      %1281 = vmatprep.subr.mxu0 0.0
      %1282 = vmatpush1.msra.mxu0 0.0
      %1283 = vmatprep.mubr.f32.mxu0 0.0
      %1284 = vmatmul.mubr.f32.gmra.mrb[0].mxu0 %v1217
      %v1285 = vpop.f32.mrb[0].mxu0
      %v1286 = vadd.f32 0.0, %v1285
      %v1287 = vpop.f32.mrb[0].mxu0
      %1288 = vdwg.mxu0
      %v1290 = vsel %vm404, %v1286, 0
      %1292 = vmatprep.subr.mxu0 0.0
      %1293 = vmatpush1.msra.mxu0 %v285
      %1294 = vmatprep.subr.mxu0 0.0
      %1295 = vmatpush1.msra.mxu0 0.0
      %1296 = vmatprep.subr.mxu0 0.0
      %1297 = vmatpush1.msra.mxu0 0.0
      %1298 = vmatprep.subr.mxu0 0.0
      %1299 = vmatpush1.msra.mxu0 0.0
      %1300 = vmatprep.subr.mxu0 0.0
      %1301 = vmatpush1.msra.mxu0 0.0
      %1302 = vmatprep.subr.mxu0 0.0
      %1303 = vmatpush1.msra.mxu0 0.0
      %1304 = vmatprep.subr.mxu0 0.0
      %1305 = vmatpush1.msra.mxu0 0.0
      %1306 = vmatprep.subr.mxu0 0.0
      %1307 = vmatpush1.msra.mxu0 0.0
      %1308 = vmatprep.subr.mxu0 0.0
      %1309 = vmatpush1.msra.mxu0 0.0
      %1310 = vmatprep.subr.mxu0 0.0
      %1311 = vmatpush1.msra.mxu0 0.0
      %1312 = vmatprep.subr.mxu0 0.0
      %1313 = vmatpush1.msra.mxu0 0.0
      %1314 = vmatprep.subr.mxu0 0.0
      %1315 = vmatpush1.msra.mxu0 0.0
      %1316 = vmatprep.subr.mxu0 0.0
      %1317 = vmatpush1.msra.mxu0 0.0
      %1318 = vmatprep.subr.mxu0 0.0
      %1319 = vmatpush1.msra.mxu0 0.0
      %1320 = vmatprep.subr.mxu0 0.0
      %1321 = vmatpush1.msra.mxu0 0.0
      %1322 = vmatprep.subr.mxu0 0.0
      %1323 = vmatpush1.msra.mxu0 0.0
      %1324 = vmatprep.subr.mxu0 0.0
      %1325 = vmatpush1.msra.mxu0 0.0
      %1326 = vmatprep.subr.mxu0 0.0
      %1327 = vmatpush1.msra.mxu0 0.0
      %1328 = vmatprep.subr.mxu0 0.0
      %1329 = vmatpush1.msra.mxu0 0.0
      %1330 = vmatprep.subr.mxu0 0.0
      %1331 = vmatpush1.msra.mxu0 0.0
      %1332 = vmatprep.subr.mxu0 0.0
      %1333 = vmatpush1.msra.mxu0 0.0
      %1334 = vmatprep.subr.mxu0 0.0
      %1335 = vmatpush1.msra.mxu0 0.0
      %1336 = vmatprep.subr.mxu0 0.0
      %1337 = vmatpush1.msra.mxu0 0.0
      %1338 = vmatprep.subr.mxu0 0.0
      %1339 = vmatpush1.msra.mxu0 0.0
      %1340 = vmatprep.subr.mxu0 0.0
      %1341 = vmatpush1.msra.mxu0 0.0
      %1342 = vmatprep.subr.mxu0 0.0
      %1343 = vmatpush1.msra.mxu0 0.0
      %1344 = vmatprep.subr.mxu0 0.0
      %1345 = vmatpush1.msra.mxu0 0.0
      %1346 = vmatprep.subr.mxu0 0.0
      %1347 = vmatpush1.msra.mxu0 0.0
      %1348 = vmatprep.subr.mxu0 0.0
      %1349 = vmatpush1.msra.mxu0 0.0
      %1350 = vmatprep.subr.mxu0 0.0
      %1351 = vmatpush1.msra.mxu0 0.0
      %1352 = vmatprep.subr.mxu0 0.0
      %1353 = vmatpush1.msra.mxu0 0.0
      %1354 = vmatprep.subr.mxu0 0.0
      %1355 = vmatpush1.msra.mxu0 0.0
      %1356 = vmatprep.mubr.f32.mxu0 0.0
      %1357 = vmatmul.mubr.f32.gmra.mrb[0].mxu0 %v1290
      %v1358 = vpop.f32.mrb[0].mxu0
      %v1359 = vadd.f32 0.0, %v1358
      %v1360 = vpop.f32.mrb[0].mxu0
      %1361 = vdwg.mxu0
      %v1362 = vadd.f32 %v1121, %v1359
      %v1363 = vadd.f32 %v274, %v1362
      %v1365 = vlaneseq
      %v1366 = vshrl.u32 %v1365, 7
      %v1367 = vsub.s32 0, %v1366
      %v1368 = vrot.slane %v286, %v1367
      %v1370 = vadd.f32 %v1363, %v1368
      %1371 = vst.msk [vmem:[%s273] sm:$0xff] %vm287, %v1370
      %p1372 = scmp.lt.s32.totalorder %s18, 1
      %s1373 = scalar_select %p1372, %s18, 1
      %s1374 = smul.addr %s1373, 8
      %s1375 = scalar_lea.vmem %s7, %s1374
      // Predicated region
      $region49: #{transformer_decoder_forward.7} parent=47 // pred_check
        %p1376 = pneg %p188
      $region50: #{transformer_decoder_forward.7} parent=47 // pred_check_branch
        %1378 = sbr.rel (%p1376) target = $region52
      $region51: #{transformer_decoder_forward.7} parent=47 // pred_region
        _
      $region52: #{transformer_decoder_forward.7} parent=47 // pred_fallthru
        _
    $region48: #{transformer_decoder_forward.7} parent=5 // pred_fallthru
      _
    %p1379 = scmp.le.s32.totalorder 2, %s13
    // Predicated region
    $region53: #{transformer_decoder_forward.7} parent=5 // pred_check
      %p1380 = pneg %p1379
    $region54: #{transformer_decoder_forward.7} parent=5 // pred_check_branch
      %1382 = sbr.rel (%p1380) target = $region56
    $region55: #{transformer_decoder_forward.7} parent=5 // pred_region
      %s1383 = ssub.s32 %s13, 2
      // Predicated region
      $region57: #{transformer_decoder_forward.7} parent=55 // pred_check
        %p1384 = pneg %p194
      $region58: #{transformer_decoder_forward.7} parent=55 // pred_check_branch
        %1386 = sbr.rel (%p1384) target = $region60
      $region59: #{transformer_decoder_forward.7} parent=55 // pred_region
        %p1387 = scmp.lt.s32.totalorder %s19, 1
        %s1388 = scalar_select %p1387, %s19, 1
        %s1389 = smul.addr %s1388, 8
        %s1390 = scalar_lea.vmem %s7, %s1389
      $region60: #{transformer_decoder_forward.7} parent=55 // pred_fallthru
        _
    $region56: #{transformer_decoder_forward.7} parent=5 // pred_fallthru
      _
  $region6: #{transformer_decoder_forward.7} parent=0 // loop_footer
    %s17 = sadd.s32 1, %s13
  $region7: #{transformer_decoder_forward.7} parent=0 // loop_footer_branch
    %12 = sbr.rel target = $region3
  $region8: #{transformer_decoder_forward.7} parent=0 // loop_exit
    _

// kernel: transformer_decoder_forward.8
$region0: #{transformer_decoder_forward.8}
  #allocation0 [shape = 'u32[]', space=smem, size = 0x4, offset = 0x4, fixed_abs, tag = 'smem constant byte address 0x4 - core index']
  #allocation1 [shape = 'u32[144,128]{1,0:T(1,128)}', space=vmem, size = 0x12000, scoped, tag = 'internal scratch']
  %s0 = inlined_call_operand.vmem [shape: f32[2,8,32], index: 0, kind: input, shape index: {}]
  %s1 = inlined_call_operand.vmem [shape: f32[2,8,32], index: 1, kind: input, shape index: {}]
  %s2 = inlined_call_operand.vmem [shape: f32[1,32], index: 2, kind: input, shape index: {}]
  %s3 = inlined_call_operand.vmem [shape: f32[1,32], index: 3, kind: input, shape index: {}]
  %s4 = inlined_call_operand.vmem [shape: f32[32,96], index: 4, kind: input, shape index: {}]
  %s5 = inlined_call_operand.vmem [shape: f32[1,96], index: 5, kind: input, shape index: {}]
  %s6 = inlined_call_operand.vmem [shape: f32[32,32], index: 6, kind: input, shape index: {}]
  %s7 = inlined_call_operand.vmem [shape: f32[1,32], index: 7, kind: input, shape index: {}]
  %s8 = inlined_call_operand.vmem [shape: f32[2,8,32], index: 8, kind: output, shape index: {}]
  %s9 = sld [smem:[#allocation0]]
  $region65: #{transformer_decoder_forward.8} parent=0
    _
  %s11 = ssub.s32 1, %s9
  %s12 = scalar_select 0, %s11, %s9
  loop: start=0, step=1, limit=4
  $region2: #{transformer_decoder_forward.8} parent=0 // loop_pre_header
    _
  $region3: #{transformer_decoder_forward.8} parent=0 // loop_header
    %s14 = sphi 0, %s18
    %p15 = scmp.ge.s32.totalorder %s14, 4
    %s24 = sphi 0, %s26
    %s27 = sphi 0, %s24
    %s28 = sphi 0, %s27
    %s44 = sphi 0, %s28
    %s50 = sphi 0, %s52
    %s53 = sphi 0, %s50
    %s54 = sphi 0, %s53
    %s70 = sphi 0, %s54
    %s74 = sphi 0, %s74
    %s76 = sphi 0, %s74
    %s77 = sphi 0, %s76
    %s91 = sphi 0, %s77
    %s95 = sphi 0, %s95
    %s97 = sphi 0, %s95
    %s98 = sphi 0, %s97
    %s112 = sphi 0, %s98
    %s116 = sphi 0, %s116
    %s118 = sphi 0, %s116
    %s119 = sphi 0, %s118
    %s133 = sphi 0, %s119
    %s137 = sphi 0, %s137
    %s139 = sphi 0, %s137
    %s140 = sphi 0, %s139
    %s154 = sphi 0, %s140
    %s158 = sphi 0, %s158
    %s160 = sphi 0, %s158
    %s161 = sphi 0, %s160
    %s175 = sphi 0, %s161
    %s179 = sphi 0, %s179
    %s181 = sphi 0, %s179
    %s182 = sphi 0, %s181
    %s196 = sphi 0, %s182
    %s202 = sphi 0, %s204
    %s205 = sphi 0, %s202
    %s206 = sphi 0, %s205
    %s222 = sphi 0, %s206
  $region4: #{transformer_decoder_forward.8} parent=0 // loop_header_branch
    %17 = sbr.rel (%p15) target = $region8
  $region5: #{transformer_decoder_forward.8} parent=0 // loop_body
    %s19 = ssub.s32 %s14, 1
    %s20 = ssub.s32 %s14, 2
    %s21 = sadd.s32 %s14, 1
    %s22 = ssub.s32 %s14, %s21
    %p23 = scmp.eq.s32.totalorder %s22, 0
    %s25 = sadd.s32 %s24, 1
    %s26 = scalar_select %p23, %s24, %s25
    %p29 = pneg %p23
    %p30 = scmp.eq.s32.totalorder %s14, 1
    %p31 = por %p29, %p30
    %p32 = scmp.ne.s32.totalorder %s24, %s27
    %p33 = scmp.eq.s32.totalorder %s14, 0
    %p34 = por %p32, %p33
    %p35 = scmp.ne.s32.totalorder %s24, %s27
    %p36 = scmp.eq.s32.totalorder %s19, 1
    %p37 = por %p35, %p36
    %p38 = scmp.ne.s32.totalorder %s27, %s28
    %p39 = scmp.eq.s32.totalorder %s19, 0
    %p40 = por %p38, %p39
    %p41 = scmp.ne.s32.totalorder %s27, %s28
    %p42 = scmp.eq.s32.totalorder %s20, 1
    %p43 = por %p41, %p42
    %p45 = scmp.ne.s32.totalorder %s28, %s44
    %p46 = scmp.eq.s32.totalorder %s20, 0
    %p47 = por %p45, %p46
    %s48 = ssub.s32 %s14, %s21
    %p49 = scmp.eq.s32.totalorder %s48, 0
    %s51 = sadd.s32 %s50, 1
    %s52 = scalar_select %p49, %s50, %s51
    %p55 = pneg %p49
    %p56 = scmp.eq.s32.totalorder %s14, 1
    %p57 = por %p55, %p56
    %p58 = scmp.ne.s32.totalorder %s50, %s53
    %p59 = scmp.eq.s32.totalorder %s14, 0
    %p60 = por %p58, %p59
    %p61 = scmp.ne.s32.totalorder %s50, %s53
    %p62 = scmp.eq.s32.totalorder %s19, 1
    %p63 = por %p61, %p62
    %p64 = scmp.ne.s32.totalorder %s53, %s54
    %p65 = scmp.eq.s32.totalorder %s19, 0
    %p66 = por %p64, %p65
    %p67 = scmp.ne.s32.totalorder %s53, %s54
    %p68 = scmp.eq.s32.totalorder %s20, 1
    %p69 = por %p67, %p68
    %p71 = scmp.ne.s32.totalorder %s54, %s70
    %p72 = scmp.eq.s32.totalorder %s20, 0
    %p73 = por %p71, %p72
    %s75 = sadd.s32 %s74, 1
    %p78 = scmp.eq.s32.totalorder %s14, 1
    %p79 = scmp.ne.s32.totalorder %s74, %s76
    %p80 = scmp.eq.s32.totalorder %s14, 0
    %p81 = por %p79, %p80
    %p82 = scmp.ne.s32.totalorder %s74, %s76
    %p83 = scmp.eq.s32.totalorder %s19, 1
    %p84 = por %p82, %p83
    %p85 = scmp.ne.s32.totalorder %s76, %s77
    %p86 = scmp.eq.s32.totalorder %s19, 0
    %p87 = por %p85, %p86
    %p88 = scmp.ne.s32.totalorder %s76, %s77
    %p89 = scmp.eq.s32.totalorder %s20, 1
    %p90 = por %p88, %p89
    %p92 = scmp.ne.s32.totalorder %s77, %s91
    %p93 = scmp.eq.s32.totalorder %s20, 0
    %p94 = por %p92, %p93
    %s96 = sadd.s32 %s95, 1
    %p99 = scmp.eq.s32.totalorder %s14, 1
    %p100 = scmp.ne.s32.totalorder %s95, %s97
    %p101 = scmp.eq.s32.totalorder %s14, 0
    %p102 = por %p100, %p101
    %p103 = scmp.ne.s32.totalorder %s95, %s97
    %p104 = scmp.eq.s32.totalorder %s19, 1
    %p105 = por %p103, %p104
    %p106 = scmp.ne.s32.totalorder %s97, %s98
    %p107 = scmp.eq.s32.totalorder %s19, 0
    %p108 = por %p106, %p107
    %p109 = scmp.ne.s32.totalorder %s97, %s98
    %p110 = scmp.eq.s32.totalorder %s20, 1
    %p111 = por %p109, %p110
    %p113 = scmp.ne.s32.totalorder %s98, %s112
    %p114 = scmp.eq.s32.totalorder %s20, 0
    %p115 = por %p113, %p114
    %s117 = sadd.s32 %s116, 1
    %p120 = scmp.eq.s32.totalorder %s14, 1
    %p121 = scmp.ne.s32.totalorder %s116, %s118
    %p122 = scmp.eq.s32.totalorder %s14, 0
    %p123 = por %p121, %p122
    %p124 = scmp.ne.s32.totalorder %s116, %s118
    %p125 = scmp.eq.s32.totalorder %s19, 1
    %p126 = por %p124, %p125
    %p127 = scmp.ne.s32.totalorder %s118, %s119
    %p128 = scmp.eq.s32.totalorder %s19, 0
    %p129 = por %p127, %p128
    %p130 = scmp.ne.s32.totalorder %s118, %s119
    %p131 = scmp.eq.s32.totalorder %s20, 1
    %p132 = por %p130, %p131
    %p134 = scmp.ne.s32.totalorder %s119, %s133
    %p135 = scmp.eq.s32.totalorder %s20, 0
    %p136 = por %p134, %p135
    %s138 = sadd.s32 %s137, 1
    %p141 = scmp.eq.s32.totalorder %s14, 1
    %p142 = scmp.ne.s32.totalorder %s137, %s139
    %p143 = scmp.eq.s32.totalorder %s14, 0
    %p144 = por %p142, %p143
    %p145 = scmp.ne.s32.totalorder %s137, %s139
    %p146 = scmp.eq.s32.totalorder %s19, 1
    %p147 = por %p145, %p146
    %p148 = scmp.ne.s32.totalorder %s139, %s140
    %p149 = scmp.eq.s32.totalorder %s19, 0
    %p150 = por %p148, %p149
    %p151 = scmp.ne.s32.totalorder %s139, %s140
    %p152 = scmp.eq.s32.totalorder %s20, 1
    %p153 = por %p151, %p152
    %p155 = scmp.ne.s32.totalorder %s140, %s154
    %p156 = scmp.eq.s32.totalorder %s20, 0
    %p157 = por %p155, %p156
    %s159 = sadd.s32 %s158, 1
    %p162 = scmp.eq.s32.totalorder %s14, 1
    %p163 = scmp.ne.s32.totalorder %s158, %s160
    %p164 = scmp.eq.s32.totalorder %s14, 0
    %p165 = por %p163, %p164
    %p166 = scmp.ne.s32.totalorder %s158, %s160
    %p167 = scmp.eq.s32.totalorder %s19, 1
    %p168 = por %p166, %p167
    %p169 = scmp.ne.s32.totalorder %s160, %s161
    %p170 = scmp.eq.s32.totalorder %s19, 0
    %p171 = por %p169, %p170
    %p172 = scmp.ne.s32.totalorder %s160, %s161
    %p173 = scmp.eq.s32.totalorder %s20, 1
    %p174 = por %p172, %p173
    %p176 = scmp.ne.s32.totalorder %s161, %s175
    %p177 = scmp.eq.s32.totalorder %s20, 0
    %p178 = por %p176, %p177
    %s180 = sadd.s32 %s179, 1
    %p183 = scmp.eq.s32.totalorder %s14, 1
    %p184 = scmp.ne.s32.totalorder %s179, %s181
    %p185 = scmp.eq.s32.totalorder %s14, 0
    %p186 = por %p184, %p185
    %p187 = scmp.ne.s32.totalorder %s179, %s181
    %p188 = scmp.eq.s32.totalorder %s19, 1
    %p189 = por %p187, %p188
    %p190 = scmp.ne.s32.totalorder %s181, %s182
    %p191 = scmp.eq.s32.totalorder %s19, 0
    %p192 = por %p190, %p191
    %p193 = scmp.ne.s32.totalorder %s181, %s182
    %p194 = scmp.eq.s32.totalorder %s20, 1
    %p195 = por %p193, %p194
    %p197 = scmp.ne.s32.totalorder %s182, %s196
    %p198 = scmp.eq.s32.totalorder %s20, 0
    %p199 = por %p197, %p198
    %s200 = ssub.s32 %s14, %s21
    %p201 = scmp.eq.s32.totalorder %s200, 0
    %s203 = sadd.s32 %s202, 1
    %s204 = scalar_select %p201, %s202, %s203
    %p207 = pneg %p201
    %p208 = scmp.eq.s32.totalorder %s14, 1
    %p209 = por %p207, %p208
    %p210 = scmp.ne.s32.totalorder %s202, %s205
    %p211 = scmp.eq.s32.totalorder %s14, 0
    %p212 = por %p210, %p211
    %p213 = scmp.ne.s32.totalorder %s202, %s205
    %p214 = scmp.eq.s32.totalorder %s19, 1
    %p215 = por %p213, %p214
    %p216 = scmp.ne.s32.totalorder %s205, %s206
    %p217 = scmp.eq.s32.totalorder %s19, 0
    %p218 = por %p216, %p217
    %p219 = scmp.ne.s32.totalorder %s205, %s206
    %p220 = scmp.eq.s32.totalorder %s20, 1
    %p221 = por %p219, %p220
    %p223 = scmp.ne.s32.totalorder %s206, %s222
    %p224 = scmp.eq.s32.totalorder %s20, 0
    %p225 = por %p223, %p224
    %p226 = scmp.le.s32.totalorder 1, %s14
    %p227 = scmp.lt.s32.totalorder %s14, 3
    %p228 = pnand %p226, %p227
    %p229 = pneg %p228
    // Predicated region
    $region9: #{transformer_decoder_forward.8} parent=5 // pred_check
      _
    $region10: #{transformer_decoder_forward.8} parent=5 // pred_check_branch
      %231 = sbr.rel (%p228) target = $region12
    $region11: #{transformer_decoder_forward.8} parent=5 // pred_region
      %s232 = ssub.s32 %s14, 1
      // Predicated region
      $region13: #{transformer_decoder_forward.8} parent=11 // pred_check
        %p233 = pneg %p87
      $region14: #{transformer_decoder_forward.8} parent=11 // pred_check_branch
        %235 = sbr.rel (%p233) target = $region16
      $region15: #{transformer_decoder_forward.8} parent=11 // pred_region
        _
      $region16: #{transformer_decoder_forward.8} parent=11 // pred_fallthru
        _
      // Predicated region
      $region17: #{transformer_decoder_forward.8} parent=11 // pred_check
        %p236 = pneg %p108
      $region18: #{transformer_decoder_forward.8} parent=11 // pred_check_branch
        %238 = sbr.rel (%p236) target = $region20
      $region19: #{transformer_decoder_forward.8} parent=11 // pred_region
        _
      $region20: #{transformer_decoder_forward.8} parent=11 // pred_fallthru
        _
      // Predicated region
      $region21: #{transformer_decoder_forward.8} parent=11 // pred_check
        %p239 = pneg %p129
      $region22: #{transformer_decoder_forward.8} parent=11 // pred_check_branch
        %241 = sbr.rel (%p239) target = $region24
      $region23: #{transformer_decoder_forward.8} parent=11 // pred_region
        _
      $region24: #{transformer_decoder_forward.8} parent=11 // pred_fallthru
        _
      // Predicated region
      $region25: #{transformer_decoder_forward.8} parent=11 // pred_check
        %p242 = pneg %p150
      $region26: #{transformer_decoder_forward.8} parent=11 // pred_check_branch
        %244 = sbr.rel (%p242) target = $region28
      $region27: #{transformer_decoder_forward.8} parent=11 // pred_region
        _
      $region28: #{transformer_decoder_forward.8} parent=11 // pred_fallthru
        _
      // Predicated region
      $region29: #{transformer_decoder_forward.8} parent=11 // pred_check
        %p245 = pneg %p171
      $region30: #{transformer_decoder_forward.8} parent=11 // pred_check_branch
        %247 = sbr.rel (%p245) target = $region32
      $region31: #{transformer_decoder_forward.8} parent=11 // pred_region
        _
      $region32: #{transformer_decoder_forward.8} parent=11 // pred_fallthru
        _
      // Predicated region
      $region33: #{transformer_decoder_forward.8} parent=11 // pred_check
        %p248 = pneg %p192
      $region34: #{transformer_decoder_forward.8} parent=11 // pred_check_branch
        %250 = sbr.rel (%p248) target = $region36
      $region35: #{transformer_decoder_forward.8} parent=11 // pred_region
        _
      $region36: #{transformer_decoder_forward.8} parent=11 // pred_fallthru
        _
    $region12: #{transformer_decoder_forward.8} parent=5 // pred_fallthru
      _
    %p251 = scmp.lt.s32.totalorder %s14, 2
    // Predicated region
    $region37: #{transformer_decoder_forward.8} parent=5 // pred_check
      %p252 = pneg %p251
    $region38: #{transformer_decoder_forward.8} parent=5 // pred_check_branch
      %254 = sbr.rel (%p252) target = $region40
    $region39: #{transformer_decoder_forward.8} parent=5 // pred_region
      // Predicated region
      $region41: #{transformer_decoder_forward.8} parent=39 // pred_check
        %p255 = pneg %p34
      $region42: #{transformer_decoder_forward.8} parent=39 // pred_check_branch
        %257 = sbr.rel (%p255) target = $region44
      $region43: #{transformer_decoder_forward.8} parent=39 // pred_region
        %p258 = scmp.lt.s32.totalorder %s14, 1
        %s259 = scalar_select %p258, %s14, 1
        %s260 = smul.addr %s259, 8
        %s261 = scalar_lea.vmem %s0, %s260
      $region44: #{transformer_decoder_forward.8} parent=39 // pred_fallthru
        _
      // Predicated region
      $region45: #{transformer_decoder_forward.8} parent=39 // pred_check
        %p262 = pneg %p60
      $region46: #{transformer_decoder_forward.8} parent=39 // pred_check_branch
        %264 = sbr.rel (%p262) target = $region48
      $region47: #{transformer_decoder_forward.8} parent=39 // pred_region
        %p265 = scmp.lt.s32.totalorder %s14, 1
        %s266 = scalar_select %p265, %s14, 1
        %s267 = smul.addr %s266, 8
        %s268 = scalar_lea.vmem %s1, %s267
      $region48: #{transformer_decoder_forward.8} parent=39 // pred_fallthru
        _
    $region40: #{transformer_decoder_forward.8} parent=5 // pred_fallthru
      _
    %p269 = scmp.le.s32.totalorder 1, %s14
    %p270 = scmp.lt.s32.totalorder %s14, 3
    %p271 = pnand %p269, %p270
    %p272 = pneg %p271
    // Predicated region
    $region49: #{transformer_decoder_forward.8} parent=5 // pred_check
      _
    $region50: #{transformer_decoder_forward.8} parent=5 // pred_check_branch
      %274 = sbr.rel (%p271) target = $region52
    $region51: #{transformer_decoder_forward.8} parent=5 // pred_region
      %s275 = ssub.s32 %s14, 1
      %p276 = scmp.lt.s32.totalorder %s19, 1
      %s277 = scalar_select %p276, %s19, 1
      %s278 = smul.addr %s277, 8
      %s279 = scalar_lea.vmem %s0, %s278
      %p280 = pneg %p40
      %p281 = pneg %p37
      %p282 = scmp.lt.s32.totalorder %s19, 1
      %s283 = scalar_select %p282, %s19, 1
      %s284 = smul.addr %s283, 8
      %s285 = scalar_lea.vmem %s1, %s284
      %p286 = pneg %p66
      %p287 = pneg %p63
      %p288 = pneg %p87
      %p289 = pneg %p84
      %p290 = pneg %p108
      %p291 = pneg %p105
      %p292 = pneg %p129
      %p293 = pneg %p126
      %p294 = pneg %p150
      %p295 = pneg %p147
      %p296 = pneg %p171
      %p297 = pneg %p168
      %p298 = pneg %p192
      %p299 = pneg %p189
      %p300 = pneg %p218
      %p301 = pneg %p215
      %p302 = scmp.lt.s32.totalorder %s19, 1
      %s303 = scalar_select %p302, %s19, 1
      %s304 = smul.addr %s303, 8
      %s305 = scalar_lea.vmem %s8, %s304
      %p306 = scmp.lt.s32.totalorder %s19, 1
      %s307 = scalar_select %p306, %s19, 1
      %s308 = smul.addr %s307, 8
      %s309 = scalar_lea.vmem %s0, %s308
      %p310 = scmp.lt.s32.totalorder %s19, 1
      %s311 = scalar_select %p310, %s19, 1
      %s312 = smul.addr %s311, 8
      %s313 = scalar_lea.vmem %s1, %s312
      %p314 = scmp.lt.s32.totalorder %s19, 1
      %s315 = scalar_select %p314, %s19, 1
      %s316 = smul.addr %s315, 8
      %s317 = scalar_lea.vmem %s8, %s316
      %v318 = vld [vmem:[%s309] sm:$0xff]
      %v319 = vld [vmem:[%s313] sm:$0xff]
      %v320 = vld [vmem:[%s2] sm:$0x1]
      %v321 = vld [vmem:[%s3] sm:$0x1]
      %v322 = vld [vmem:[%s4] sm:$0xff]
      %v323 = vld [vmem:[%s4 + $0x8] sm:$0xff]
      %v324 = vld [vmem:[%s4 + $0x10] sm:$0xff]
      %v325 = vld [vmem:[%s4 + $0x18] sm:$0xff]
      %v326 = vld [vmem:[%s5] sm:$0x1]
      %v327 = vld [vmem:[%s6] sm:$0xff]
      %v328 = vld [vmem:[%s6 + $0x8] sm:$0xff]
      %v329 = vld [vmem:[%s6 + $0x10] sm:$0xff]
      %v330 = vld [vmem:[%s6 + $0x18] sm:$0xff]
      %v331 = vld [vmem:[%s7] sm:$0x1]
      %vm332 = vcmask 261120
      %v333 = vsel %vm332, %v318, 0.0
      %334 = vadd.xlane.f32.xlu0 %v333
      %v335 = vpop.xlane.xlu0 %334
      %v336 = vrcp.pop 32.0
      %v337 = vmul.f32 %v335, %v336
      %v338 = vsub.f32 %v318, %v337
      %v339 = vmul.f32 %v338, %v338
      %v340 = vsel %vm332, %v339, 0.0
      %341 = vadd.xlane.f32.xlu0 %v340
      %v342 = vpop.xlane.xlu0 %341
      %v343 = vmul.f32 %v342, %v336
      %v344 = vadd.f32 %v343, 1e-05
      %v345 = vrsqrt.pop %v344
      %v346 = vmul.f32 %v338, %v345
      %v348 = vlaneseq
      %v349 = vshrl.u32 %v348, 7
      %v350 = vsub.s32 0, %v349
      %v351 = vrot.slane %v320, %v350
      %v353 = vmul.f32 %v346, %v351
      %v355 = vlaneseq
      %v356 = vshrl.u32 %v355, 7
      %v357 = vsub.s32 0, %v356
      %v358 = vrot.slane %v321, %v357
      %v360 = vadd.f32 %v353, %v358
      %v362 = vlaneseq
      %v363 = vshrl.u32 %v362, 7
      %v364 = vsub.s32 0, %v363
      %v365 = vrot.slane %v326, %v364
      %v368 = vsel %vm332, %v360, 0
      %370 = vmatprep.subr.mxu0 0.0
      %371 = vmatpush1.msra.mxu0 %v322
      %372 = vmatprep.subr.mxu0 0.0
      %373 = vmatpush1.msra.mxu0 %v323
      %374 = vmatprep.subr.mxu0 0.0
      %375 = vmatpush1.msra.mxu0 %v324
      %376 = vmatprep.subr.mxu0 0.0
      %377 = vmatpush1.msra.mxu0 %v325
      %378 = vmatprep.subr.mxu0 0.0
      %379 = vmatpush1.msra.mxu0 0.0
      %380 = vmatprep.subr.mxu0 0.0
      %381 = vmatpush1.msra.mxu0 0.0
      %382 = vmatprep.subr.mxu0 0.0
      %383 = vmatpush1.msra.mxu0 0.0
      %384 = vmatprep.subr.mxu0 0.0
      %385 = vmatpush1.msra.mxu0 0.0
      %386 = vmatprep.subr.mxu0 0.0
      %387 = vmatpush1.msra.mxu0 0.0
      %388 = vmatprep.subr.mxu0 0.0
      %389 = vmatpush1.msra.mxu0 0.0
      %390 = vmatprep.subr.mxu0 0.0
      %391 = vmatpush1.msra.mxu0 0.0
      %392 = vmatprep.subr.mxu0 0.0
      %393 = vmatpush1.msra.mxu0 0.0
      %394 = vmatprep.subr.mxu0 0.0
      %395 = vmatpush1.msra.mxu0 0.0
      %396 = vmatprep.subr.mxu0 0.0
      %397 = vmatpush1.msra.mxu0 0.0
      %398 = vmatprep.subr.mxu0 0.0
      %399 = vmatpush1.msra.mxu0 0.0
      %400 = vmatprep.subr.mxu0 0.0
      %401 = vmatpush1.msra.mxu0 0.0
      %402 = vmatprep.subr.mxu0 0.0
      %403 = vmatpush1.msra.mxu0 0.0
      %404 = vmatprep.subr.mxu0 0.0
      %405 = vmatpush1.msra.mxu0 0.0
      %406 = vmatprep.subr.mxu0 0.0
      %407 = vmatpush1.msra.mxu0 0.0
      %408 = vmatprep.subr.mxu0 0.0
      %409 = vmatpush1.msra.mxu0 0.0
      %410 = vmatprep.subr.mxu0 0.0
      %411 = vmatpush1.msra.mxu0 0.0
      %412 = vmatprep.subr.mxu0 0.0
      %413 = vmatpush1.msra.mxu0 0.0
      %414 = vmatprep.subr.mxu0 0.0
      %415 = vmatpush1.msra.mxu0 0.0
      %416 = vmatprep.subr.mxu0 0.0
      %417 = vmatpush1.msra.mxu0 0.0
      %418 = vmatprep.subr.mxu0 0.0
      %419 = vmatpush1.msra.mxu0 0.0
      %420 = vmatprep.subr.mxu0 0.0
      %421 = vmatpush1.msra.mxu0 0.0
      %422 = vmatprep.subr.mxu0 0.0
      %423 = vmatpush1.msra.mxu0 0.0
      %424 = vmatprep.subr.mxu0 0.0
      %425 = vmatpush1.msra.mxu0 0.0
      %426 = vmatprep.subr.mxu0 0.0
      %427 = vmatpush1.msra.mxu0 0.0
      %428 = vmatprep.subr.mxu0 0.0
      %429 = vmatpush1.msra.mxu0 0.0
      %430 = vmatprep.subr.mxu0 0.0
      %431 = vmatpush1.msra.mxu0 0.0
      %432 = vmatprep.subr.mxu0 0.0
      %433 = vmatpush1.msra.mxu0 0.0
      %434 = vmatprep.mubr.f32.mxu0 0.0
      %435 = vmatmul.mubr.f32.gmra.mrb[0].mxu0 %v368
      %v436 = vpop.f32.mrb[0].mxu0
      %v437 = vadd.f32 %v365, %v436
      %v438 = vpop.f32.mrb[0].mxu0
      %439 = vdwg.mxu0
      %444 = vrot.lane.b32.xlu0 %v322, 96
      %v445 = vpop.permute.xlu0 %444
      %446 = vrot.lane.b32.xlu0 %v323, 96
      %v447 = vpop.permute.xlu0 %446
      %448 = vrot.lane.b32.xlu0 %v324, 96
      %v449 = vpop.permute.xlu0 %448
      %450 = vrot.lane.b32.xlu0 %v325, 96
      %v451 = vpop.permute.xlu0 %450
      %456 = vrot.lane.b32.xlu0 %v365, 96
      %v457 = vpop.permute.xlu0 %456
      %v460 = vsel %vm332, %v319, 0
      %462 = vmatprep.subr.mxu0 0.0
      %463 = vmatpush1.msra.mxu0 %v445
      %464 = vmatprep.subr.mxu0 0.0
      %465 = vmatpush1.msra.mxu0 %v447
      %466 = vmatprep.subr.mxu0 0.0
      %467 = vmatpush1.msra.mxu0 %v449
      %468 = vmatprep.subr.mxu0 0.0
      %469 = vmatpush1.msra.mxu0 %v451
      %470 = vmatprep.subr.mxu0 0.0
      %471 = vmatpush1.msra.mxu0 0.0
      %472 = vmatprep.subr.mxu0 0.0
      %473 = vmatpush1.msra.mxu0 0.0
      %474 = vmatprep.subr.mxu0 0.0
      %475 = vmatpush1.msra.mxu0 0.0
      %476 = vmatprep.subr.mxu0 0.0
      %477 = vmatpush1.msra.mxu0 0.0
      %478 = vmatprep.subr.mxu0 0.0
      %479 = vmatpush1.msra.mxu0 0.0
      %480 = vmatprep.subr.mxu0 0.0
      %481 = vmatpush1.msra.mxu0 0.0
      %482 = vmatprep.subr.mxu0 0.0
      %483 = vmatpush1.msra.mxu0 0.0
      %484 = vmatprep.subr.mxu0 0.0
      %485 = vmatpush1.msra.mxu0 0.0
      %486 = vmatprep.subr.mxu0 0.0
      %487 = vmatpush1.msra.mxu0 0.0
      %488 = vmatprep.subr.mxu0 0.0
      %489 = vmatpush1.msra.mxu0 0.0
      %490 = vmatprep.subr.mxu0 0.0
      %491 = vmatpush1.msra.mxu0 0.0
      %492 = vmatprep.subr.mxu0 0.0
      %493 = vmatpush1.msra.mxu0 0.0
      %494 = vmatprep.subr.mxu0 0.0
      %495 = vmatpush1.msra.mxu0 0.0
      %496 = vmatprep.subr.mxu0 0.0
      %497 = vmatpush1.msra.mxu0 0.0
      %498 = vmatprep.subr.mxu0 0.0
      %499 = vmatpush1.msra.mxu0 0.0
      %500 = vmatprep.subr.mxu0 0.0
      %501 = vmatpush1.msra.mxu0 0.0
      %502 = vmatprep.subr.mxu0 0.0
      %503 = vmatpush1.msra.mxu0 0.0
      %504 = vmatprep.subr.mxu0 0.0
      %505 = vmatpush1.msra.mxu0 0.0
      %506 = vmatprep.subr.mxu0 0.0
      %507 = vmatpush1.msra.mxu0 0.0
      %508 = vmatprep.subr.mxu0 0.0
      %509 = vmatpush1.msra.mxu0 0.0
      %510 = vmatprep.subr.mxu0 0.0
      %511 = vmatpush1.msra.mxu0 0.0
      %512 = vmatprep.subr.mxu0 0.0
      %513 = vmatpush1.msra.mxu0 0.0
      %514 = vmatprep.subr.mxu0 0.0
      %515 = vmatpush1.msra.mxu0 0.0
      %516 = vmatprep.subr.mxu0 0.0
      %517 = vmatpush1.msra.mxu0 0.0
      %518 = vmatprep.subr.mxu0 0.0
      %519 = vmatpush1.msra.mxu0 0.0
      %520 = vmatprep.subr.mxu0 0.0
      %521 = vmatpush1.msra.mxu0 0.0
      %522 = vmatprep.subr.mxu0 0.0
      %523 = vmatpush1.msra.mxu0 0.0
      %524 = vmatprep.subr.mxu0 0.0
      %525 = vmatpush1.msra.mxu0 0.0
      %526 = vmatprep.mubr.f32.mxu0 0.0
      %527 = vmatmul.mubr.f32.gmra.mrb[0].mxu0 %v460
      %v528 = vpop.f32.mrb[0].mxu0
      %v529 = vadd.f32 %v457, %v528
      %v530 = vpop.f32.mrb[0].mxu0
      %531 = vdwg.mxu0
      %vm532 = vcmask 64512
      %v534 = vsel %vm532, %v437, 0
      %v537 = vsel %vm532, %v529, 0
      %539 = vmatprep.subr.mxu0 0.0
      %540 = vmatpush1.xpose.msra.mxu0 %v537
      %541 = vmatprep.subr.mxu0 0.0
      %542 = vmatpush1.xpose.msra.mxu0 0.0
      %543 = vmatprep.subr.mxu0 0.0
      %544 = vmatpush1.xpose.msra.mxu0 0.0
      %545 = vmatprep.subr.mxu0 0.0
      %546 = vmatpush1.xpose.msra.mxu0 0.0
      %547 = vmatprep.subr.mxu0 0.0
      %548 = vmatpush1.xpose.msra.mxu0 0.0
      %549 = vmatprep.subr.mxu0 0.0
      %550 = vmatpush1.xpose.msra.mxu0 0.0
      %551 = vmatprep.subr.mxu0 0.0
      %552 = vmatpush1.xpose.msra.mxu0 0.0
      %553 = vmatprep.subr.mxu0 0.0
      %554 = vmatpush1.xpose.msra.mxu0 0.0
      %555 = vmatprep.subr.mxu0 0.0
      %556 = vmatpush1.xpose.msra.mxu0 0.0
      %557 = vmatprep.subr.mxu0 0.0
      %558 = vmatpush1.xpose.msra.mxu0 0.0
      %559 = vmatprep.subr.mxu0 0.0
      %560 = vmatpush1.xpose.msra.mxu0 0.0
      %561 = vmatprep.subr.mxu0 0.0
      %562 = vmatpush1.xpose.msra.mxu0 0.0
      %563 = vmatprep.subr.mxu0 0.0
      %564 = vmatpush1.xpose.msra.mxu0 0.0
      %565 = vmatprep.subr.mxu0 0.0
      %566 = vmatpush1.xpose.msra.mxu0 0.0
      %567 = vmatprep.subr.mxu0 0.0
      %568 = vmatpush1.xpose.msra.mxu0 0.0
      %569 = vmatprep.subr.mxu0 0.0
      %570 = vmatpush1.xpose.msra.mxu0 0.0
      %571 = vmatprep.subr.mxu0 0.0
      %572 = vmatpush1.xpose.msra.mxu0 0.0
      %573 = vmatprep.subr.mxu0 0.0
      %574 = vmatpush1.xpose.msra.mxu0 0.0
      %575 = vmatprep.subr.mxu0 0.0
      %576 = vmatpush1.xpose.msra.mxu0 0.0
      %577 = vmatprep.subr.mxu0 0.0
      %578 = vmatpush1.xpose.msra.mxu0 0.0
      %579 = vmatprep.subr.mxu0 0.0
      %580 = vmatpush1.xpose.msra.mxu0 0.0
      %581 = vmatprep.subr.mxu0 0.0
      %582 = vmatpush1.xpose.msra.mxu0 0.0
      %583 = vmatprep.subr.mxu0 0.0
      %584 = vmatpush1.xpose.msra.mxu0 0.0
      %585 = vmatprep.subr.mxu0 0.0
      %586 = vmatpush1.xpose.msra.mxu0 0.0
      %587 = vmatprep.subr.mxu0 0.0
      %588 = vmatpush1.xpose.msra.mxu0 0.0
      %589 = vmatprep.subr.mxu0 0.0
      %590 = vmatpush1.xpose.msra.mxu0 0.0
      %591 = vmatprep.subr.mxu0 0.0
      %592 = vmatpush1.xpose.msra.mxu0 0.0
      %593 = vmatprep.subr.mxu0 0.0
      %594 = vmatpush1.xpose.msra.mxu0 0.0
      %595 = vmatprep.subr.mxu0 0.0
      %596 = vmatpush1.xpose.msra.mxu0 0.0
      %597 = vmatprep.subr.mxu0 0.0
      %598 = vmatpush1.xpose.msra.mxu0 0.0
      %599 = vmatprep.subr.mxu0 0.0
      %600 = vmatpush1.xpose.msra.mxu0 0.0
      %601 = vmatprep.subr.mxu0 0.0
      %602 = vmatpush1.xpose.msra.mxu0 0.0
      %603 = vmatprep.mubr.f32.mxu0 0.0
      %604 = vmatmul.mubr.f32.gmra.mrb[0].mxu0 %v534
      %v605 = vpop.f32.mrb[0].mxu0
      %v606 = vadd.f32 0.0, %v605
      %v607 = vpop.f32.mrb[0].mxu0
      %608 = vdwg.mxu0
      %v609 = vmul.f32 %v606, 0.35355338
      %v610 = vsel %vm532, %v609, -inf
      %611 = vmax.xlane.f32.xlu0 %v610
      %v612 = vpop.xlane.xlu0 %611
      %v613 = vsub.f32 %v609, %v612
      %v614 = vmul.f32 %v613, 1.442695
      %v615 = vpow.pop %v614
      %v616 = vsel %vm532, %v615, 0.0
      %617 = vadd.xlane.f32.xlu0 %v616
      %v618 = vpop.xlane.xlu0 %617
      %v619 = vrcp.pop %v618
      %v620 = vmul.f32 %v615, %v619
      %621 = vrot.lane.b32.xlu0 %v529, 96
      %v622 = vpop.permute.xlu0 %621
      %v625 = vsel %vm532, %v620, 0
      %627 = vmatprep.subr.mxu0 0.0
      %628 = vmatpush1.msra.mxu0 %v622
      %629 = vmatprep.subr.mxu0 0.0
      %630 = vmatpush1.msra.mxu0 0.0
      %631 = vmatprep.subr.mxu0 0.0
      %632 = vmatpush1.msra.mxu0 0.0
      %633 = vmatprep.subr.mxu0 0.0
      %634 = vmatpush1.msra.mxu0 0.0
      %635 = vmatprep.subr.mxu0 0.0
      %636 = vmatpush1.msra.mxu0 0.0
      %637 = vmatprep.subr.mxu0 0.0
      %638 = vmatpush1.msra.mxu0 0.0
      %639 = vmatprep.subr.mxu0 0.0
      %640 = vmatpush1.msra.mxu0 0.0
      %641 = vmatprep.subr.mxu0 0.0
      %642 = vmatpush1.msra.mxu0 0.0
      %643 = vmatprep.subr.mxu0 0.0
      %644 = vmatpush1.msra.mxu0 0.0
      %645 = vmatprep.subr.mxu0 0.0
      %646 = vmatpush1.msra.mxu0 0.0
      %647 = vmatprep.subr.mxu0 0.0
      %648 = vmatpush1.msra.mxu0 0.0
      %649 = vmatprep.subr.mxu0 0.0
      %650 = vmatpush1.msra.mxu0 0.0
      %651 = vmatprep.subr.mxu0 0.0
      %652 = vmatpush1.msra.mxu0 0.0
      %653 = vmatprep.subr.mxu0 0.0
      %654 = vmatpush1.msra.mxu0 0.0
      %655 = vmatprep.subr.mxu0 0.0
      %656 = vmatpush1.msra.mxu0 0.0
      %657 = vmatprep.subr.mxu0 0.0
      %658 = vmatpush1.msra.mxu0 0.0
      %659 = vmatprep.subr.mxu0 0.0
      %660 = vmatpush1.msra.mxu0 0.0
      %661 = vmatprep.subr.mxu0 0.0
      %662 = vmatpush1.msra.mxu0 0.0
      %663 = vmatprep.subr.mxu0 0.0
      %664 = vmatpush1.msra.mxu0 0.0
      %665 = vmatprep.subr.mxu0 0.0
      %666 = vmatpush1.msra.mxu0 0.0
      %667 = vmatprep.subr.mxu0 0.0
      %668 = vmatpush1.msra.mxu0 0.0
      %669 = vmatprep.subr.mxu0 0.0
      %670 = vmatpush1.msra.mxu0 0.0
      %671 = vmatprep.subr.mxu0 0.0
      %672 = vmatpush1.msra.mxu0 0.0
      %673 = vmatprep.subr.mxu0 0.0
      %674 = vmatpush1.msra.mxu0 0.0
      %675 = vmatprep.subr.mxu0 0.0
      %676 = vmatpush1.msra.mxu0 0.0
      %677 = vmatprep.subr.mxu0 0.0
      %678 = vmatpush1.msra.mxu0 0.0
      %679 = vmatprep.subr.mxu0 0.0
      %680 = vmatpush1.msra.mxu0 0.0
      %681 = vmatprep.subr.mxu0 0.0
      %682 = vmatpush1.msra.mxu0 0.0
      %683 = vmatprep.subr.mxu0 0.0
      %684 = vmatpush1.msra.mxu0 0.0
      %685 = vmatprep.subr.mxu0 0.0
      %686 = vmatpush1.msra.mxu0 0.0
      %687 = vmatprep.subr.mxu0 0.0
      %688 = vmatpush1.msra.mxu0 0.0
      %689 = vmatprep.subr.mxu0 0.0
      %690 = vmatpush1.msra.mxu0 0.0
      %691 = vmatprep.mubr.f32.mxu0 0.0
      %692 = vmatmul.mubr.f32.gmra.mrb[0].mxu0 %v625
      %v693 = vpop.f32.mrb[0].mxu0
      %v694 = vadd.f32 0.0, %v693
      %v695 = vpop.f32.mrb[0].mxu0
      %696 = vdwg.mxu0
      %697 = vrot.lane.b32.xlu0 %v437, 120
      %v698 = vpop.permute.xlu0 %697
      %699 = vrot.lane.b32.xlu0 %v529, 120
      %v700 = vpop.permute.xlu0 %699
      %v701 = vsel %vm532, %v698, 0
      %v703 = vsel %vm532, %v700, 0
      %705 = vmatprep.subr.mxu0 0.0
      %706 = vmatpush1.xpose.msra.mxu0 %v703
      %707 = vmatprep.subr.mxu0 0.0
      %708 = vmatpush1.xpose.msra.mxu0 0.0
      %709 = vmatprep.subr.mxu0 0.0
      %710 = vmatpush1.xpose.msra.mxu0 0.0
      %711 = vmatprep.subr.mxu0 0.0
      %712 = vmatpush1.xpose.msra.mxu0 0.0
      %713 = vmatprep.subr.mxu0 0.0
      %714 = vmatpush1.xpose.msra.mxu0 0.0
      %715 = vmatprep.subr.mxu0 0.0
      %716 = vmatpush1.xpose.msra.mxu0 0.0
      %717 = vmatprep.subr.mxu0 0.0
      %718 = vmatpush1.xpose.msra.mxu0 0.0
      %719 = vmatprep.subr.mxu0 0.0
      %720 = vmatpush1.xpose.msra.mxu0 0.0
      %721 = vmatprep.subr.mxu0 0.0
      %722 = vmatpush1.xpose.msra.mxu0 0.0
      %723 = vmatprep.subr.mxu0 0.0
      %724 = vmatpush1.xpose.msra.mxu0 0.0
      %725 = vmatprep.subr.mxu0 0.0
      %726 = vmatpush1.xpose.msra.mxu0 0.0
      %727 = vmatprep.subr.mxu0 0.0
      %728 = vmatpush1.xpose.msra.mxu0 0.0
      %729 = vmatprep.subr.mxu0 0.0
      %730 = vmatpush1.xpose.msra.mxu0 0.0
      %731 = vmatprep.subr.mxu0 0.0
      %732 = vmatpush1.xpose.msra.mxu0 0.0
      %733 = vmatprep.subr.mxu0 0.0
      %734 = vmatpush1.xpose.msra.mxu0 0.0
      %735 = vmatprep.subr.mxu0 0.0
      %736 = vmatpush1.xpose.msra.mxu0 0.0
      %737 = vmatprep.subr.mxu0 0.0
      %738 = vmatpush1.xpose.msra.mxu0 0.0
      %739 = vmatprep.subr.mxu0 0.0
      %740 = vmatpush1.xpose.msra.mxu0 0.0
      %741 = vmatprep.subr.mxu0 0.0
      %742 = vmatpush1.xpose.msra.mxu0 0.0
      %743 = vmatprep.subr.mxu0 0.0
      %744 = vmatpush1.xpose.msra.mxu0 0.0
      %745 = vmatprep.subr.mxu0 0.0
      %746 = vmatpush1.xpose.msra.mxu0 0.0
      %747 = vmatprep.subr.mxu0 0.0
      %748 = vmatpush1.xpose.msra.mxu0 0.0
      %749 = vmatprep.subr.mxu0 0.0
      %750 = vmatpush1.xpose.msra.mxu0 0.0
      %751 = vmatprep.subr.mxu0 0.0
      %752 = vmatpush1.xpose.msra.mxu0 0.0
      %753 = vmatprep.subr.mxu0 0.0
      %754 = vmatpush1.xpose.msra.mxu0 0.0
      %755 = vmatprep.subr.mxu0 0.0
      %756 = vmatpush1.xpose.msra.mxu0 0.0
      %757 = vmatprep.subr.mxu0 0.0
      %758 = vmatpush1.xpose.msra.mxu0 0.0
      %759 = vmatprep.subr.mxu0 0.0
      %760 = vmatpush1.xpose.msra.mxu0 0.0
      %761 = vmatprep.subr.mxu0 0.0
      %762 = vmatpush1.xpose.msra.mxu0 0.0
      %763 = vmatprep.subr.mxu0 0.0
      %764 = vmatpush1.xpose.msra.mxu0 0.0
      %765 = vmatprep.subr.mxu0 0.0
      %766 = vmatpush1.xpose.msra.mxu0 0.0
      %767 = vmatprep.subr.mxu0 0.0
      %768 = vmatpush1.xpose.msra.mxu0 0.0
      %769 = vmatprep.mubr.f32.mxu0 0.0
      %770 = vmatmul.mubr.f32.gmra.mrb[0].mxu0 %v701
      %v771 = vpop.f32.mrb[0].mxu0
      %v772 = vadd.f32 0.0, %v771
      %v773 = vpop.f32.mrb[0].mxu0
      %774 = vdwg.mxu0
      %v775 = vmul.f32 %v772, 0.35355338
      %v776 = vsel %vm532, %v775, -inf
      %777 = vmax.xlane.f32.xlu0 %v776
      %v778 = vpop.xlane.xlu0 %777
      %v779 = vsub.f32 %v775, %v778
      %v780 = vmul.f32 %v779, 1.442695
      %v781 = vpow.pop %v780
      %v782 = vsel %vm532, %v781, 0.0
      %783 = vadd.xlane.f32.xlu0 %v782
      %v784 = vpop.xlane.xlu0 %783
      %v785 = vrcp.pop %v784
      %v786 = vmul.f32 %v781, %v785
      %787 = vrot.lane.b32.xlu0 %v529, 88
      %v788 = vpop.permute.xlu0 %787
      %v791 = vsel %vm532, %v786, 0
      %793 = vmatprep.subr.mxu0 0.0
      %794 = vmatpush1.msra.mxu0 %v788
      %795 = vmatprep.subr.mxu0 0.0
      %796 = vmatpush1.msra.mxu0 0.0
      %797 = vmatprep.subr.mxu0 0.0
      %798 = vmatpush1.msra.mxu0 0.0
      %799 = vmatprep.subr.mxu0 0.0
      %800 = vmatpush1.msra.mxu0 0.0
      %801 = vmatprep.subr.mxu0 0.0
      %802 = vmatpush1.msra.mxu0 0.0
      %803 = vmatprep.subr.mxu0 0.0
      %804 = vmatpush1.msra.mxu0 0.0
      %805 = vmatprep.subr.mxu0 0.0
      %806 = vmatpush1.msra.mxu0 0.0
      %807 = vmatprep.subr.mxu0 0.0
      %808 = vmatpush1.msra.mxu0 0.0
      %809 = vmatprep.subr.mxu0 0.0
      %810 = vmatpush1.msra.mxu0 0.0
      %811 = vmatprep.subr.mxu0 0.0
      %812 = vmatpush1.msra.mxu0 0.0
      %813 = vmatprep.subr.mxu0 0.0
      %814 = vmatpush1.msra.mxu0 0.0
      %815 = vmatprep.subr.mxu0 0.0
      %816 = vmatpush1.msra.mxu0 0.0
      %817 = vmatprep.subr.mxu0 0.0
      %818 = vmatpush1.msra.mxu0 0.0
      %819 = vmatprep.subr.mxu0 0.0
      %820 = vmatpush1.msra.mxu0 0.0
      %821 = vmatprep.subr.mxu0 0.0
      %822 = vmatpush1.msra.mxu0 0.0
      %823 = vmatprep.subr.mxu0 0.0
      %824 = vmatpush1.msra.mxu0 0.0
      %825 = vmatprep.subr.mxu0 0.0
      %826 = vmatpush1.msra.mxu0 0.0
      %827 = vmatprep.subr.mxu0 0.0
      %828 = vmatpush1.msra.mxu0 0.0
      %829 = vmatprep.subr.mxu0 0.0
      %830 = vmatpush1.msra.mxu0 0.0
      %831 = vmatprep.subr.mxu0 0.0
      %832 = vmatpush1.msra.mxu0 0.0
      %833 = vmatprep.subr.mxu0 0.0
      %834 = vmatpush1.msra.mxu0 0.0
      %835 = vmatprep.subr.mxu0 0.0
      %836 = vmatpush1.msra.mxu0 0.0
      %837 = vmatprep.subr.mxu0 0.0
      %838 = vmatpush1.msra.mxu0 0.0
      %839 = vmatprep.subr.mxu0 0.0
      %840 = vmatpush1.msra.mxu0 0.0
      %841 = vmatprep.subr.mxu0 0.0
      %842 = vmatpush1.msra.mxu0 0.0
      %843 = vmatprep.subr.mxu0 0.0
      %844 = vmatpush1.msra.mxu0 0.0
      %845 = vmatprep.subr.mxu0 0.0
      %846 = vmatpush1.msra.mxu0 0.0
      %847 = vmatprep.subr.mxu0 0.0
      %848 = vmatpush1.msra.mxu0 0.0
      %849 = vmatprep.subr.mxu0 0.0
      %850 = vmatpush1.msra.mxu0 0.0
      %851 = vmatprep.subr.mxu0 0.0
      %852 = vmatpush1.msra.mxu0 0.0
      %853 = vmatprep.subr.mxu0 0.0
      %854 = vmatpush1.msra.mxu0 0.0
      %855 = vmatprep.subr.mxu0 0.0
      %856 = vmatpush1.msra.mxu0 0.0
      %857 = vmatprep.mubr.f32.mxu0 0.0
      %858 = vmatmul.mubr.f32.gmra.mrb[0].mxu0 %v791
      %v859 = vpop.f32.mrb[0].mxu0
      %v860 = vadd.f32 0.0, %v859
      %v861 = vpop.f32.mrb[0].mxu0
      %862 = vdwg.mxu0
      %v864 = vsel %vm532, %v860, 0
      %866 = vmatprep.subr.mxu0 0.0
      %867 = vmatpush1.msra.mxu0 %v328
      %868 = vmatprep.subr.mxu0 0.0
      %869 = vmatpush1.msra.mxu0 0.0
      %870 = vmatprep.subr.mxu0 0.0
      %871 = vmatpush1.msra.mxu0 0.0
      %872 = vmatprep.subr.mxu0 0.0
      %873 = vmatpush1.msra.mxu0 0.0
      %874 = vmatprep.subr.mxu0 0.0
      %875 = vmatpush1.msra.mxu0 0.0
      %876 = vmatprep.subr.mxu0 0.0
      %877 = vmatpush1.msra.mxu0 0.0
      %878 = vmatprep.subr.mxu0 0.0
      %879 = vmatpush1.msra.mxu0 0.0
      %880 = vmatprep.subr.mxu0 0.0
      %881 = vmatpush1.msra.mxu0 0.0
      %882 = vmatprep.subr.mxu0 0.0
      %883 = vmatpush1.msra.mxu0 0.0
      %884 = vmatprep.subr.mxu0 0.0
      %885 = vmatpush1.msra.mxu0 0.0
      %886 = vmatprep.subr.mxu0 0.0
      %887 = vmatpush1.msra.mxu0 0.0
      %888 = vmatprep.subr.mxu0 0.0
      %889 = vmatpush1.msra.mxu0 0.0
      %890 = vmatprep.subr.mxu0 0.0
      %891 = vmatpush1.msra.mxu0 0.0
      %892 = vmatprep.subr.mxu0 0.0
      %893 = vmatpush1.msra.mxu0 0.0
      %894 = vmatprep.subr.mxu0 0.0
      %895 = vmatpush1.msra.mxu0 0.0
      %896 = vmatprep.subr.mxu0 0.0
      %897 = vmatpush1.msra.mxu0 0.0
      %898 = vmatprep.subr.mxu0 0.0
      %899 = vmatpush1.msra.mxu0 0.0
      %900 = vmatprep.subr.mxu0 0.0
      %901 = vmatpush1.msra.mxu0 0.0
      %902 = vmatprep.subr.mxu0 0.0
      %903 = vmatpush1.msra.mxu0 0.0
      %904 = vmatprep.subr.mxu0 0.0
      %905 = vmatpush1.msra.mxu0 0.0
      %906 = vmatprep.subr.mxu0 0.0
      %907 = vmatpush1.msra.mxu0 0.0
      %908 = vmatprep.subr.mxu0 0.0
      %909 = vmatpush1.msra.mxu0 0.0
      %910 = vmatprep.subr.mxu0 0.0
      %911 = vmatpush1.msra.mxu0 0.0
      %912 = vmatprep.subr.mxu0 0.0
      %913 = vmatpush1.msra.mxu0 0.0
      %914 = vmatprep.subr.mxu0 0.0
      %915 = vmatpush1.msra.mxu0 0.0
      %916 = vmatprep.subr.mxu0 0.0
      %917 = vmatpush1.msra.mxu0 0.0
      %918 = vmatprep.subr.mxu0 0.0
      %919 = vmatpush1.msra.mxu0 0.0
      %920 = vmatprep.subr.mxu0 0.0
      %921 = vmatpush1.msra.mxu0 0.0
      %922 = vmatprep.subr.mxu0 0.0
      %923 = vmatpush1.msra.mxu0 0.0
      %924 = vmatprep.subr.mxu0 0.0
      %925 = vmatpush1.msra.mxu0 0.0
      %926 = vmatprep.subr.mxu0 0.0
      %927 = vmatpush1.msra.mxu0 0.0
      %928 = vmatprep.subr.mxu0 0.0
      %929 = vmatpush1.msra.mxu0 0.0
      %930 = vmatprep.mubr.f32.mxu0 0.0
      %931 = vmatmul.mubr.f32.gmra.mrb[0].mxu0 %v864
      %v932 = vpop.f32.mrb[0].mxu0
      %v933 = vadd.f32 0.0, %v932
      %v934 = vpop.f32.mrb[0].mxu0
      %935 = vdwg.mxu0
      %v937 = vsel %vm532, %v694, 0
      %939 = vmatprep.subr.mxu0 0.0
      %940 = vmatpush1.msra.mxu0 %v327
      %941 = vmatprep.subr.mxu0 0.0
      %942 = vmatpush1.msra.mxu0 0.0
      %943 = vmatprep.subr.mxu0 0.0
      %944 = vmatpush1.msra.mxu0 0.0
      %945 = vmatprep.subr.mxu0 0.0
      %946 = vmatpush1.msra.mxu0 0.0
      %947 = vmatprep.subr.mxu0 0.0
      %948 = vmatpush1.msra.mxu0 0.0
      %949 = vmatprep.subr.mxu0 0.0
      %950 = vmatpush1.msra.mxu0 0.0
      %951 = vmatprep.subr.mxu0 0.0
      %952 = vmatpush1.msra.mxu0 0.0
      %953 = vmatprep.subr.mxu0 0.0
      %954 = vmatpush1.msra.mxu0 0.0
      %955 = vmatprep.subr.mxu0 0.0
      %956 = vmatpush1.msra.mxu0 0.0
      %957 = vmatprep.subr.mxu0 0.0
      %958 = vmatpush1.msra.mxu0 0.0
      %959 = vmatprep.subr.mxu0 0.0
      %960 = vmatpush1.msra.mxu0 0.0
      %961 = vmatprep.subr.mxu0 0.0
      %962 = vmatpush1.msra.mxu0 0.0
      %963 = vmatprep.subr.mxu0 0.0
      %964 = vmatpush1.msra.mxu0 0.0
      %965 = vmatprep.subr.mxu0 0.0
      %966 = vmatpush1.msra.mxu0 0.0
      %967 = vmatprep.subr.mxu0 0.0
      %968 = vmatpush1.msra.mxu0 0.0
      %969 = vmatprep.subr.mxu0 0.0
      %970 = vmatpush1.msra.mxu0 0.0
      %971 = vmatprep.subr.mxu0 0.0
      %972 = vmatpush1.msra.mxu0 0.0
      %973 = vmatprep.subr.mxu0 0.0
      %974 = vmatpush1.msra.mxu0 0.0
      %975 = vmatprep.subr.mxu0 0.0
      %976 = vmatpush1.msra.mxu0 0.0
      %977 = vmatprep.subr.mxu0 0.0
      %978 = vmatpush1.msra.mxu0 0.0
      %979 = vmatprep.subr.mxu0 0.0
      %980 = vmatpush1.msra.mxu0 0.0
      %981 = vmatprep.subr.mxu0 0.0
      %982 = vmatpush1.msra.mxu0 0.0
      %983 = vmatprep.subr.mxu0 0.0
      %984 = vmatpush1.msra.mxu0 0.0
      %985 = vmatprep.subr.mxu0 0.0
      %986 = vmatpush1.msra.mxu0 0.0
      %987 = vmatprep.subr.mxu0 0.0
      %988 = vmatpush1.msra.mxu0 0.0
      %989 = vmatprep.subr.mxu0 0.0
      %990 = vmatpush1.msra.mxu0 0.0
      %991 = vmatprep.subr.mxu0 0.0
      %992 = vmatpush1.msra.mxu0 0.0
      %993 = vmatprep.subr.mxu0 0.0
      %994 = vmatpush1.msra.mxu0 0.0
      %995 = vmatprep.subr.mxu0 0.0
      %996 = vmatpush1.msra.mxu0 0.0
      %997 = vmatprep.subr.mxu0 0.0
      %998 = vmatpush1.msra.mxu0 0.0
      %999 = vmatprep.subr.mxu0 0.0
      %1000 = vmatpush1.msra.mxu0 0.0
      %1001 = vmatprep.subr.mxu0 0.0
      %1002 = vmatpush1.msra.mxu0 0.0
      %1003 = vmatprep.mubr.f32.mxu0 0.0
      %1004 = vmatmul.mubr.f32.gmra.mrb[0].mxu0 %v937
      %v1005 = vpop.f32.mrb[0].mxu0
      %v1006 = vadd.f32 %v933, %v1005
      %v1007 = vpop.f32.mrb[0].mxu0
      %1008 = vdwg.mxu0
      %1009 = vrot.lane.b32.xlu0 %v437, 112
      %v1010 = vpop.permute.xlu0 %1009
      %1011 = vrot.lane.b32.xlu0 %v529, 112
      %v1012 = vpop.permute.xlu0 %1011
      %v1013 = vsel %vm532, %v1010, 0
      %v1015 = vsel %vm532, %v1012, 0
      %1017 = vmatprep.subr.mxu0 0.0
      %1018 = vmatpush1.xpose.msra.mxu0 %v1015
      %1019 = vmatprep.subr.mxu0 0.0
      %1020 = vmatpush1.xpose.msra.mxu0 0.0
      %1021 = vmatprep.subr.mxu0 0.0
      %1022 = vmatpush1.xpose.msra.mxu0 0.0
      %1023 = vmatprep.subr.mxu0 0.0
      %1024 = vmatpush1.xpose.msra.mxu0 0.0
      %1025 = vmatprep.subr.mxu0 0.0
      %1026 = vmatpush1.xpose.msra.mxu0 0.0
      %1027 = vmatprep.subr.mxu0 0.0
      %1028 = vmatpush1.xpose.msra.mxu0 0.0
      %1029 = vmatprep.subr.mxu0 0.0
      %1030 = vmatpush1.xpose.msra.mxu0 0.0
      %1031 = vmatprep.subr.mxu0 0.0
      %1032 = vmatpush1.xpose.msra.mxu0 0.0
      %1033 = vmatprep.subr.mxu0 0.0
      %1034 = vmatpush1.xpose.msra.mxu0 0.0
      %1035 = vmatprep.subr.mxu0 0.0
      %1036 = vmatpush1.xpose.msra.mxu0 0.0
      %1037 = vmatprep.subr.mxu0 0.0
      %1038 = vmatpush1.xpose.msra.mxu0 0.0
      %1039 = vmatprep.subr.mxu0 0.0
      %1040 = vmatpush1.xpose.msra.mxu0 0.0
      %1041 = vmatprep.subr.mxu0 0.0
      %1042 = vmatpush1.xpose.msra.mxu0 0.0
      %1043 = vmatprep.subr.mxu0 0.0
      %1044 = vmatpush1.xpose.msra.mxu0 0.0
      %1045 = vmatprep.subr.mxu0 0.0
      %1046 = vmatpush1.xpose.msra.mxu0 0.0
      %1047 = vmatprep.subr.mxu0 0.0
      %1048 = vmatpush1.xpose.msra.mxu0 0.0
      %1049 = vmatprep.subr.mxu0 0.0
      %1050 = vmatpush1.xpose.msra.mxu0 0.0
      %1051 = vmatprep.subr.mxu0 0.0
      %1052 = vmatpush1.xpose.msra.mxu0 0.0
      %1053 = vmatprep.subr.mxu0 0.0
      %1054 = vmatpush1.xpose.msra.mxu0 0.0
      %1055 = vmatprep.subr.mxu0 0.0
      %1056 = vmatpush1.xpose.msra.mxu0 0.0
      %1057 = vmatprep.subr.mxu0 0.0
      %1058 = vmatpush1.xpose.msra.mxu0 0.0
      %1059 = vmatprep.subr.mxu0 0.0
      %1060 = vmatpush1.xpose.msra.mxu0 0.0
      %1061 = vmatprep.subr.mxu0 0.0
      %1062 = vmatpush1.xpose.msra.mxu0 0.0
      %1063 = vmatprep.subr.mxu0 0.0
      %1064 = vmatpush1.xpose.msra.mxu0 0.0
      %1065 = vmatprep.subr.mxu0 0.0
      %1066 = vmatpush1.xpose.msra.mxu0 0.0
      %1067 = vmatprep.subr.mxu0 0.0
      %1068 = vmatpush1.xpose.msra.mxu0 0.0
      %1069 = vmatprep.subr.mxu0 0.0
      %1070 = vmatpush1.xpose.msra.mxu0 0.0
      %1071 = vmatprep.subr.mxu0 0.0
      %1072 = vmatpush1.xpose.msra.mxu0 0.0
      %1073 = vmatprep.subr.mxu0 0.0
      %1074 = vmatpush1.xpose.msra.mxu0 0.0
      %1075 = vmatprep.subr.mxu0 0.0
      %1076 = vmatpush1.xpose.msra.mxu0 0.0
      %1077 = vmatprep.subr.mxu0 0.0
      %1078 = vmatpush1.xpose.msra.mxu0 0.0
      %1079 = vmatprep.subr.mxu0 0.0
      %1080 = vmatpush1.xpose.msra.mxu0 0.0
      %1081 = vmatprep.mubr.f32.mxu0 0.0
      %1082 = vmatmul.mubr.f32.gmra.mrb[0].mxu0 %v1013
      %v1083 = vpop.f32.mrb[0].mxu0
      %v1084 = vadd.f32 0.0, %v1083
      %v1085 = vpop.f32.mrb[0].mxu0
      %1086 = vdwg.mxu0
      %v1087 = vmul.f32 %v1084, 0.35355338
      %v1088 = vsel %vm532, %v1087, -inf
      %1089 = vmax.xlane.f32.xlu0 %v1088
      %v1090 = vpop.xlane.xlu0 %1089
      %v1091 = vsub.f32 %v1087, %v1090
      %v1092 = vmul.f32 %v1091, 1.442695
      %v1093 = vpow.pop %v1092
      %v1094 = vsel %vm532, %v1093, 0.0
      %1095 = vadd.xlane.f32.xlu0 %v1094
      %v1096 = vpop.xlane.xlu0 %1095
      %v1097 = vrcp.pop %v1096
      %v1098 = vmul.f32 %v1093, %v1097
      %1099 = vrot.lane.b32.xlu0 %v529, 80
      %v1100 = vpop.permute.xlu0 %1099
      %v1103 = vsel %vm532, %v1098, 0
      %1105 = vmatprep.subr.mxu0 0.0
      %1106 = vmatpush1.msra.mxu0 %v1100
      %1107 = vmatprep.subr.mxu0 0.0
      %1108 = vmatpush1.msra.mxu0 0.0
      %1109 = vmatprep.subr.mxu0 0.0
      %1110 = vmatpush1.msra.mxu0 0.0
      %1111 = vmatprep.subr.mxu0 0.0
      %1112 = vmatpush1.msra.mxu0 0.0
      %1113 = vmatprep.subr.mxu0 0.0
      %1114 = vmatpush1.msra.mxu0 0.0
      %1115 = vmatprep.subr.mxu0 0.0
      %1116 = vmatpush1.msra.mxu0 0.0
      %1117 = vmatprep.subr.mxu0 0.0
      %1118 = vmatpush1.msra.mxu0 0.0
      %1119 = vmatprep.subr.mxu0 0.0
      %1120 = vmatpush1.msra.mxu0 0.0
      %1121 = vmatprep.subr.mxu0 0.0
      %1122 = vmatpush1.msra.mxu0 0.0
      %1123 = vmatprep.subr.mxu0 0.0
      %1124 = vmatpush1.msra.mxu0 0.0
      %1125 = vmatprep.subr.mxu0 0.0
      %1126 = vmatpush1.msra.mxu0 0.0
      %1127 = vmatprep.subr.mxu0 0.0
      %1128 = vmatpush1.msra.mxu0 0.0
      %1129 = vmatprep.subr.mxu0 0.0
      %1130 = vmatpush1.msra.mxu0 0.0
      %1131 = vmatprep.subr.mxu0 0.0
      %1132 = vmatpush1.msra.mxu0 0.0
      %1133 = vmatprep.subr.mxu0 0.0
      %1134 = vmatpush1.msra.mxu0 0.0
      %1135 = vmatprep.subr.mxu0 0.0
      %1136 = vmatpush1.msra.mxu0 0.0
      %1137 = vmatprep.subr.mxu0 0.0
      %1138 = vmatpush1.msra.mxu0 0.0
      %1139 = vmatprep.subr.mxu0 0.0
      %1140 = vmatpush1.msra.mxu0 0.0
      %1141 = vmatprep.subr.mxu0 0.0
      %1142 = vmatpush1.msra.mxu0 0.0
      %1143 = vmatprep.subr.mxu0 0.0
      %1144 = vmatpush1.msra.mxu0 0.0
      %1145 = vmatprep.subr.mxu0 0.0
      %1146 = vmatpush1.msra.mxu0 0.0
      %1147 = vmatprep.subr.mxu0 0.0
      %1148 = vmatpush1.msra.mxu0 0.0
      %1149 = vmatprep.subr.mxu0 0.0
      %1150 = vmatpush1.msra.mxu0 0.0
      %1151 = vmatprep.subr.mxu0 0.0
      %1152 = vmatpush1.msra.mxu0 0.0
      %1153 = vmatprep.subr.mxu0 0.0
      %1154 = vmatpush1.msra.mxu0 0.0
      %1155 = vmatprep.subr.mxu0 0.0
      %1156 = vmatpush1.msra.mxu0 0.0
      %1157 = vmatprep.subr.mxu0 0.0
      %1158 = vmatpush1.msra.mxu0 0.0
      %1159 = vmatprep.subr.mxu0 0.0
      %1160 = vmatpush1.msra.mxu0 0.0
      %1161 = vmatprep.subr.mxu0 0.0
      %1162 = vmatpush1.msra.mxu0 0.0
      %1163 = vmatprep.subr.mxu0 0.0
      %1164 = vmatpush1.msra.mxu0 0.0
      %1165 = vmatprep.subr.mxu0 0.0
      %1166 = vmatpush1.msra.mxu0 0.0
      %1167 = vmatprep.subr.mxu0 0.0
      %1168 = vmatpush1.msra.mxu0 0.0
      %1169 = vmatprep.mubr.f32.mxu0 0.0
      %1170 = vmatmul.mubr.f32.gmra.mrb[0].mxu0 %v1103
      %v1171 = vpop.f32.mrb[0].mxu0
      %v1172 = vadd.f32 0.0, %v1171
      %v1173 = vpop.f32.mrb[0].mxu0
      %1174 = vdwg.mxu0
      %v1176 = vsel %vm532, %v1172, 0
      %1178 = vmatprep.subr.mxu0 0.0
      %1179 = vmatpush1.msra.mxu0 %v329
      %1180 = vmatprep.subr.mxu0 0.0
      %1181 = vmatpush1.msra.mxu0 0.0
      %1182 = vmatprep.subr.mxu0 0.0
      %1183 = vmatpush1.msra.mxu0 0.0
      %1184 = vmatprep.subr.mxu0 0.0
      %1185 = vmatpush1.msra.mxu0 0.0
      %1186 = vmatprep.subr.mxu0 0.0
      %1187 = vmatpush1.msra.mxu0 0.0
      %1188 = vmatprep.subr.mxu0 0.0
      %1189 = vmatpush1.msra.mxu0 0.0
      %1190 = vmatprep.subr.mxu0 0.0
      %1191 = vmatpush1.msra.mxu0 0.0
      %1192 = vmatprep.subr.mxu0 0.0
      %1193 = vmatpush1.msra.mxu0 0.0
      %1194 = vmatprep.subr.mxu0 0.0
      %1195 = vmatpush1.msra.mxu0 0.0
      %1196 = vmatprep.subr.mxu0 0.0
      %1197 = vmatpush1.msra.mxu0 0.0
      %1198 = vmatprep.subr.mxu0 0.0
      %1199 = vmatpush1.msra.mxu0 0.0
      %1200 = vmatprep.subr.mxu0 0.0
      %1201 = vmatpush1.msra.mxu0 0.0
      %1202 = vmatprep.subr.mxu0 0.0
      %1203 = vmatpush1.msra.mxu0 0.0
      %1204 = vmatprep.subr.mxu0 0.0
      %1205 = vmatpush1.msra.mxu0 0.0
      %1206 = vmatprep.subr.mxu0 0.0
      %1207 = vmatpush1.msra.mxu0 0.0
      %1208 = vmatprep.subr.mxu0 0.0
      %1209 = vmatpush1.msra.mxu0 0.0
      %1210 = vmatprep.subr.mxu0 0.0
      %1211 = vmatpush1.msra.mxu0 0.0
      %1212 = vmatprep.subr.mxu0 0.0
      %1213 = vmatpush1.msra.mxu0 0.0
      %1214 = vmatprep.subr.mxu0 0.0
      %1215 = vmatpush1.msra.mxu0 0.0
      %1216 = vmatprep.subr.mxu0 0.0
      %1217 = vmatpush1.msra.mxu0 0.0
      %1218 = vmatprep.subr.mxu0 0.0
      %1219 = vmatpush1.msra.mxu0 0.0
      %1220 = vmatprep.subr.mxu0 0.0
      %1221 = vmatpush1.msra.mxu0 0.0
      %1222 = vmatprep.subr.mxu0 0.0
      %1223 = vmatpush1.msra.mxu0 0.0
      %1224 = vmatprep.subr.mxu0 0.0
      %1225 = vmatpush1.msra.mxu0 0.0
      %1226 = vmatprep.subr.mxu0 0.0
      %1227 = vmatpush1.msra.mxu0 0.0
      %1228 = vmatprep.subr.mxu0 0.0
      %1229 = vmatpush1.msra.mxu0 0.0
      %1230 = vmatprep.subr.mxu0 0.0
      %1231 = vmatpush1.msra.mxu0 0.0
      %1232 = vmatprep.subr.mxu0 0.0
      %1233 = vmatpush1.msra.mxu0 0.0
      %1234 = vmatprep.subr.mxu0 0.0
      %1235 = vmatpush1.msra.mxu0 0.0
      %1236 = vmatprep.subr.mxu0 0.0
      %1237 = vmatpush1.msra.mxu0 0.0
      %1238 = vmatprep.subr.mxu0 0.0
      %1239 = vmatpush1.msra.mxu0 0.0
      %1240 = vmatprep.subr.mxu0 0.0
      %1241 = vmatpush1.msra.mxu0 0.0
      %1242 = vmatprep.mubr.f32.mxu0 0.0
      %1243 = vmatmul.mubr.f32.gmra.mrb[0].mxu0 %v1176
      %v1244 = vpop.f32.mrb[0].mxu0
      %v1245 = vadd.f32 0.0, %v1244
      %v1246 = vpop.f32.mrb[0].mxu0
      %1247 = vdwg.mxu0
      %v1248 = vadd.f32 %v1006, %v1245
      %1249 = vrot.lane.b32.xlu0 %v437, 104
      %v1250 = vpop.permute.xlu0 %1249
      %1251 = vrot.lane.b32.xlu0 %v529, 104
      %v1252 = vpop.permute.xlu0 %1251
      %v1253 = vsel %vm532, %v1250, 0
      %v1255 = vsel %vm532, %v1252, 0
      %1257 = vmatprep.subr.mxu0 0.0
      %1258 = vmatpush1.xpose.msra.mxu0 %v1255
      %1259 = vmatprep.subr.mxu0 0.0
      %1260 = vmatpush1.xpose.msra.mxu0 0.0
      %1261 = vmatprep.subr.mxu0 0.0
      %1262 = vmatpush1.xpose.msra.mxu0 0.0
      %1263 = vmatprep.subr.mxu0 0.0
      %1264 = vmatpush1.xpose.msra.mxu0 0.0
      %1265 = vmatprep.subr.mxu0 0.0
      %1266 = vmatpush1.xpose.msra.mxu0 0.0
      %1267 = vmatprep.subr.mxu0 0.0
      %1268 = vmatpush1.xpose.msra.mxu0 0.0
      %1269 = vmatprep.subr.mxu0 0.0
      %1270 = vmatpush1.xpose.msra.mxu0 0.0
      %1271 = vmatprep.subr.mxu0 0.0
      %1272 = vmatpush1.xpose.msra.mxu0 0.0
      %1273 = vmatprep.subr.mxu0 0.0
      %1274 = vmatpush1.xpose.msra.mxu0 0.0
      %1275 = vmatprep.subr.mxu0 0.0
      %1276 = vmatpush1.xpose.msra.mxu0 0.0
      %1277 = vmatprep.subr.mxu0 0.0
      %1278 = vmatpush1.xpose.msra.mxu0 0.0
      %1279 = vmatprep.subr.mxu0 0.0
      %1280 = vmatpush1.xpose.msra.mxu0 0.0
      %1281 = vmatprep.subr.mxu0 0.0
      %1282 = vmatpush1.xpose.msra.mxu0 0.0
      %1283 = vmatprep.subr.mxu0 0.0
      %1284 = vmatpush1.xpose.msra.mxu0 0.0
      %1285 = vmatprep.subr.mxu0 0.0
      %1286 = vmatpush1.xpose.msra.mxu0 0.0
      %1287 = vmatprep.subr.mxu0 0.0
      %1288 = vmatpush1.xpose.msra.mxu0 0.0
      %1289 = vmatprep.subr.mxu0 0.0
      %1290 = vmatpush1.xpose.msra.mxu0 0.0
      %1291 = vmatprep.subr.mxu0 0.0
      %1292 = vmatpush1.xpose.msra.mxu0 0.0
      %1293 = vmatprep.subr.mxu0 0.0
      %1294 = vmatpush1.xpose.msra.mxu0 0.0
      %1295 = vmatprep.subr.mxu0 0.0
      %1296 = vmatpush1.xpose.msra.mxu0 0.0
      %1297 = vmatprep.subr.mxu0 0.0
      %1298 = vmatpush1.xpose.msra.mxu0 0.0
      %1299 = vmatprep.subr.mxu0 0.0
      %1300 = vmatpush1.xpose.msra.mxu0 0.0
      %1301 = vmatprep.subr.mxu0 0.0
      %1302 = vmatpush1.xpose.msra.mxu0 0.0
      %1303 = vmatprep.subr.mxu0 0.0
      %1304 = vmatpush1.xpose.msra.mxu0 0.0
      %1305 = vmatprep.subr.mxu0 0.0
      %1306 = vmatpush1.xpose.msra.mxu0 0.0
      %1307 = vmatprep.subr.mxu0 0.0
      %1308 = vmatpush1.xpose.msra.mxu0 0.0
      %1309 = vmatprep.subr.mxu0 0.0
      %1310 = vmatpush1.xpose.msra.mxu0 0.0
      %1311 = vmatprep.subr.mxu0 0.0
      %1312 = vmatpush1.xpose.msra.mxu0 0.0
      %1313 = vmatprep.subr.mxu0 0.0
      %1314 = vmatpush1.xpose.msra.mxu0 0.0
      %1315 = vmatprep.subr.mxu0 0.0
      %1316 = vmatpush1.xpose.msra.mxu0 0.0
      %1317 = vmatprep.subr.mxu0 0.0
      %1318 = vmatpush1.xpose.msra.mxu0 0.0
      %1319 = vmatprep.subr.mxu0 0.0
      %1320 = vmatpush1.xpose.msra.mxu0 0.0
      %1321 = vmatprep.mubr.f32.mxu0 0.0
      %1322 = vmatmul.mubr.f32.gmra.mrb[0].mxu0 %v1253
      %v1323 = vpop.f32.mrb[0].mxu0
      %v1324 = vadd.f32 0.0, %v1323
      %v1325 = vpop.f32.mrb[0].mxu0
      %1326 = vdwg.mxu0
      %v1327 = vmul.f32 %v1324, 0.35355338
      %v1328 = vsel %vm532, %v1327, -inf
      %1329 = vmax.xlane.f32.xlu0 %v1328
      %v1330 = vpop.xlane.xlu0 %1329
      %v1331 = vsub.f32 %v1327, %v1330
      %v1332 = vmul.f32 %v1331, 1.442695
      %v1333 = vpow.pop %v1332
      %v1334 = vsel %vm532, %v1333, 0.0
      %1335 = vadd.xlane.f32.xlu0 %v1334
      %v1336 = vpop.xlane.xlu0 %1335
      %v1337 = vrcp.pop %v1336
      %v1338 = vmul.f32 %v1333, %v1337
      %1339 = vrot.lane.b32.xlu0 %v529, 72
      %v1340 = vpop.permute.xlu0 %1339
      %v1343 = vsel %vm532, %v1338, 0
      %1345 = vmatprep.subr.mxu0 0.0
      %1346 = vmatpush1.msra.mxu0 %v1340
      %1347 = vmatprep.subr.mxu0 0.0
      %1348 = vmatpush1.msra.mxu0 0.0
      %1349 = vmatprep.subr.mxu0 0.0
      %1350 = vmatpush1.msra.mxu0 0.0
      %1351 = vmatprep.subr.mxu0 0.0
      %1352 = vmatpush1.msra.mxu0 0.0
      %1353 = vmatprep.subr.mxu0 0.0
      %1354 = vmatpush1.msra.mxu0 0.0
      %1355 = vmatprep.subr.mxu0 0.0
      %1356 = vmatpush1.msra.mxu0 0.0
      %1357 = vmatprep.subr.mxu0 0.0
      %1358 = vmatpush1.msra.mxu0 0.0
      %1359 = vmatprep.subr.mxu0 0.0
      %1360 = vmatpush1.msra.mxu0 0.0
      %1361 = vmatprep.subr.mxu0 0.0
      %1362 = vmatpush1.msra.mxu0 0.0
      %1363 = vmatprep.subr.mxu0 0.0
      %1364 = vmatpush1.msra.mxu0 0.0
      %1365 = vmatprep.subr.mxu0 0.0
      %1366 = vmatpush1.msra.mxu0 0.0
      %1367 = vmatprep.subr.mxu0 0.0
      %1368 = vmatpush1.msra.mxu0 0.0
      %1369 = vmatprep.subr.mxu0 0.0
      %1370 = vmatpush1.msra.mxu0 0.0
      %1371 = vmatprep.subr.mxu0 0.0
      %1372 = vmatpush1.msra.mxu0 0.0
      %1373 = vmatprep.subr.mxu0 0.0
      %1374 = vmatpush1.msra.mxu0 0.0
      %1375 = vmatprep.subr.mxu0 0.0
      %1376 = vmatpush1.msra.mxu0 0.0
      %1377 = vmatprep.subr.mxu0 0.0
      %1378 = vmatpush1.msra.mxu0 0.0
      %1379 = vmatprep.subr.mxu0 0.0
      %1380 = vmatpush1.msra.mxu0 0.0
      %1381 = vmatprep.subr.mxu0 0.0
      %1382 = vmatpush1.msra.mxu0 0.0
      %1383 = vmatprep.subr.mxu0 0.0
      %1384 = vmatpush1.msra.mxu0 0.0
      %1385 = vmatprep.subr.mxu0 0.0
      %1386 = vmatpush1.msra.mxu0 0.0
      %1387 = vmatprep.subr.mxu0 0.0
      %1388 = vmatpush1.msra.mxu0 0.0
      %1389 = vmatprep.subr.mxu0 0.0
      %1390 = vmatpush1.msra.mxu0 0.0
      %1391 = vmatprep.subr.mxu0 0.0
      %1392 = vmatpush1.msra.mxu0 0.0
      %1393 = vmatprep.subr.mxu0 0.0
      %1394 = vmatpush1.msra.mxu0 0.0
      %1395 = vmatprep.subr.mxu0 0.0
      %1396 = vmatpush1.msra.mxu0 0.0
      %1397 = vmatprep.subr.mxu0 0.0
      %1398 = vmatpush1.msra.mxu0 0.0
      %1399 = vmatprep.subr.mxu0 0.0
      %1400 = vmatpush1.msra.mxu0 0.0
      %1401 = vmatprep.subr.mxu0 0.0
      %1402 = vmatpush1.msra.mxu0 0.0
      %1403 = vmatprep.subr.mxu0 0.0
      %1404 = vmatpush1.msra.mxu0 0.0
      %1405 = vmatprep.subr.mxu0 0.0
      %1406 = vmatpush1.msra.mxu0 0.0
      %1407 = vmatprep.subr.mxu0 0.0
      %1408 = vmatpush1.msra.mxu0 0.0
      %1409 = vmatprep.mubr.f32.mxu0 0.0
      %1410 = vmatmul.mubr.f32.gmra.mrb[0].mxu0 %v1343
      %v1411 = vpop.f32.mrb[0].mxu0
      %v1412 = vadd.f32 0.0, %v1411
      %v1413 = vpop.f32.mrb[0].mxu0
      %1414 = vdwg.mxu0
      %v1416 = vsel %vm532, %v1412, 0
      %1418 = vmatprep.subr.mxu0 0.0
      %1419 = vmatpush1.msra.mxu0 %v330
      %1420 = vmatprep.subr.mxu0 0.0
      %1421 = vmatpush1.msra.mxu0 0.0
      %1422 = vmatprep.subr.mxu0 0.0
      %1423 = vmatpush1.msra.mxu0 0.0
      %1424 = vmatprep.subr.mxu0 0.0
      %1425 = vmatpush1.msra.mxu0 0.0
      %1426 = vmatprep.subr.mxu0 0.0
      %1427 = vmatpush1.msra.mxu0 0.0
      %1428 = vmatprep.subr.mxu0 0.0
      %1429 = vmatpush1.msra.mxu0 0.0
      %1430 = vmatprep.subr.mxu0 0.0
      %1431 = vmatpush1.msra.mxu0 0.0
      %1432 = vmatprep.subr.mxu0 0.0
      %1433 = vmatpush1.msra.mxu0 0.0
      %1434 = vmatprep.subr.mxu0 0.0
      %1435 = vmatpush1.msra.mxu0 0.0
      %1436 = vmatprep.subr.mxu0 0.0
      %1437 = vmatpush1.msra.mxu0 0.0
      %1438 = vmatprep.subr.mxu0 0.0
      %1439 = vmatpush1.msra.mxu0 0.0
      %1440 = vmatprep.subr.mxu0 0.0
      %1441 = vmatpush1.msra.mxu0 0.0
      %1442 = vmatprep.subr.mxu0 0.0
      %1443 = vmatpush1.msra.mxu0 0.0
      %1444 = vmatprep.subr.mxu0 0.0
      %1445 = vmatpush1.msra.mxu0 0.0
      %1446 = vmatprep.subr.mxu0 0.0
      %1447 = vmatpush1.msra.mxu0 0.0
      %1448 = vmatprep.subr.mxu0 0.0
      %1449 = vmatpush1.msra.mxu0 0.0
      %1450 = vmatprep.subr.mxu0 0.0
      %1451 = vmatpush1.msra.mxu0 0.0
      %1452 = vmatprep.subr.mxu0 0.0
      %1453 = vmatpush1.msra.mxu0 0.0
      %1454 = vmatprep.subr.mxu0 0.0
      %1455 = vmatpush1.msra.mxu0 0.0
      %1456 = vmatprep.subr.mxu0 0.0
      %1457 = vmatpush1.msra.mxu0 0.0
      %1458 = vmatprep.subr.mxu0 0.0
      %1459 = vmatpush1.msra.mxu0 0.0
      %1460 = vmatprep.subr.mxu0 0.0
      %1461 = vmatpush1.msra.mxu0 0.0
      %1462 = vmatprep.subr.mxu0 0.0
      %1463 = vmatpush1.msra.mxu0 0.0
      %1464 = vmatprep.subr.mxu0 0.0
      %1465 = vmatpush1.msra.mxu0 0.0
      %1466 = vmatprep.subr.mxu0 0.0
      %1467 = vmatpush1.msra.mxu0 0.0
      %1468 = vmatprep.subr.mxu0 0.0
      %1469 = vmatpush1.msra.mxu0 0.0
      %1470 = vmatprep.subr.mxu0 0.0
      %1471 = vmatpush1.msra.mxu0 0.0
      %1472 = vmatprep.subr.mxu0 0.0
      %1473 = vmatpush1.msra.mxu0 0.0
      %1474 = vmatprep.subr.mxu0 0.0
      %1475 = vmatpush1.msra.mxu0 0.0
      %1476 = vmatprep.subr.mxu0 0.0
      %1477 = vmatpush1.msra.mxu0 0.0
      %1478 = vmatprep.subr.mxu0 0.0
      %1479 = vmatpush1.msra.mxu0 0.0
      %1480 = vmatprep.subr.mxu0 0.0
      %1481 = vmatpush1.msra.mxu0 0.0
      %1482 = vmatprep.mubr.f32.mxu0 0.0
      %1483 = vmatmul.mubr.f32.gmra.mrb[0].mxu0 %v1416
      %v1484 = vpop.f32.mrb[0].mxu0
      %v1485 = vadd.f32 0.0, %v1484
      %v1486 = vpop.f32.mrb[0].mxu0
      %1487 = vdwg.mxu0
      %v1488 = vadd.f32 %v1248, %v1485
      %v1489 = vadd.f32 %v318, %v1488
      %v1491 = vlaneseq
      %v1492 = vshrl.u32 %v1491, 7
      %v1493 = vsub.s32 0, %v1492
      %v1494 = vrot.slane %v331, %v1493
      %v1496 = vadd.f32 %v1489, %v1494
      %1497 = vst.msk [vmem:[%s317] sm:$0xff] %vm332, %v1496
      %p1498 = scmp.lt.s32.totalorder %s19, 1
      %s1499 = scalar_select %p1498, %s19, 1
      %s1500 = smul.addr %s1499, 8
      %s1501 = scalar_lea.vmem %s8, %s1500
      // Predicated region
      $region53: #{transformer_decoder_forward.8} parent=51 // pred_check
        %p1502 = pneg %p215
      $region54: #{transformer_decoder_forward.8} parent=51 // pred_check_branch
        %1504 = sbr.rel (%p1502) target = $region56
      $region55: #{transformer_decoder_forward.8} parent=51 // pred_region
        _
      $region56: #{transformer_decoder_forward.8} parent=51 // pred_fallthru
        _
    $region52: #{transformer_decoder_forward.8} parent=5 // pred_fallthru
      _
    %p1505 = scmp.le.s32.totalorder 2, %s14
    // Predicated region
    $region57: #{transformer_decoder_forward.8} parent=5 // pred_check
      %p1506 = pneg %p1505
    $region58: #{transformer_decoder_forward.8} parent=5 // pred_check_branch
      %1508 = sbr.rel (%p1506) target = $region60
    $region59: #{transformer_decoder_forward.8} parent=5 // pred_region
      %s1509 = ssub.s32 %s14, 2
      // Predicated region
      $region61: #{transformer_decoder_forward.8} parent=59 // pred_check
        %p1510 = pneg %p221
      $region62: #{transformer_decoder_forward.8} parent=59 // pred_check_branch
        %1512 = sbr.rel (%p1510) target = $region64
      $region63: #{transformer_decoder_forward.8} parent=59 // pred_region
        %p1513 = scmp.lt.s32.totalorder %s20, 1
        %s1514 = scalar_select %p1513, %s20, 1
        %s1515 = smul.addr %s1514, 8
        %s1516 = scalar_lea.vmem %s8, %s1515
      $region64: #{transformer_decoder_forward.8} parent=59 // pred_fallthru
        _
    $region60: #{transformer_decoder_forward.8} parent=5 // pred_fallthru
      _
  $region6: #{transformer_decoder_forward.8} parent=0 // loop_footer
    %s18 = sadd.s32 1, %s14
  $region7: #{transformer_decoder_forward.8} parent=0 // loop_footer_branch
    %13 = sbr.rel target = $region3
  $region8: #{transformer_decoder_forward.8} parent=0 // loop_exit
    _

</llo_original>
